<compile_context>
chip_gen: v7x
topology: tpu7x:2x2x1
jax: 0.10.0
libtpu: 0.0.40
codegen_flags: <defaults>
</compile_context>

<pallas_src>
import functools

import jax
import jax.numpy as jnp
from jax.experimental import pallas as pl
from jax.experimental.pallas import tpu as pltpu


def _round_up(x: int, m: int) -> int:
    return ((x + m - 1) // m) * m


def _round_down(x: int, m: int) -> int:
    return (x // m) * m


def _vmem_budget_bytes() -> int:
    """Per-generation scoped-VMEM budget (bytes)."""
    cap = None
    try:
        info = pltpu.get_tpu_info()
        for attr in ("vmem_capacity_bytes", "vmem_size_bytes", "vmem_bytes"):
            v = getattr(info, attr, None)
            if v:
                cap = int(v)
                break
    except Exception:
        cap = None
    if cap is None:
        # Unknown chip: stay well under v7x's 64 MiB physical VMEM.
        return 48 * 1024 * 1024
    # 80% of physical, capped ~100 MiB (v5e/v6e have 128 MiB, v7x has 64 MiB).
    return int(min(0.8 * cap, 100 * 1024 * 1024))


def _siren_stack_kernel(x_ref, *refs, num_layers, is_last_flags):
    """refs = (w_0, b_0, ..., w_{L-1}, b_{L-1}, o_ref); all channels-first.

    x_ref: (C_in, tile_n); w_l: (C_out_l, C_in_l); b_l: (C_out_l, 1);
    o_ref: (C_out_last, tile_n).
    """
    o_ref = refs[-1]
    w_refs = refs[0:2 * num_layers:2]
    b_refs = refs[1:2 * num_layers:2]

    h = x_ref[...]                                       # (C_in, tile_n)
    for l in range(num_layers):
        w = w_refs[l][...]                               # resident in VMEM
        # MXU matmul; operands in the weight's dtype (f32 or bf16), f32 acc.
        z = jnp.dot(w, h.astype(w.dtype), preferred_element_type=jnp.float32)
        z = z + b_refs[l][...]                           # (C_out_l, 1) bcast
        if is_last_flags[l]:
            # sigmoid(z) == 0.5 * (tanh(z/2) + 1) -> EUP tanh, not exp+divide.
            h = 0.5 * jnp.tanh(0.5 * z) + 0.5
        else:
            h = jnp.sin(z)                               # w0 folded into w/b
    o_ref[...] = h.astype(o_ref.dtype)


def siren_stack(x_cf, layers, *, w0=30, tile_n=None, max_tile_n=32768,
                matmul_dtype=jnp.bfloat16, first_layer_f32=True,
                out_dtype=jnp.float32, interpret=False):
    """Fused stack of SirenLayer forwards, channels-first.

    x_cf:   (C_in, N) array -- pixels on the (fast) lane axis.
    layers: list of (weight, bias, is_last); weight in nn.Linear layout
            (C_out_l, C_in_l), bias (C_out_l,).
    Returns (C_out_last, N) in `out_dtype`.
    """
    c_in, n = x_cf.shape
    num_layers = len(layers)
    assert num_layers >= 1

    # --- parameter prep: fold w0, pick per-layer matmul dtype, bias -> f32 ---
    params, is_last_flags = [], []
    prev = c_in
    for l, (w, b, is_last) in enumerate(layers):
        w = jnp.asarray(w, jnp.float32)
        b = jnp.asarray(b, jnp.float32)
        assert w.ndim == 2 and w.shape[1] == prev, "layer shapes must chain"
        scale = 1.0 if is_last else float(w0)   # sin(w0(Wx+b)) == sin((w0 W)x + w0 b)
        w_dtype = jnp.float32 if (l == 0 and first_layer_f32) else matmul_dtype
        params.append((w * scale).astype(w_dtype))
        params.append((b * scale).reshape(-1, 1).astype(jnp.float32))
        is_last_flags.append(bool(is_last))
        prev = w.shape[0]
    c_out = prev

    # --- tile sizing from the VMEM budget (includes in-kernel intermediates) --
    budget = _vmem_budget_bytes()
    x_item = jnp.dtype(x_cf.dtype).itemsize
    out_item = jnp.dtype(out_dtype).itemsize
    # Double-buffered input/output pipeline tiles, per pixel column.
    per_col = 2 * c_in * x_item + 2 * c_out * out_item
    # In-kernel intermediates per pixel column (f32 h + cast copy + f32 z),
    # worst layer.
    ci, inter = c_in, 0
    for (w, _, _) in layers:
        co = int(w.shape[0])
        inter = max(inter, 6 * ci + 4 * co)
        ci = co
    per_col += inter
    param_bytes = sum(int(p.size) * jnp.dtype(p.dtype).itemsize for p in params)
    usable = max(budget - 2 * param_bytes - (4 << 20), 4 << 20)
    auto_tile = max(128, _round_down(usable // per_col, 128))

    tile = auto_tile if tile_n is None else int(tile_n)
    tile = min(tile, int(max_tile_n))
    if tile >= n:
        tile = n                      # single full-width block (any N allowed)
    else:
        tile = max(128, _round_down(tile, 128))
        if n >= 1024:
            # Keep >= 2 grid steps so "parallel" can split rows across cores.
            tile = min(tile, max(128, _round_up(pl.cdiv(n, 2), 128)))
    grid_n = pl.cdiv(n, tile)         # partial edge block is masked by Pallas

    in_specs = [pl.BlockSpec((c_in, tile), lambda i: (0, i))]
    for p in params:
        # Full array, constant block index -> stays resident across grid steps.
        in_specs.append(pl.BlockSpec(p.shape, lambda i: (0, 0)))

    kernel = functools.partial(
        _siren_stack_kernel,
        num_layers=num_layers,
        is_last_flags=tuple(is_last_flags),
    )

    return pl.pallas_call(
        kernel,
        out_shape=jax.ShapeDtypeStruct((c_out, n), out_dtype),
        grid=(grid_n,),
        in_specs=in_specs,
        out_specs=pl.BlockSpec((c_out, tile), lambda i: (0, i)),
        compiler_params=pltpu.CompilerParams(
            dimension_semantics=("parallel",),
            vmem_limit_bytes=int(budget),
        ),
        interpret=interpret,
    )(x_cf, *params)


def siren_layer(x_cf, weight, bias, *, w0=30, is_last=False, **kw):
    """Single SirenLayer forward, channels-first (C_in, N) -> (C_out, N)."""
    return siren_stack(x_cf, [(weight, bias, is_last)], w0=w0, **kw)


def siren_stack_channels_last(x_nc, layers, **kw):
    """Drop-in layout: x (..., C_in) -> (..., C_out) like the PyTorch module.
    Transposes to the lane-dense channels-first layout around the kernel."""
    lead, c_in = x_nc.shape[:-1], x_nc.shape[-1]
    y_cf = siren_stack(x_nc.reshape(-1, c_in).T, layers, **kw)
    return y_cf.T.reshape(*lead, y_cf.shape[0])


def make_siren_params(key, in_channels, out_channels, *, w0=30,
                      is_first=False, is_last=False):
    """Deterministic init matching SirenLayer.__init__ / init_weights.
    Returns weight (C_out, C_in) [nn.Linear layout] and bias (C_out,)."""
    kw, kb = jax.random.split(key)
    lim = 1.0 / float(in_channels) ** 0.5            # nn.Linear default bound
    bias = jax.random.uniform(kb, (out_channels,), jnp.float32, -lim, lim)
    if is_last:
        b = lim                                       # keeps nn.Linear default
    elif is_first:
        b = 1.0 / in_channels
    else:
        b = float((6.0 / in_channels) ** 0.5) / w0
    weight = jax.random.uniform(kw, (out_channels, in_channels),
                                jnp.float32, -b, b)
    return weight, bias


def siren_layer_ref(x_nc, weight, bias, *, w0=30, is_last=False):
    """Pure-JAX reference matching the PyTorch forward (channels-last)."""
    z = x_nc @ weight.T + bias
    return jax.nn.sigmoid(z) if is_last else jnp.sin(w0 * z)


if __name__ == "__main__":
    key = jax.random.PRNGKey(0)
    k_x, k_p1, k_p2, k_p3 = jax.random.split(key, 4)

    # COLIE-style SIREN: 16x16 patch -> N = 256 pixels; widths 32/64/64/32.
    N, c_in, c_hidden, c_out = 256, 32, 64, 32
    x_nc = 0.5 * jax.random.normal(k_x, (N, c_in), jnp.float32)   # PyTorch layout
    x_cf = x_nc.T                                                 # (C, N) lane-dense

    w1, b1 = make_siren_params(k_p1, c_in, c_hidden, w0=30, is_first=True)
    w2, b2 = make_siren_params(k_p2, c_hidden, c_hidden, w0=30)
    w3, b3 = make_siren_params(k_p3, c_hidden, c_out, w0=30, is_last=True)
    layers = [(w1, b1, False), (w2, b2, False), (w3, b3, True)]

    # Pure-JAX reference (channels-last, mirrors the PyTorch forward).
    ref = x_nc
    for (w, b, is_last) in layers:
        ref = siren_layer_ref(ref, w, b, w0=30, is_last=is_last)
    ref_cf = ref.T                                                # (C_out, N)

    # 1) Fused stack, all-f32 matmuls.
    y_f32 = siren_stack(x_cf, layers, w0=30, matmul_dtype=jnp.float32)
    jax.block_until_ready(y_f32)
    assert y_f32.shape == (c_out, N)
    assert jnp.allclose(y_f32, ref_cf, atol=1e-3, rtol=1e-3)

    # 2) Default perf path: bf16 matmul operands after the f32 first layer,
    #    f32 accumulation and f32 activations.
    y_bf16 = siren_stack(x_cf, layers, w0=30)
    jax.block_until_ready(y_bf16)
    assert float(jnp.max(jnp.abs(y_bf16 - ref_cf))) < 7e-2

    # 3) Non-divisible N with several grid steps: exercises the masked partial
    #    edge block (no jnp.pad HBM round-trip).
    N2 = 300
    x2_nc = 0.5 * jax.random.normal(k_p3, (N2, c_in), jnp.float32)
    ref2 = x2_nc
    for (w, b, is_last) in layers:
        ref2 = siren_layer_ref(ref2, w, b, w0=30, is_last=is_last)
    y2 = siren_stack(x2_nc.T, layers, w0=30, matmul_dtype=jnp.float32,
                     tile_n=128)
    jax.block_until_ready(y2)
    assert y2.shape == (c_out, N2)
    assert jnp.allclose(y2, ref2.T, atol=1e-3, rtol=1e-3)

    # 4) Channels-last convenience wrapper (PyTorch-shaped I/O).
    y_nc = siren_stack_channels_last(x_nc, layers, w0=30,
                                     matmul_dtype=jnp.float32)
    jax.block_until_ready(y_nc)
    assert y_nc.shape == (N, c_out)
    assert jnp.allclose(y_nc, ref, atol=1e-3, rtol=1e-3)

    print("KERNEL_OK")
</pallas_src>

<mosaic_0001>
module attributes {stable_mosaic.version = 11 : i64} {
  func.func @_siren_stack_kernel(%arg0: i32, %arg1: memref<32x256xf32, #tpu.memory_space<vmem>>, %arg2: memref<64x32xf32, #tpu.memory_space<vmem>>, %arg3: memref<64x1xf32, #tpu.memory_space<vmem>>, %arg4: memref<64x64xf32, #tpu.memory_space<vmem>>, %arg5: memref<64x1xf32, #tpu.memory_space<vmem>>, %arg6: memref<32x64xf32, #tpu.memory_space<vmem>>, %arg7: memref<32x1xf32, #tpu.memory_space<vmem>>, %arg8: memref<32x256xf32, #tpu.memory_space<vmem>>) attributes {dimension_semantics = [#tpu.dimension_semantics<parallel>], iteration_bounds = array<i64: 1>, scalar_prefetch = 0 : i64, scratch_operands = 0 : i64, tpu.core_type = #tpu.core_type<tc>, window_params = [{transform_indices = @transform_0, window_bounds = array<i64: 32, 256>}, {pipeline_mode = #tpu.pipeline_mode<synchronous>, transform_indices = @transform_1, window_bounds = array<i64: 64, 32>}, {pipeline_mode = #tpu.pipeline_mode<synchronous>, transform_indices = @transform_2, window_bounds = array<i64: 64, 1>}, {pipeline_mode = #tpu.pipeline_mode<synchronous>, transform_indices = @transform_3, window_bounds = array<i64: 64, 64>}, {pipeline_mode = #tpu.pipeline_mode<synchronous>, transform_indices = @transform_4, window_bounds = array<i64: 64, 1>}, {pipeline_mode = #tpu.pipeline_mode<synchronous>, transform_indices = @transform_5, window_bounds = array<i64: 32, 64>}, {pipeline_mode = #tpu.pipeline_mode<synchronous>, transform_indices = @transform_6, window_bounds = array<i64: 32, 1>}, {transform_indices = @transform_7, window_bounds = array<i64: 32, 256>}]} {
    %c0 = arith.constant 0 : index
    %c0_0 = arith.constant 0 : index
    %0 = vector.load %arg1[%c0, %c0_0] : memref<32x256xf32, #tpu.memory_space<vmem>>, vector<32x256xf32>
    %c0_1 = arith.constant 0 : index
    %c0_2 = arith.constant 0 : index
    %1 = vector.load %arg2[%c0_1, %c0_2] : memref<64x32xf32, #tpu.memory_space<vmem>>, vector<64x32xf32>
    %cst = arith.constant dense<0.000000e+00> : vector<64x256xf32>
    %2 = tpu.matmul %1, %0, %cst {dimension_numbers = #tpu.dot_dimension_numbers<[1], [0], [0], [1], [0, 0, 1, 1], [], []>} : vector<64x32xf32>, vector<32x256xf32>, vector<64x256xf32> -> vector<64x256xf32>
    %c0_3 = arith.constant 0 : index
    %c0_4 = arith.constant 0 : index
    %3 = vector.load %arg3[%c0_3, %c0_4] : memref<64x1xf32, #tpu.memory_space<vmem>>, vector<64x1xf32>
    %4 = vector.broadcast %3 : vector<64x1xf32> to vector<64x256xf32>
    %5 = arith.addf %2, %4 : vector<64x256xf32>
    %6 = math.sin %5 : vector<64x256xf32>
    %c0_5 = arith.constant 0 : index
    %c0_6 = arith.constant 0 : index
    %7 = vector.load %arg4[%c0_5, %c0_6] : memref<64x64xf32, #tpu.memory_space<vmem>>, vector<64x64xf32>
    %cst_7 = arith.constant dense<0.000000e+00> : vector<64x256xf32>
    %8 = tpu.matmul %7, %6, %cst_7 {dimension_numbers = #tpu.dot_dimension_numbers<[1], [0], [0], [1], [0, 0, 1, 1], [], []>} : vector<64x64xf32>, vector<64x256xf32>, vector<64x256xf32> -> vector<64x256xf32>
    %c0_8 = arith.constant 0 : index
    %c0_9 = arith.constant 0 : index
    %9 = vector.load %arg5[%c0_8, %c0_9] : memref<64x1xf32, #tpu.memory_space<vmem>>, vector<64x1xf32>
    %10 = vector.broadcast %9 : vector<64x1xf32> to vector<64x256xf32>
    %11 = arith.addf %8, %10 : vector<64x256xf32>
    %12 = math.sin %11 : vector<64x256xf32>
    %c0_10 = arith.constant 0 : index
    %c0_11 = arith.constant 0 : index
    %13 = vector.load %arg6[%c0_10, %c0_11] : memref<32x64xf32, #tpu.memory_space<vmem>>, vector<32x64xf32>
    %cst_12 = arith.constant dense<0.000000e+00> : vector<32x256xf32>
    %14 = tpu.matmul %13, %12, %cst_12 {dimension_numbers = #tpu.dot_dimension_numbers<[1], [0], [0], [1], [0, 0, 1, 1], [], []>} : vector<32x64xf32>, vector<64x256xf32>, vector<32x256xf32> -> vector<32x256xf32>
    %c0_13 = arith.constant 0 : index
    %c0_14 = arith.constant 0 : index
    %15 = vector.load %arg7[%c0_13, %c0_14] : memref<32x1xf32, #tpu.memory_space<vmem>>, vector<32x1xf32>
    %16 = vector.broadcast %15 : vector<32x1xf32> to vector<32x256xf32>
    %17 = arith.addf %14, %16 : vector<32x256xf32>
    %cst_15 = arith.constant 5.000000e-01 : f32
    %18 = vector.broadcast %cst_15 : f32 to vector<32x256xf32>
    %19 = arith.mulf %18, %17 : vector<32x256xf32>
    %20 = math.tanh %19 : vector<32x256xf32>
    %cst_16 = arith.constant 5.000000e-01 : f32
    %21 = vector.broadcast %cst_16 : f32 to vector<32x256xf32>
    %22 = arith.mulf %21, %20 : vector<32x256xf32>
    %cst_17 = arith.constant 5.000000e-01 : f32
    %23 = vector.broadcast %cst_17 : f32 to vector<32x256xf32>
    %24 = arith.addf %22, %23 : vector<32x256xf32>
    %c0_18 = arith.constant 0 : index
    %c0_19 = arith.constant 0 : index
    %25 = vector.load %arg8[%c0_18, %c0_19] : memref<32x256xf32, #tpu.memory_space<vmem>>, vector<32x256xf32>
    tpu.vector_store %arg8[%c0_18, %c0_19], %24 {strides = array<i32>} : memref<32x256xf32, #tpu.memory_space<vmem>>, vector<32x256xf32>,
    return
  }
  func.func @transform_0(%arg0: i32) -> (i32, i32) {
    %c0_i32 = arith.constant 0 : i32
    %c0_i32_0 = arith.constant 0 : i32
    return %c0_i32, %arg0 : i32, i32
  }
  func.func @transform_1(%arg0: i32) -> (i32, i32) {
    %c0_i32 = arith.constant 0 : i32
    %c0_i32_0 = arith.constant 0 : i32
    %c0_i32_1 = arith.constant 0 : i32
    return %c0_i32, %c0_i32_0 : i32, i32
  }
  func.func @transform_2(%arg0: i32) -> (i32, i32) {
    %c0_i32 = arith.constant 0 : i32
    %c0_i32_0 = arith.constant 0 : i32
    %c0_i32_1 = arith.constant 0 : i32
    return %c0_i32, %c0_i32_0 : i32, i32
  }
  func.func @transform_3(%arg0: i32) -> (i32, i32) {
    %c0_i32 = arith.constant 0 : i32
    %c0_i32_0 = arith.constant 0 : i32
    %c0_i32_1 = arith.constant 0 : i32
    return %c0_i32, %c0_i32_0 : i32, i32
  }
  func.func @transform_4(%arg0: i32) -> (i32, i32) {
    %c0_i32 = arith.constant 0 : i32
    %c0_i32_0 = arith.constant 0 : i32
    %c0_i32_1 = arith.constant 0 : i32
    return %c0_i32, %c0_i32_0 : i32, i32
  }
  func.func @transform_5(%arg0: i32) -> (i32, i32) {
    %c0_i32 = arith.constant 0 : i32
    %c0_i32_0 = arith.constant 0 : i32
    %c0_i32_1 = arith.constant 0 : i32
    return %c0_i32, %c0_i32_0 : i32, i32
  }
  func.func @transform_6(%arg0: i32) -> (i32, i32) {
    %c0_i32 = arith.constant 0 : i32
    %c0_i32_0 = arith.constant 0 : i32
    %c0_i32_1 = arith.constant 0 : i32
    return %c0_i32, %c0_i32_0 : i32, i32
  }
  func.func @transform_7(%arg0: i32) -> (i32, i32) {
    %c0_i32 = arith.constant 0 : i32
    %c0_i32_0 = arith.constant 0 : i32
    return %c0_i32, %arg0 : i32, i32
  }
}

</mosaic_0001>

<llo_original>
// kernel: tpu_custom_call.1
$region0: #{tpu_custom_call.1}
  #allocation0 [shape = 'u32[]', space=smem, size = 0x4, offset = 0x4, fixed_abs, tag = 'smem constant byte address 0x4 - core index']
  #allocation1 [shape = 'u32[144,128]{1,0:T(1,128)}', space=vmem, size = 0x12000, scoped, tag = 'internal scratch']
  %s0 = inlined_call_operand.vmem [shape: f32[32,256], index: 0, kind: input, shape index: {}]
  %s1 = inlined_call_operand.vmem [shape: f32[64,32], index: 1, kind: input, shape index: {}]
  %s2 = inlined_call_operand.vmem [shape: f32[64,1], index: 2, kind: input, shape index: {}]
  %s3 = inlined_call_operand.vmem [shape: f32[64,64], index: 3, kind: input, shape index: {}]
  %s4 = inlined_call_operand.vmem [shape: f32[64,1], index: 4, kind: input, shape index: {}]
  %s5 = inlined_call_operand.vmem [shape: f32[32,64], index: 5, kind: input, shape index: {}]
  %s6 = inlined_call_operand.vmem [shape: f32[32,1], index: 6, kind: input, shape index: {}]
  %s7 = inlined_call_operand.hbm [shape: f32[32,256], index: 7, kind: output, shape index: {}]
  %s8 = sld [smem:[#allocation0]]
  $region38: #{tpu_custom_call.1} parent=0
    _
  %s10 = ssub.s32 1, %s8
  %s11 = scalar_select 0, %s10, %s8
  $region1: #{tpu_custom_call.1} parent=0
    #allocation2 [shape = 'u8[32768]{0}', space=vmem, size = 0x8000, scoped, tag = 'output window, operand 0, single buffered']
    #allocation3 [shape = 's32[1]{0}', space=sflag, size = 0x4, scoped, tag = 'scoped memory for tpu_custom_call.1']
    %12 = vsyncpa [#allocation3], 0
    // Predicated region
    $region2: #{tpu_custom_call.1} parent=1 // pred_check
      _
    $region3: #{tpu_custom_call.1} parent=1 // pred_check_branch
      %14 = sbr.rel (0) target = $region5
    $region4: #{tpu_custom_call.1} parent=1 // pred_region
      _
    $region5: #{tpu_custom_call.1} parent=1 // pred_fallthru
      _
    // Predicated region
    $region6: #{tpu_custom_call.1} parent=1 // pred_check
      _
    $region7: #{tpu_custom_call.1} parent=1 // pred_check_branch
      %16 = sbr.rel (0) target = $region9
    $region8: #{tpu_custom_call.1} parent=1 // pred_region
      _
    $region9: #{tpu_custom_call.1} parent=1 // pred_fallthru
      _
    // Predicated region
    $region10: #{tpu_custom_call.1} parent=1 // pred_check
      _
    $region11: #{tpu_custom_call.1} parent=1 // pred_check_branch
      %18 = sbr.rel (0) target = $region13
    $region12: #{tpu_custom_call.1} parent=1 // pred_region
      _
    $region13: #{tpu_custom_call.1} parent=1 // pred_fallthru
      _
    // Predicated region
    $region14: #{tpu_custom_call.1} parent=1 // pred_check
      _
    $region15: #{tpu_custom_call.1} parent=1 // pred_check_branch
      %20 = sbr.rel (0) target = $region17
    $region16: #{tpu_custom_call.1} parent=1 // pred_region
      _
    $region17: #{tpu_custom_call.1} parent=1 // pred_fallthru
      _
    // Predicated region
    $region18: #{tpu_custom_call.1} parent=1 // pred_check
      _
    $region19: #{tpu_custom_call.1} parent=1 // pred_check_branch
      %22 = sbr.rel (0) target = $region21
    $region20: #{tpu_custom_call.1} parent=1 // pred_region
      _
    $region21: #{tpu_custom_call.1} parent=1 // pred_fallthru
      _
    // Predicated region
    $region22: #{tpu_custom_call.1} parent=1 // pred_check
      _
    $region23: #{tpu_custom_call.1} parent=1 // pred_check_branch
      %24 = sbr.rel (0) target = $region25
    $region24: #{tpu_custom_call.1} parent=1 // pred_region
      _
    $region25: #{tpu_custom_call.1} parent=1 // pred_fallthru
      _
    // Predicated region
    $region26: #{tpu_custom_call.1} parent=1 // pred_check
      _
    $region27: #{tpu_custom_call.1} parent=1 // pred_check_branch
      %26 = sbr.rel (0) target = $region29
    $region28: #{tpu_custom_call.1} parent=1 // pred_region
      _
    $region29: #{tpu_custom_call.1} parent=1 // pred_fallthru
      _
    %v27 = vld [vmem:[%s0] sm:$0xff]
    %v28 = vld [vmem:[%s0 + $0x8] sm:$0xff]
    %v29 = vld [vmem:[%s0 + $0x10] sm:$0xff]
    %v30 = vld [vmem:[%s0 + $0x18] sm:$0xff]
    %v31 = vld [vmem:[%s0 + $0x20] sm:$0xff]
    %v32 = vld [vmem:[%s0 + $0x28] sm:$0xff]
    %v33 = vld [vmem:[%s0 + $0x30] sm:$0xff]
    %v34 = vld [vmem:[%s0 + $0x38] sm:$0xff]
    %v35 = vld [vmem:[%s1] sm:$0xff]
    %v36 = vld [vmem:[%s1 + $0x8] sm:$0xff]
    %v37 = vld [vmem:[%s1 + $0x10] sm:$0xff]
    %v38 = vld [vmem:[%s1 + $0x18] sm:$0xff]
    %v39 = vld [vmem:[%s1 + $0x20] sm:$0xff]
    %v40 = vld [vmem:[%s1 + $0x28] sm:$0xff]
    %v41 = vld [vmem:[%s1 + $0x30] sm:$0xff]
    %v42 = vld [vmem:[%s1 + $0x38] sm:$0xff]
    %v43 = vld [vmem:[%s2] sm:$0xff]
    %v44 = vld [vmem:[%s2 + $0x8] sm:$0xff]
    %v45 = vld [vmem:[%s2 + $0x10] sm:$0xff]
    %v46 = vld [vmem:[%s2 + $0x18] sm:$0xff]
    %v47 = vld [vmem:[%s2 + $0x20] sm:$0xff]
    %v48 = vld [vmem:[%s2 + $0x28] sm:$0xff]
    %v49 = vld [vmem:[%s2 + $0x30] sm:$0xff]
    %v50 = vld [vmem:[%s2 + $0x38] sm:$0xff]
    %52 = vset.pattern.permute.xlu0 0
    %53 = vperm.xlu0 %52, %v43
    %v54 = vpop.permute.xlu0 %53
    %57 = vset.pattern.permute.xlu0 0
    %58 = vperm.xlu0 %57, %v44
    %v59 = vpop.permute.xlu0 %58
    %62 = vset.pattern.permute.xlu0 0
    %63 = vperm.xlu0 %62, %v45
    %v64 = vpop.permute.xlu0 %63
    %67 = vset.pattern.permute.xlu0 0
    %68 = vperm.xlu0 %67, %v46
    %v69 = vpop.permute.xlu0 %68
    %72 = vset.pattern.permute.xlu0 0
    %73 = vperm.xlu0 %72, %v47
    %v74 = vpop.permute.xlu0 %73
    %77 = vset.pattern.permute.xlu0 0
    %78 = vperm.xlu0 %77, %v48
    %v79 = vpop.permute.xlu0 %78
    %82 = vset.pattern.permute.xlu0 0
    %83 = vperm.xlu0 %82, %v49
    %v84 = vpop.permute.xlu0 %83
    %87 = vset.pattern.permute.xlu0 0
    %88 = vperm.xlu0 %87, %v50
    %v89 = vpop.permute.xlu0 %88
    %vm91 = vcmask 261120
    %v93 = vsel %vm91, %v35, 0
    %v96 = vsel %vm91, %v36, 0
    %v99 = vsel %vm91, %v37, 0
    %v102 = vsel %vm91, %v38, 0
    %v105 = vsel %vm91, %v39, 0
    %v108 = vsel %vm91, %v40, 0
    %v111 = vsel %vm91, %v41, 0
    %v114 = vsel %vm91, %v42, 0
    %116 = vmatprep.subr.mxu0 %v28
    %117 = vmatpush1.msra.mxu0 %v27
    %118 = vmatprep.subr.mxu0 %v30
    %119 = vmatpush1.msra.mxu0 %v29
    %120 = vmatprep.subr.mxu0 %v32
    %121 = vmatpush1.msra.mxu0 %v31
    %122 = vmatprep.subr.mxu0 %v34
    %123 = vmatpush1.msra.mxu0 %v33
    %124 = vmatprep.subr.mxu0 0.0
    %125 = vmatpush1.msra.mxu0 0.0
    %126 = vmatprep.subr.mxu0 0.0
    %127 = vmatpush1.msra.mxu0 0.0
    %128 = vmatprep.subr.mxu0 0.0
    %129 = vmatpush1.msra.mxu0 0.0
    %130 = vmatprep.subr.mxu0 0.0
    %131 = vmatpush1.msra.mxu0 0.0
    %132 = vmatprep.subr.mxu0 0.0
    %133 = vmatpush1.msra.mxu0 0.0
    %134 = vmatprep.subr.mxu0 0.0
    %135 = vmatpush1.msra.mxu0 0.0
    %136 = vmatprep.subr.mxu0 0.0
    %137 = vmatpush1.msra.mxu0 0.0
    %138 = vmatprep.subr.mxu0 0.0
    %139 = vmatpush1.msra.mxu0 0.0
    %140 = vmatprep.subr.mxu0 0.0
    %141 = vmatpush1.msra.mxu0 0.0
    %142 = vmatprep.subr.mxu0 0.0
    %143 = vmatpush1.msra.mxu0 0.0
    %144 = vmatprep.subr.mxu0 0.0
    %145 = vmatpush1.msra.mxu0 0.0
    %146 = vmatprep.subr.mxu0 0.0
    %147 = vmatpush1.msra.mxu0 0.0
    %148 = vmatprep.subr.mxu0 0.0
    %149 = vmatpush1.msra.mxu0 0.0
    %150 = vmatprep.subr.mxu0 0.0
    %151 = vmatpush1.msra.mxu0 0.0
    %152 = vmatprep.subr.mxu0 0.0
    %153 = vmatpush1.msra.mxu0 0.0
    %154 = vmatprep.subr.mxu0 0.0
    %155 = vmatpush1.msra.mxu0 0.0
    %156 = vmatprep.subr.mxu0 0.0
    %157 = vmatpush1.msra.mxu0 0.0
    %158 = vmatprep.subr.mxu0 0.0
    %159 = vmatpush1.msra.mxu0 0.0
    %160 = vmatprep.subr.mxu0 0.0
    %161 = vmatpush1.msra.mxu0 0.0
    %162 = vmatprep.subr.mxu0 0.0
    %163 = vmatpush1.msra.mxu0 0.0
    %164 = vmatprep.subr.mxu0 0.0
    %165 = vmatpush1.msra.mxu0 0.0
    %166 = vmatprep.subr.mxu0 0.0
    %167 = vmatpush1.msra.mxu0 0.0
    %168 = vmatprep.subr.mxu0 0.0
    %169 = vmatpush1.msra.mxu0 0.0
    %170 = vmatprep.subr.mxu0 0.0
    %171 = vmatpush1.msra.mxu0 0.0
    %172 = vmatprep.subr.mxu0 0.0
    %173 = vmatpush1.msra.mxu0 0.0
    %174 = vmatprep.subr.mxu0 0.0
    %175 = vmatpush1.msra.mxu0 0.0
    %176 = vmatprep.subr.mxu0 0.0
    %177 = vmatpush1.msra.mxu0 0.0
    %178 = vmatprep.subr.mxu0 0.0
    %179 = vmatpush1.msra.mxu0 0.0
    %180 = vmatprep.mubr.f32.mxu0 0.0
    %181 = vmatmul.mubr.f32.gmra.mrb[0].mxu0 %v93
    %v182 = vpop.f32.mrb[0].mxu0
    %v183 = vadd.f32 %v54, %v182
    %v184 = vpop.f32.mrb[0].mxu0
    %v185 = vadd.f32 %v54, %v184
    %186 = vmatprep.mubr.f32.mxu0 0.0
    %187 = vmatmul.mubr.f32.gmra.mrb[0].mxu0 %v96
    %v188 = vpop.f32.mrb[0].mxu0
    %v189 = vadd.f32 %v59, %v188
    %v190 = vpop.f32.mrb[0].mxu0
    %v191 = vadd.f32 %v59, %v190
    %192 = vmatprep.mubr.f32.mxu0 0.0
    %193 = vmatmul.mubr.f32.gmra.mrb[0].mxu0 %v99
    %v194 = vpop.f32.mrb[0].mxu0
    %v195 = vadd.f32 %v64, %v194
    %v196 = vpop.f32.mrb[0].mxu0
    %v197 = vadd.f32 %v64, %v196
    %198 = vmatprep.mubr.f32.mxu0 0.0
    %199 = vmatmul.mubr.f32.gmra.mrb[0].mxu0 %v102
    %v200 = vpop.f32.mrb[0].mxu0
    %v201 = vadd.f32 %v69, %v200
    %v202 = vpop.f32.mrb[0].mxu0
    %v203 = vadd.f32 %v69, %v202
    %204 = vmatprep.mubr.f32.mxu0 0.0
    %205 = vmatmul.mubr.f32.gmra.mrb[0].mxu0 %v105
    %v206 = vpop.f32.mrb[0].mxu0
    %v207 = vadd.f32 %v74, %v206
    %v208 = vpop.f32.mrb[0].mxu0
    %v209 = vadd.f32 %v74, %v208
    %210 = vmatprep.mubr.f32.mxu0 0.0
    %211 = vmatmul.mubr.f32.gmra.mrb[0].mxu0 %v108
    %v212 = vpop.f32.mrb[0].mxu0
    %v213 = vadd.f32 %v79, %v212
    %v214 = vpop.f32.mrb[0].mxu0
    %v215 = vadd.f32 %v79, %v214
    %216 = vmatprep.mubr.f32.mxu0 0.0
    %217 = vmatmul.mubr.f32.gmra.mrb[0].mxu0 %v111
    %v218 = vpop.f32.mrb[0].mxu0
    %v219 = vadd.f32 %v84, %v218
    %v220 = vpop.f32.mrb[0].mxu0
    %v221 = vadd.f32 %v84, %v220
    %222 = vmatprep.mubr.f32.mxu0 0.0
    %223 = vmatmul.mubr.f32.gmra.mrb[0].mxu0 %v114
    %v224 = vpop.f32.mrb[0].mxu0
    %v225 = vadd.f32 %v89, %v224
    %v226 = vpop.f32.mrb[0].mxu0
    %v227 = vadd.f32 %v89, %v226
    %228 = vdwg.mxu0
    %v229 = vand.u32 2147483647, %v183
    %vm230 = vcmp.le.f32.partialorder %v229, 0.7853982
    %vm231 = vcmp.lt.s32.totalorder %v183, 0
    %v232 = vand.u32 %v183, 2139095040
    %v233 = vshrl.u32 %v232, 23
    %v234 = vsub.s32 %v233, 127
    %v235 = vand.u32 2147483647, %v183
    %v236 = vand.u32 %v235, 8388607
    %v237 = vor.u32 %v236, 8388608
    %v238 = vsub.s32 0, %v237
    %v239 = vadd.s32 %v234, 1
    %vm240 = vcmp.gt.s32.totalorder %v239, 0
    %v241 = vsel %vm240, %v239, 0
    %v242 = vshrl.u32 %v241, 5
    %v243 = vand.u32 %v241, 31
    %v244 = vsub.s32 32, %v243
    %v245 = vshrl.u32 683565275, %v244
    %v246 = vshll.u32 683565275, %v243
    %v247 = vshrl.u32 2475754826, %v244
    %v248 = vor.u32 %v246, %v247
    %v249 = vshll.u32 2475754826, %v243
    %v250 = vshrl.u32 2131351028, %v244
    %v251 = vor.u32 %v249, %v250
    %v252 = vshll.u32 2131351028, %v243
    %v253 = vshrl.u32 2102212464, %v244
    %v254 = vor.u32 %v252, %v253
    %v255 = vshll.u32 2102212464, %v243
    %v256 = vshrl.u32 920167782, %v244
    %v257 = vor.u32 %v255, %v256
    %v258 = vshll.u32 920167782, %v243
    %v259 = vshrl.u32 1326507024, %v244
    %v260 = vor.u32 %v258, %v259
    %vm261 = vcmp.lt.s32.totalorder %v242, 1
    %vm262 = vcmp.lt.s32.totalorder %v242, 2
    %vm263 = vcmp.lt.s32.totalorder %v242, 3
    %vm264 = vcmp.lt.s32.totalorder %v242, 4
    %v265 = vsel %vm261, %v245, %v248
    %v266 = vsel %vm264, %v254, 2102212464
    %v267 = vsel %vm263, %v251, %v266
    %v268 = vsel %vm262, %v265, %v267
    %v269 = vsel %vm261, %v248, %v251
    %v270 = vsel %vm264, %v257, 920167782
    %v271 = vsel %vm263, %v254, %v270
    %v272 = vsel %vm262, %v269, %v271
    %v273 = vsel %vm261, %v251, %v254
    %v274 = vsel %vm264, %v260, 1326507024
    %v275 = vsel %vm263, %v257, %v274
    %v276 = vsel %vm262, %v273, %v275
    %v277 = vshll.u32 %v237, 8
    %v278 = vmul.u32.u64.compose %v277, %v276
    %v279 = vextract.low.u32 %v278
    %v280 = vextract.high.u32 %v278
    %v281 = vmul.u32.u64.compose %v277, %v272
    %v282 = vextract.low.u32 %v281
    %v283 = vextract.high.u32 %v281
    %v284 = vmul.u32 %v277, %v268
    %v285 = vadd.s32 %v280, %v282
    %vm286 = vc.u32 %v280, %v282
    %v287 = vadd.s32 %v283, 1
    %v288 = vsel %vm286, %v287, %v283
    %v289 = vadd.s32 %v284, %v288
    %v290 = vadd.s32 %v289, 536870912
    %v291 = vshrl.u32 %v290, 30
    %v292 = vshll.u32 %v291, 30
    %v293 = vsub.s32 %v289, %v292
    %vm294 = vcmp.lt.s32.totalorder %v293, 0
    %v295 = vsub.s32 0, %v293
    %v296 = vsel %vm294, %v295, %v293
    %v297 = vclz %v296
    %v298 = vsub.s32 %v297, 2
    %vm299 = vcmp.gt.s32.totalorder 0, %v298
    %v300 = vsel %vm299, 0, %v298
    %v301 = vsub.s32 32, %v300
    %v302 = vshll.u32 %v293, %v300
    %v303 = vshrl.u32 %v285, %v301
    %v304 = vor.u32 %v302, %v303
    %v305 = vsub.s32 4294967266, %v300
    %v306 = vadd.s32 %v305, 127
    %v307 = vshll.u32 %v306, 23
    %v308 = vor.u32 4788187, %v307
    %v309 = vand.u32 2147483647, %v308
    %v311 = vcvt.s32.f32 %v304
    %v312 = vmul.f32 %v311, %v309
    %v313 = vxor.u32 %v312, 2147483648
    %v314 = vsel %vm231, %v313, %v312
    %v315 = vsub.s32 4, %v291
    %v316 = vsel %vm231, %v315, %v291
    %v317 = vsel %vm230, %v183, %v314
    %v318 = vsel %vm230, 0, %v316
    %v319 = vcosq.f32.pop %v317
    %v320 = vsinq.f32.pop %v317
    %vm321 = vweird.f32 %v183
    %v322 = vadd.s32 %v318, 3
    %v323 = vand.u32 %v322, 3
    %vm324 = vcmp.lt.s32.totalorder %v323, 2
    %vm325 = vcmp.eq.s32.totalorder %v323, 0
    %v326 = vxor.u32 %v320, 2147483648
    %v327 = vsel %vm325, %v319, %v326
    %vm328 = vcmp.eq.s32.totalorder %v323, 2
    %v329 = vxor.u32 %v319, 2147483648
    %v330 = vsel %vm328, %v329, %v320
    %v331 = vsel %vm324, %v327, %v330
    %v332 = vsel %vm321, nan, %v331
    %v333 = vand.u32 2147483647, %v185
    %vm334 = vcmp.le.f32.partialorder %v333, 0.7853982
    %vm335 = vcmp.lt.s32.totalorder %v185, 0
    %v336 = vand.u32 %v185, 2139095040
    %v337 = vshrl.u32 %v336, 23
    %v338 = vsub.s32 %v337, 127
    %v339 = vand.u32 2147483647, %v185
    %v340 = vand.u32 %v339, 8388607
    %v341 = vor.u32 %v340, 8388608
    %v342 = vsub.s32 0, %v341
    %v343 = vadd.s32 %v338, 1
    %vm344 = vcmp.gt.s32.totalorder %v343, 0
    %v345 = vsel %vm344, %v343, 0
    %v346 = vshrl.u32 %v345, 5
    %v347 = vand.u32 %v345, 31
    %v348 = vsub.s32 32, %v347
    %v349 = vshrl.u32 683565275, %v348
    %v350 = vshll.u32 683565275, %v347
    %v351 = vshrl.u32 2475754826, %v348
    %v352 = vor.u32 %v350, %v351
    %v353 = vshll.u32 2475754826, %v347
    %v354 = vshrl.u32 2131351028, %v348
    %v355 = vor.u32 %v353, %v354
    %v356 = vshll.u32 2131351028, %v347
    %v357 = vshrl.u32 2102212464, %v348
    %v358 = vor.u32 %v356, %v357
    %v359 = vshll.u32 2102212464, %v347
    %v360 = vshrl.u32 920167782, %v348
    %v361 = vor.u32 %v359, %v360
    %v362 = vshll.u32 920167782, %v347
    %v363 = vshrl.u32 1326507024, %v348
    %v364 = vor.u32 %v362, %v363
    %vm365 = vcmp.lt.s32.totalorder %v346, 1
    %vm366 = vcmp.lt.s32.totalorder %v346, 2
    %vm367 = vcmp.lt.s32.totalorder %v346, 3
    %vm368 = vcmp.lt.s32.totalorder %v346, 4
    %v369 = vsel %vm365, %v349, %v352
    %v370 = vsel %vm368, %v358, 2102212464
    %v371 = vsel %vm367, %v355, %v370
    %v372 = vsel %vm366, %v369, %v371
    %v373 = vsel %vm365, %v352, %v355
    %v374 = vsel %vm368, %v361, 920167782
    %v375 = vsel %vm367, %v358, %v374
    %v376 = vsel %vm366, %v373, %v375
    %v377 = vsel %vm365, %v355, %v358
    %v378 = vsel %vm368, %v364, 1326507024
    %v379 = vsel %vm367, %v361, %v378
    %v380 = vsel %vm366, %v377, %v379
    %v381 = vshll.u32 %v341, 8
    %v382 = vmul.u32.u64.compose %v381, %v380
    %v383 = vextract.low.u32 %v382
    %v384 = vextract.high.u32 %v382
    %v385 = vmul.u32.u64.compose %v381, %v376
    %v386 = vextract.low.u32 %v385
    %v387 = vextract.high.u32 %v385
    %v388 = vmul.u32 %v381, %v372
    %v389 = vadd.s32 %v384, %v386
    %vm390 = vc.u32 %v384, %v386
    %v391 = vadd.s32 %v387, 1
    %v392 = vsel %vm390, %v391, %v387
    %v393 = vadd.s32 %v388, %v392
    %v394 = vadd.s32 %v393, 536870912
    %v395 = vshrl.u32 %v394, 30
    %v396 = vshll.u32 %v395, 30
    %v397 = vsub.s32 %v393, %v396
    %vm398 = vcmp.lt.s32.totalorder %v397, 0
    %v399 = vsub.s32 0, %v397
    %v400 = vsel %vm398, %v399, %v397
    %v401 = vclz %v400
    %v402 = vsub.s32 %v401, 2
    %vm403 = vcmp.gt.s32.totalorder 0, %v402
    %v404 = vsel %vm403, 0, %v402
    %v405 = vsub.s32 32, %v404
    %v406 = vshll.u32 %v397, %v404
    %v407 = vshrl.u32 %v389, %v405
    %v408 = vor.u32 %v406, %v407
    %v409 = vsub.s32 4294967266, %v404
    %v410 = vadd.s32 %v409, 127
    %v411 = vshll.u32 %v410, 23
    %v412 = vor.u32 4788187, %v411
    %v413 = vand.u32 2147483647, %v412
    %v415 = vcvt.s32.f32 %v408
    %v416 = vmul.f32 %v415, %v413
    %v417 = vxor.u32 %v416, 2147483648
    %v418 = vsel %vm335, %v417, %v416
    %v419 = vsub.s32 4, %v395
    %v420 = vsel %vm335, %v419, %v395
    %v421 = vsel %vm334, %v185, %v418
    %v422 = vsel %vm334, 0, %v420
    %v423 = vcosq.f32.pop %v421
    %v424 = vsinq.f32.pop %v421
    %vm425 = vweird.f32 %v185
    %v426 = vadd.s32 %v422, 3
    %v427 = vand.u32 %v426, 3
    %vm428 = vcmp.lt.s32.totalorder %v427, 2
    %vm429 = vcmp.eq.s32.totalorder %v427, 0
    %v430 = vxor.u32 %v424, 2147483648
    %v431 = vsel %vm429, %v423, %v430
    %vm432 = vcmp.eq.s32.totalorder %v427, 2
    %v433 = vxor.u32 %v423, 2147483648
    %v434 = vsel %vm432, %v433, %v424
    %v435 = vsel %vm428, %v431, %v434
    %v436 = vsel %vm425, nan, %v435
    %v437 = vand.u32 2147483647, %v189
    %vm438 = vcmp.le.f32.partialorder %v437, 0.7853982
    %vm439 = vcmp.lt.s32.totalorder %v189, 0
    %v440 = vand.u32 %v189, 2139095040
    %v441 = vshrl.u32 %v440, 23
    %v442 = vsub.s32 %v441, 127
    %v443 = vand.u32 2147483647, %v189
    %v444 = vand.u32 %v443, 8388607
    %v445 = vor.u32 %v444, 8388608
    %v446 = vsub.s32 0, %v445
    %v447 = vadd.s32 %v442, 1
    %vm448 = vcmp.gt.s32.totalorder %v447, 0
    %v449 = vsel %vm448, %v447, 0
    %v450 = vshrl.u32 %v449, 5
    %v451 = vand.u32 %v449, 31
    %v452 = vsub.s32 32, %v451
    %v453 = vshrl.u32 683565275, %v452
    %v454 = vshll.u32 683565275, %v451
    %v455 = vshrl.u32 2475754826, %v452
    %v456 = vor.u32 %v454, %v455
    %v457 = vshll.u32 2475754826, %v451
    %v458 = vshrl.u32 2131351028, %v452
    %v459 = vor.u32 %v457, %v458
    %v460 = vshll.u32 2131351028, %v451
    %v461 = vshrl.u32 2102212464, %v452
    %v462 = vor.u32 %v460, %v461
    %v463 = vshll.u32 2102212464, %v451
    %v464 = vshrl.u32 920167782, %v452
    %v465 = vor.u32 %v463, %v464
    %v466 = vshll.u32 920167782, %v451
    %v467 = vshrl.u32 1326507024, %v452
    %v468 = vor.u32 %v466, %v467
    %vm469 = vcmp.lt.s32.totalorder %v450, 1
    %vm470 = vcmp.lt.s32.totalorder %v450, 2
    %vm471 = vcmp.lt.s32.totalorder %v450, 3
    %vm472 = vcmp.lt.s32.totalorder %v450, 4
    %v473 = vsel %vm469, %v453, %v456
    %v474 = vsel %vm472, %v462, 2102212464
    %v475 = vsel %vm471, %v459, %v474
    %v476 = vsel %vm470, %v473, %v475
    %v477 = vsel %vm469, %v456, %v459
    %v478 = vsel %vm472, %v465, 920167782
    %v479 = vsel %vm471, %v462, %v478
    %v480 = vsel %vm470, %v477, %v479
    %v481 = vsel %vm469, %v459, %v462
    %v482 = vsel %vm472, %v468, 1326507024
    %v483 = vsel %vm471, %v465, %v482
    %v484 = vsel %vm470, %v481, %v483
    %v485 = vshll.u32 %v445, 8
    %v486 = vmul.u32.u64.compose %v485, %v484
    %v487 = vextract.low.u32 %v486
    %v488 = vextract.high.u32 %v486
    %v489 = vmul.u32.u64.compose %v485, %v480
    %v490 = vextract.low.u32 %v489
    %v491 = vextract.high.u32 %v489
    %v492 = vmul.u32 %v485, %v476
    %v493 = vadd.s32 %v488, %v490
    %vm494 = vc.u32 %v488, %v490
    %v495 = vadd.s32 %v491, 1
    %v496 = vsel %vm494, %v495, %v491
    %v497 = vadd.s32 %v492, %v496
    %v498 = vadd.s32 %v497, 536870912
    %v499 = vshrl.u32 %v498, 30
    %v500 = vshll.u32 %v499, 30
    %v501 = vsub.s32 %v497, %v500
    %vm502 = vcmp.lt.s32.totalorder %v501, 0
    %v503 = vsub.s32 0, %v501
    %v504 = vsel %vm502, %v503, %v501
    %v505 = vclz %v504
    %v506 = vsub.s32 %v505, 2
    %vm507 = vcmp.gt.s32.totalorder 0, %v506
    %v508 = vsel %vm507, 0, %v506
    %v509 = vsub.s32 32, %v508
    %v510 = vshll.u32 %v501, %v508
    %v511 = vshrl.u32 %v493, %v509
    %v512 = vor.u32 %v510, %v511
    %v513 = vsub.s32 4294967266, %v508
    %v514 = vadd.s32 %v513, 127
    %v515 = vshll.u32 %v514, 23
    %v516 = vor.u32 4788187, %v515
    %v517 = vand.u32 2147483647, %v516
    %v519 = vcvt.s32.f32 %v512
    %v520 = vmul.f32 %v519, %v517
    %v521 = vxor.u32 %v520, 2147483648
    %v522 = vsel %vm439, %v521, %v520
    %v523 = vsub.s32 4, %v499
    %v524 = vsel %vm439, %v523, %v499
    %v525 = vsel %vm438, %v189, %v522
    %v526 = vsel %vm438, 0, %v524
    %v527 = vcosq.f32.pop %v525
    %v528 = vsinq.f32.pop %v525
    %vm529 = vweird.f32 %v189
    %v530 = vadd.s32 %v526, 3
    %v531 = vand.u32 %v530, 3
    %vm532 = vcmp.lt.s32.totalorder %v531, 2
    %vm533 = vcmp.eq.s32.totalorder %v531, 0
    %v534 = vxor.u32 %v528, 2147483648
    %v535 = vsel %vm533, %v527, %v534
    %vm536 = vcmp.eq.s32.totalorder %v531, 2
    %v537 = vxor.u32 %v527, 2147483648
    %v538 = vsel %vm536, %v537, %v528
    %v539 = vsel %vm532, %v535, %v538
    %v540 = vsel %vm529, nan, %v539
    %v541 = vand.u32 2147483647, %v191
    %vm542 = vcmp.le.f32.partialorder %v541, 0.7853982
    %vm543 = vcmp.lt.s32.totalorder %v191, 0
    %v544 = vand.u32 %v191, 2139095040
    %v545 = vshrl.u32 %v544, 23
    %v546 = vsub.s32 %v545, 127
    %v547 = vand.u32 2147483647, %v191
    %v548 = vand.u32 %v547, 8388607
    %v549 = vor.u32 %v548, 8388608
    %v550 = vsub.s32 0, %v549
    %v551 = vadd.s32 %v546, 1
    %vm552 = vcmp.gt.s32.totalorder %v551, 0
    %v553 = vsel %vm552, %v551, 0
    %v554 = vshrl.u32 %v553, 5
    %v555 = vand.u32 %v553, 31
    %v556 = vsub.s32 32, %v555
    %v557 = vshrl.u32 683565275, %v556
    %v558 = vshll.u32 683565275, %v555
    %v559 = vshrl.u32 2475754826, %v556
    %v560 = vor.u32 %v558, %v559
    %v561 = vshll.u32 2475754826, %v555
    %v562 = vshrl.u32 2131351028, %v556
    %v563 = vor.u32 %v561, %v562
    %v564 = vshll.u32 2131351028, %v555
    %v565 = vshrl.u32 2102212464, %v556
    %v566 = vor.u32 %v564, %v565
    %v567 = vshll.u32 2102212464, %v555
    %v568 = vshrl.u32 920167782, %v556
    %v569 = vor.u32 %v567, %v568
    %v570 = vshll.u32 920167782, %v555
    %v571 = vshrl.u32 1326507024, %v556
    %v572 = vor.u32 %v570, %v571
    %vm573 = vcmp.lt.s32.totalorder %v554, 1
    %vm574 = vcmp.lt.s32.totalorder %v554, 2
    %vm575 = vcmp.lt.s32.totalorder %v554, 3
    %vm576 = vcmp.lt.s32.totalorder %v554, 4
    %v577 = vsel %vm573, %v557, %v560
    %v578 = vsel %vm576, %v566, 2102212464
    %v579 = vsel %vm575, %v563, %v578
    %v580 = vsel %vm574, %v577, %v579
    %v581 = vsel %vm573, %v560, %v563
    %v582 = vsel %vm576, %v569, 920167782
    %v583 = vsel %vm575, %v566, %v582
    %v584 = vsel %vm574, %v581, %v583
    %v585 = vsel %vm573, %v563, %v566
    %v586 = vsel %vm576, %v572, 1326507024
    %v587 = vsel %vm575, %v569, %v586
    %v588 = vsel %vm574, %v585, %v587
    %v589 = vshll.u32 %v549, 8
    %v590 = vmul.u32.u64.compose %v589, %v588
    %v591 = vextract.low.u32 %v590
    %v592 = vextract.high.u32 %v590
    %v593 = vmul.u32.u64.compose %v589, %v584
    %v594 = vextract.low.u32 %v593
    %v595 = vextract.high.u32 %v593
    %v596 = vmul.u32 %v589, %v580
    %v597 = vadd.s32 %v592, %v594
    %vm598 = vc.u32 %v592, %v594
    %v599 = vadd.s32 %v595, 1
    %v600 = vsel %vm598, %v599, %v595
    %v601 = vadd.s32 %v596, %v600
    %v602 = vadd.s32 %v601, 536870912
    %v603 = vshrl.u32 %v602, 30
    %v604 = vshll.u32 %v603, 30
    %v605 = vsub.s32 %v601, %v604
    %vm606 = vcmp.lt.s32.totalorder %v605, 0
    %v607 = vsub.s32 0, %v605
    %v608 = vsel %vm606, %v607, %v605
    %v609 = vclz %v608
    %v610 = vsub.s32 %v609, 2
    %vm611 = vcmp.gt.s32.totalorder 0, %v610
    %v612 = vsel %vm611, 0, %v610
    %v613 = vsub.s32 32, %v612
    %v614 = vshll.u32 %v605, %v612
    %v615 = vshrl.u32 %v597, %v613
    %v616 = vor.u32 %v614, %v615
    %v617 = vsub.s32 4294967266, %v612
    %v618 = vadd.s32 %v617, 127
    %v619 = vshll.u32 %v618, 23
    %v620 = vor.u32 4788187, %v619
    %v621 = vand.u32 2147483647, %v620
    %v623 = vcvt.s32.f32 %v616
    %v624 = vmul.f32 %v623, %v621
    %v625 = vxor.u32 %v624, 2147483648
    %v626 = vsel %vm543, %v625, %v624
    %v627 = vsub.s32 4, %v603
    %v628 = vsel %vm543, %v627, %v603
    %v629 = vsel %vm542, %v191, %v626
    %v630 = vsel %vm542, 0, %v628
    %v631 = vcosq.f32.pop %v629
    %v632 = vsinq.f32.pop %v629
    %vm633 = vweird.f32 %v191
    %v634 = vadd.s32 %v630, 3
    %v635 = vand.u32 %v634, 3
    %vm636 = vcmp.lt.s32.totalorder %v635, 2
    %vm637 = vcmp.eq.s32.totalorder %v635, 0
    %v638 = vxor.u32 %v632, 2147483648
    %v639 = vsel %vm637, %v631, %v638
    %vm640 = vcmp.eq.s32.totalorder %v635, 2
    %v641 = vxor.u32 %v631, 2147483648
    %v642 = vsel %vm640, %v641, %v632
    %v643 = vsel %vm636, %v639, %v642
    %v644 = vsel %vm633, nan, %v643
    %v645 = vand.u32 2147483647, %v195
    %vm646 = vcmp.le.f32.partialorder %v645, 0.7853982
    %vm647 = vcmp.lt.s32.totalorder %v195, 0
    %v648 = vand.u32 %v195, 2139095040
    %v649 = vshrl.u32 %v648, 23
    %v650 = vsub.s32 %v649, 127
    %v651 = vand.u32 2147483647, %v195
    %v652 = vand.u32 %v651, 8388607
    %v653 = vor.u32 %v652, 8388608
    %v654 = vsub.s32 0, %v653
    %v655 = vadd.s32 %v650, 1
    %vm656 = vcmp.gt.s32.totalorder %v655, 0
    %v657 = vsel %vm656, %v655, 0
    %v658 = vshrl.u32 %v657, 5
    %v659 = vand.u32 %v657, 31
    %v660 = vsub.s32 32, %v659
    %v661 = vshrl.u32 683565275, %v660
    %v662 = vshll.u32 683565275, %v659
    %v663 = vshrl.u32 2475754826, %v660
    %v664 = vor.u32 %v662, %v663
    %v665 = vshll.u32 2475754826, %v659
    %v666 = vshrl.u32 2131351028, %v660
    %v667 = vor.u32 %v665, %v666
    %v668 = vshll.u32 2131351028, %v659
    %v669 = vshrl.u32 2102212464, %v660
    %v670 = vor.u32 %v668, %v669
    %v671 = vshll.u32 2102212464, %v659
    %v672 = vshrl.u32 920167782, %v660
    %v673 = vor.u32 %v671, %v672
    %v674 = vshll.u32 920167782, %v659
    %v675 = vshrl.u32 1326507024, %v660
    %v676 = vor.u32 %v674, %v675
    %vm677 = vcmp.lt.s32.totalorder %v658, 1
    %vm678 = vcmp.lt.s32.totalorder %v658, 2
    %vm679 = vcmp.lt.s32.totalorder %v658, 3
    %vm680 = vcmp.lt.s32.totalorder %v658, 4
    %v681 = vsel %vm677, %v661, %v664
    %v682 = vsel %vm680, %v670, 2102212464
    %v683 = vsel %vm679, %v667, %v682
    %v684 = vsel %vm678, %v681, %v683
    %v685 = vsel %vm677, %v664, %v667
    %v686 = vsel %vm680, %v673, 920167782
    %v687 = vsel %vm679, %v670, %v686
    %v688 = vsel %vm678, %v685, %v687
    %v689 = vsel %vm677, %v667, %v670
    %v690 = vsel %vm680, %v676, 1326507024
    %v691 = vsel %vm679, %v673, %v690
    %v692 = vsel %vm678, %v689, %v691
    %v693 = vshll.u32 %v653, 8
    %v694 = vmul.u32.u64.compose %v693, %v692
    %v695 = vextract.low.u32 %v694
    %v696 = vextract.high.u32 %v694
    %v697 = vmul.u32.u64.compose %v693, %v688
    %v698 = vextract.low.u32 %v697
    %v699 = vextract.high.u32 %v697
    %v700 = vmul.u32 %v693, %v684
    %v701 = vadd.s32 %v696, %v698
    %vm702 = vc.u32 %v696, %v698
    %v703 = vadd.s32 %v699, 1
    %v704 = vsel %vm702, %v703, %v699
    %v705 = vadd.s32 %v700, %v704
    %v706 = vadd.s32 %v705, 536870912
    %v707 = vshrl.u32 %v706, 30
    %v708 = vshll.u32 %v707, 30
    %v709 = vsub.s32 %v705, %v708
    %vm710 = vcmp.lt.s32.totalorder %v709, 0
    %v711 = vsub.s32 0, %v709
    %v712 = vsel %vm710, %v711, %v709
    %v713 = vclz %v712
    %v714 = vsub.s32 %v713, 2
    %vm715 = vcmp.gt.s32.totalorder 0, %v714
    %v716 = vsel %vm715, 0, %v714
    %v717 = vsub.s32 32, %v716
    %v718 = vshll.u32 %v709, %v716
    %v719 = vshrl.u32 %v701, %v717
    %v720 = vor.u32 %v718, %v719
    %v721 = vsub.s32 4294967266, %v716
    %v722 = vadd.s32 %v721, 127
    %v723 = vshll.u32 %v722, 23
    %v724 = vor.u32 4788187, %v723
    %v725 = vand.u32 2147483647, %v724
    %v727 = vcvt.s32.f32 %v720
    %v728 = vmul.f32 %v727, %v725
    %v729 = vxor.u32 %v728, 2147483648
    %v730 = vsel %vm647, %v729, %v728
    %v731 = vsub.s32 4, %v707
    %v732 = vsel %vm647, %v731, %v707
    %v733 = vsel %vm646, %v195, %v730
    %v734 = vsel %vm646, 0, %v732
    %v735 = vcosq.f32.pop %v733
    %v736 = vsinq.f32.pop %v733
    %vm737 = vweird.f32 %v195
    %v738 = vadd.s32 %v734, 3
    %v739 = vand.u32 %v738, 3
    %vm740 = vcmp.lt.s32.totalorder %v739, 2
    %vm741 = vcmp.eq.s32.totalorder %v739, 0
    %v742 = vxor.u32 %v736, 2147483648
    %v743 = vsel %vm741, %v735, %v742
    %vm744 = vcmp.eq.s32.totalorder %v739, 2
    %v745 = vxor.u32 %v735, 2147483648
    %v746 = vsel %vm744, %v745, %v736
    %v747 = vsel %vm740, %v743, %v746
    %v748 = vsel %vm737, nan, %v747
    %v749 = vand.u32 2147483647, %v197
    %vm750 = vcmp.le.f32.partialorder %v749, 0.7853982
    %vm751 = vcmp.lt.s32.totalorder %v197, 0
    %v752 = vand.u32 %v197, 2139095040
    %v753 = vshrl.u32 %v752, 23
    %v754 = vsub.s32 %v753, 127
    %v755 = vand.u32 2147483647, %v197
    %v756 = vand.u32 %v755, 8388607
    %v757 = vor.u32 %v756, 8388608
    %v758 = vsub.s32 0, %v757
    %v759 = vadd.s32 %v754, 1
    %vm760 = vcmp.gt.s32.totalorder %v759, 0
    %v761 = vsel %vm760, %v759, 0
    %v762 = vshrl.u32 %v761, 5
    %v763 = vand.u32 %v761, 31
    %v764 = vsub.s32 32, %v763
    %v765 = vshrl.u32 683565275, %v764
    %v766 = vshll.u32 683565275, %v763
    %v767 = vshrl.u32 2475754826, %v764
    %v768 = vor.u32 %v766, %v767
    %v769 = vshll.u32 2475754826, %v763
    %v770 = vshrl.u32 2131351028, %v764
    %v771 = vor.u32 %v769, %v770
    %v772 = vshll.u32 2131351028, %v763
    %v773 = vshrl.u32 2102212464, %v764
    %v774 = vor.u32 %v772, %v773
    %v775 = vshll.u32 2102212464, %v763
    %v776 = vshrl.u32 920167782, %v764
    %v777 = vor.u32 %v775, %v776
    %v778 = vshll.u32 920167782, %v763
    %v779 = vshrl.u32 1326507024, %v764
    %v780 = vor.u32 %v778, %v779
    %vm781 = vcmp.lt.s32.totalorder %v762, 1
    %vm782 = vcmp.lt.s32.totalorder %v762, 2
    %vm783 = vcmp.lt.s32.totalorder %v762, 3
    %vm784 = vcmp.lt.s32.totalorder %v762, 4
    %v785 = vsel %vm781, %v765, %v768
    %v786 = vsel %vm784, %v774, 2102212464
    %v787 = vsel %vm783, %v771, %v786
    %v788 = vsel %vm782, %v785, %v787
    %v789 = vsel %vm781, %v768, %v771
    %v790 = vsel %vm784, %v777, 920167782
    %v791 = vsel %vm783, %v774, %v790
    %v792 = vsel %vm782, %v789, %v791
    %v793 = vsel %vm781, %v771, %v774
    %v794 = vsel %vm784, %v780, 1326507024
    %v795 = vsel %vm783, %v777, %v794
    %v796 = vsel %vm782, %v793, %v795
    %v797 = vshll.u32 %v757, 8
    %v798 = vmul.u32.u64.compose %v797, %v796
    %v799 = vextract.low.u32 %v798
    %v800 = vextract.high.u32 %v798
    %v801 = vmul.u32.u64.compose %v797, %v792
    %v802 = vextract.low.u32 %v801
    %v803 = vextract.high.u32 %v801
    %v804 = vmul.u32 %v797, %v788
    %v805 = vadd.s32 %v800, %v802
    %vm806 = vc.u32 %v800, %v802
    %v807 = vadd.s32 %v803, 1
    %v808 = vsel %vm806, %v807, %v803
    %v809 = vadd.s32 %v804, %v808
    %v810 = vadd.s32 %v809, 536870912
    %v811 = vshrl.u32 %v810, 30
    %v812 = vshll.u32 %v811, 30
    %v813 = vsub.s32 %v809, %v812
    %vm814 = vcmp.lt.s32.totalorder %v813, 0
    %v815 = vsub.s32 0, %v813
    %v816 = vsel %vm814, %v815, %v813
    %v817 = vclz %v816
    %v818 = vsub.s32 %v817, 2
    %vm819 = vcmp.gt.s32.totalorder 0, %v818
    %v820 = vsel %vm819, 0, %v818
    %v821 = vsub.s32 32, %v820
    %v822 = vshll.u32 %v813, %v820
    %v823 = vshrl.u32 %v805, %v821
    %v824 = vor.u32 %v822, %v823
    %v825 = vsub.s32 4294967266, %v820
    %v826 = vadd.s32 %v825, 127
    %v827 = vshll.u32 %v826, 23
    %v828 = vor.u32 4788187, %v827
    %v829 = vand.u32 2147483647, %v828
    %v831 = vcvt.s32.f32 %v824
    %v832 = vmul.f32 %v831, %v829
    %v833 = vxor.u32 %v832, 2147483648
    %v834 = vsel %vm751, %v833, %v832
    %v835 = vsub.s32 4, %v811
    %v836 = vsel %vm751, %v835, %v811
    %v837 = vsel %vm750, %v197, %v834
    %v838 = vsel %vm750, 0, %v836
    %v839 = vcosq.f32.pop %v837
    %v840 = vsinq.f32.pop %v837
    %vm841 = vweird.f32 %v197
    %v842 = vadd.s32 %v838, 3
    %v843 = vand.u32 %v842, 3
    %vm844 = vcmp.lt.s32.totalorder %v843, 2
    %vm845 = vcmp.eq.s32.totalorder %v843, 0
    %v846 = vxor.u32 %v840, 2147483648
    %v847 = vsel %vm845, %v839, %v846
    %vm848 = vcmp.eq.s32.totalorder %v843, 2
    %v849 = vxor.u32 %v839, 2147483648
    %v850 = vsel %vm848, %v849, %v840
    %v851 = vsel %vm844, %v847, %v850
    %v852 = vsel %vm841, nan, %v851
    %v853 = vand.u32 2147483647, %v201
    %vm854 = vcmp.le.f32.partialorder %v853, 0.7853982
    %vm855 = vcmp.lt.s32.totalorder %v201, 0
    %v856 = vand.u32 %v201, 2139095040
    %v857 = vshrl.u32 %v856, 23
    %v858 = vsub.s32 %v857, 127
    %v859 = vand.u32 2147483647, %v201
    %v860 = vand.u32 %v859, 8388607
    %v861 = vor.u32 %v860, 8388608
    %v862 = vsub.s32 0, %v861
    %v863 = vadd.s32 %v858, 1
    %vm864 = vcmp.gt.s32.totalorder %v863, 0
    %v865 = vsel %vm864, %v863, 0
    %v866 = vshrl.u32 %v865, 5
    %v867 = vand.u32 %v865, 31
    %v868 = vsub.s32 32, %v867
    %v869 = vshrl.u32 683565275, %v868
    %v870 = vshll.u32 683565275, %v867
    %v871 = vshrl.u32 2475754826, %v868
    %v872 = vor.u32 %v870, %v871
    %v873 = vshll.u32 2475754826, %v867
    %v874 = vshrl.u32 2131351028, %v868
    %v875 = vor.u32 %v873, %v874
    %v876 = vshll.u32 2131351028, %v867
    %v877 = vshrl.u32 2102212464, %v868
    %v878 = vor.u32 %v876, %v877
    %v879 = vshll.u32 2102212464, %v867
    %v880 = vshrl.u32 920167782, %v868
    %v881 = vor.u32 %v879, %v880
    %v882 = vshll.u32 920167782, %v867
    %v883 = vshrl.u32 1326507024, %v868
    %v884 = vor.u32 %v882, %v883
    %vm885 = vcmp.lt.s32.totalorder %v866, 1
    %vm886 = vcmp.lt.s32.totalorder %v866, 2
    %vm887 = vcmp.lt.s32.totalorder %v866, 3
    %vm888 = vcmp.lt.s32.totalorder %v866, 4
    %v889 = vsel %vm885, %v869, %v872
    %v890 = vsel %vm888, %v878, 2102212464
    %v891 = vsel %vm887, %v875, %v890
    %v892 = vsel %vm886, %v889, %v891
    %v893 = vsel %vm885, %v872, %v875
    %v894 = vsel %vm888, %v881, 920167782
    %v895 = vsel %vm887, %v878, %v894
    %v896 = vsel %vm886, %v893, %v895
    %v897 = vsel %vm885, %v875, %v878
    %v898 = vsel %vm888, %v884, 1326507024
    %v899 = vsel %vm887, %v881, %v898
    %v900 = vsel %vm886, %v897, %v899
    %v901 = vshll.u32 %v861, 8
    %v902 = vmul.u32.u64.compose %v901, %v900
    %v903 = vextract.low.u32 %v902
    %v904 = vextract.high.u32 %v902
    %v905 = vmul.u32.u64.compose %v901, %v896
    %v906 = vextract.low.u32 %v905
    %v907 = vextract.high.u32 %v905
    %v908 = vmul.u32 %v901, %v892
    %v909 = vadd.s32 %v904, %v906
    %vm910 = vc.u32 %v904, %v906
    %v911 = vadd.s32 %v907, 1
    %v912 = vsel %vm910, %v911, %v907
    %v913 = vadd.s32 %v908, %v912
    %v914 = vadd.s32 %v913, 536870912
    %v915 = vshrl.u32 %v914, 30
    %v916 = vshll.u32 %v915, 30
    %v917 = vsub.s32 %v913, %v916
    %vm918 = vcmp.lt.s32.totalorder %v917, 0
    %v919 = vsub.s32 0, %v917
    %v920 = vsel %vm918, %v919, %v917
    %v921 = vclz %v920
    %v922 = vsub.s32 %v921, 2
    %vm923 = vcmp.gt.s32.totalorder 0, %v922
    %v924 = vsel %vm923, 0, %v922
    %v925 = vsub.s32 32, %v924
    %v926 = vshll.u32 %v917, %v924
    %v927 = vshrl.u32 %v909, %v925
    %v928 = vor.u32 %v926, %v927
    %v929 = vsub.s32 4294967266, %v924
    %v930 = vadd.s32 %v929, 127
    %v931 = vshll.u32 %v930, 23
    %v932 = vor.u32 4788187, %v931
    %v933 = vand.u32 2147483647, %v932
    %v935 = vcvt.s32.f32 %v928
    %v936 = vmul.f32 %v935, %v933
    %v937 = vxor.u32 %v936, 2147483648
    %v938 = vsel %vm855, %v937, %v936
    %v939 = vsub.s32 4, %v915
    %v940 = vsel %vm855, %v939, %v915
    %v941 = vsel %vm854, %v201, %v938
    %v942 = vsel %vm854, 0, %v940
    %v943 = vcosq.f32.pop %v941
    %v944 = vsinq.f32.pop %v941
    %vm945 = vweird.f32 %v201
    %v946 = vadd.s32 %v942, 3
    %v947 = vand.u32 %v946, 3
    %vm948 = vcmp.lt.s32.totalorder %v947, 2
    %vm949 = vcmp.eq.s32.totalorder %v947, 0
    %v950 = vxor.u32 %v944, 2147483648
    %v951 = vsel %vm949, %v943, %v950
    %vm952 = vcmp.eq.s32.totalorder %v947, 2
    %v953 = vxor.u32 %v943, 2147483648
    %v954 = vsel %vm952, %v953, %v944
    %v955 = vsel %vm948, %v951, %v954
    %v956 = vsel %vm945, nan, %v955
    %v957 = vand.u32 2147483647, %v203
    %vm958 = vcmp.le.f32.partialorder %v957, 0.7853982
    %vm959 = vcmp.lt.s32.totalorder %v203, 0
    %v960 = vand.u32 %v203, 2139095040
    %v961 = vshrl.u32 %v960, 23
    %v962 = vsub.s32 %v961, 127
    %v963 = vand.u32 2147483647, %v203
    %v964 = vand.u32 %v963, 8388607
    %v965 = vor.u32 %v964, 8388608
    %v966 = vsub.s32 0, %v965
    %v967 = vadd.s32 %v962, 1
    %vm968 = vcmp.gt.s32.totalorder %v967, 0
    %v969 = vsel %vm968, %v967, 0
    %v970 = vshrl.u32 %v969, 5
    %v971 = vand.u32 %v969, 31
    %v972 = vsub.s32 32, %v971
    %v973 = vshrl.u32 683565275, %v972
    %v974 = vshll.u32 683565275, %v971
    %v975 = vshrl.u32 2475754826, %v972
    %v976 = vor.u32 %v974, %v975
    %v977 = vshll.u32 2475754826, %v971
    %v978 = vshrl.u32 2131351028, %v972
    %v979 = vor.u32 %v977, %v978
    %v980 = vshll.u32 2131351028, %v971
    %v981 = vshrl.u32 2102212464, %v972
    %v982 = vor.u32 %v980, %v981
    %v983 = vshll.u32 2102212464, %v971
    %v984 = vshrl.u32 920167782, %v972
    %v985 = vor.u32 %v983, %v984
    %v986 = vshll.u32 920167782, %v971
    %v987 = vshrl.u32 1326507024, %v972
    %v988 = vor.u32 %v986, %v987
    %vm989 = vcmp.lt.s32.totalorder %v970, 1
    %vm990 = vcmp.lt.s32.totalorder %v970, 2
    %vm991 = vcmp.lt.s32.totalorder %v970, 3
    %vm992 = vcmp.lt.s32.totalorder %v970, 4
    %v993 = vsel %vm989, %v973, %v976
    %v994 = vsel %vm992, %v982, 2102212464
    %v995 = vsel %vm991, %v979, %v994
    %v996 = vsel %vm990, %v993, %v995
    %v997 = vsel %vm989, %v976, %v979
    %v998 = vsel %vm992, %v985, 920167782
    %v999 = vsel %vm991, %v982, %v998
    %v1000 = vsel %vm990, %v997, %v999
    %v1001 = vsel %vm989, %v979, %v982
    %v1002 = vsel %vm992, %v988, 1326507024
    %v1003 = vsel %vm991, %v985, %v1002
    %v1004 = vsel %vm990, %v1001, %v1003
    %v1005 = vshll.u32 %v965, 8
    %v1006 = vmul.u32.u64.compose %v1005, %v1004
    %v1007 = vextract.low.u32 %v1006
    %v1008 = vextract.high.u32 %v1006
    %v1009 = vmul.u32.u64.compose %v1005, %v1000
    %v1010 = vextract.low.u32 %v1009
    %v1011 = vextract.high.u32 %v1009
    %v1012 = vmul.u32 %v1005, %v996
    %v1013 = vadd.s32 %v1008, %v1010
    %vm1014 = vc.u32 %v1008, %v1010
    %v1015 = vadd.s32 %v1011, 1
    %v1016 = vsel %vm1014, %v1015, %v1011
    %v1017 = vadd.s32 %v1012, %v1016
    %v1018 = vadd.s32 %v1017, 536870912
    %v1019 = vshrl.u32 %v1018, 30
    %v1020 = vshll.u32 %v1019, 30
    %v1021 = vsub.s32 %v1017, %v1020
    %vm1022 = vcmp.lt.s32.totalorder %v1021, 0
    %v1023 = vsub.s32 0, %v1021
    %v1024 = vsel %vm1022, %v1023, %v1021
    %v1025 = vclz %v1024
    %v1026 = vsub.s32 %v1025, 2
    %vm1027 = vcmp.gt.s32.totalorder 0, %v1026
    %v1028 = vsel %vm1027, 0, %v1026
    %v1029 = vsub.s32 32, %v1028
    %v1030 = vshll.u32 %v1021, %v1028
    %v1031 = vshrl.u32 %v1013, %v1029
    %v1032 = vor.u32 %v1030, %v1031
    %v1033 = vsub.s32 4294967266, %v1028
    %v1034 = vadd.s32 %v1033, 127
    %v1035 = vshll.u32 %v1034, 23
    %v1036 = vor.u32 4788187, %v1035
    %v1037 = vand.u32 2147483647, %v1036
    %v1039 = vcvt.s32.f32 %v1032
    %v1040 = vmul.f32 %v1039, %v1037
    %v1041 = vxor.u32 %v1040, 2147483648
    %v1042 = vsel %vm959, %v1041, %v1040
    %v1043 = vsub.s32 4, %v1019
    %v1044 = vsel %vm959, %v1043, %v1019
    %v1045 = vsel %vm958, %v203, %v1042
    %v1046 = vsel %vm958, 0, %v1044
    %v1047 = vcosq.f32.pop %v1045
    %v1048 = vsinq.f32.pop %v1045
    %vm1049 = vweird.f32 %v203
    %v1050 = vadd.s32 %v1046, 3
    %v1051 = vand.u32 %v1050, 3
    %vm1052 = vcmp.lt.s32.totalorder %v1051, 2
    %vm1053 = vcmp.eq.s32.totalorder %v1051, 0
    %v1054 = vxor.u32 %v1048, 2147483648
    %v1055 = vsel %vm1053, %v1047, %v1054
    %vm1056 = vcmp.eq.s32.totalorder %v1051, 2
    %v1057 = vxor.u32 %v1047, 2147483648
    %v1058 = vsel %vm1056, %v1057, %v1048
    %v1059 = vsel %vm1052, %v1055, %v1058
    %v1060 = vsel %vm1049, nan, %v1059
    %v1061 = vand.u32 2147483647, %v207
    %vm1062 = vcmp.le.f32.partialorder %v1061, 0.7853982
    %vm1063 = vcmp.lt.s32.totalorder %v207, 0
    %v1064 = vand.u32 %v207, 2139095040
    %v1065 = vshrl.u32 %v1064, 23
    %v1066 = vsub.s32 %v1065, 127
    %v1067 = vand.u32 2147483647, %v207
    %v1068 = vand.u32 %v1067, 8388607
    %v1069 = vor.u32 %v1068, 8388608
    %v1070 = vsub.s32 0, %v1069
    %v1071 = vadd.s32 %v1066, 1
    %vm1072 = vcmp.gt.s32.totalorder %v1071, 0
    %v1073 = vsel %vm1072, %v1071, 0
    %v1074 = vshrl.u32 %v1073, 5
    %v1075 = vand.u32 %v1073, 31
    %v1076 = vsub.s32 32, %v1075
    %v1077 = vshrl.u32 683565275, %v1076
    %v1078 = vshll.u32 683565275, %v1075
    %v1079 = vshrl.u32 2475754826, %v1076
    %v1080 = vor.u32 %v1078, %v1079
    %v1081 = vshll.u32 2475754826, %v1075
    %v1082 = vshrl.u32 2131351028, %v1076
    %v1083 = vor.u32 %v1081, %v1082
    %v1084 = vshll.u32 2131351028, %v1075
    %v1085 = vshrl.u32 2102212464, %v1076
    %v1086 = vor.u32 %v1084, %v1085
    %v1087 = vshll.u32 2102212464, %v1075
    %v1088 = vshrl.u32 920167782, %v1076
    %v1089 = vor.u32 %v1087, %v1088
    %v1090 = vshll.u32 920167782, %v1075
    %v1091 = vshrl.u32 1326507024, %v1076
    %v1092 = vor.u32 %v1090, %v1091
    %vm1093 = vcmp.lt.s32.totalorder %v1074, 1
    %vm1094 = vcmp.lt.s32.totalorder %v1074, 2
    %vm1095 = vcmp.lt.s32.totalorder %v1074, 3
    %vm1096 = vcmp.lt.s32.totalorder %v1074, 4
    %v1097 = vsel %vm1093, %v1077, %v1080
    %v1098 = vsel %vm1096, %v1086, 2102212464
    %v1099 = vsel %vm1095, %v1083, %v1098
    %v1100 = vsel %vm1094, %v1097, %v1099
    %v1101 = vsel %vm1093, %v1080, %v1083
    %v1102 = vsel %vm1096, %v1089, 920167782
    %v1103 = vsel %vm1095, %v1086, %v1102
    %v1104 = vsel %vm1094, %v1101, %v1103
    %v1105 = vsel %vm1093, %v1083, %v1086
    %v1106 = vsel %vm1096, %v1092, 1326507024
    %v1107 = vsel %vm1095, %v1089, %v1106
    %v1108 = vsel %vm1094, %v1105, %v1107
    %v1109 = vshll.u32 %v1069, 8
    %v1110 = vmul.u32.u64.compose %v1109, %v1108
    %v1111 = vextract.low.u32 %v1110
    %v1112 = vextract.high.u32 %v1110
    %v1113 = vmul.u32.u64.compose %v1109, %v1104
    %v1114 = vextract.low.u32 %v1113
    %v1115 = vextract.high.u32 %v1113
    %v1116 = vmul.u32 %v1109, %v1100
    %v1117 = vadd.s32 %v1112, %v1114
    %vm1118 = vc.u32 %v1112, %v1114
    %v1119 = vadd.s32 %v1115, 1
    %v1120 = vsel %vm1118, %v1119, %v1115
    %v1121 = vadd.s32 %v1116, %v1120
    %v1122 = vadd.s32 %v1121, 536870912
    %v1123 = vshrl.u32 %v1122, 30
    %v1124 = vshll.u32 %v1123, 30
    %v1125 = vsub.s32 %v1121, %v1124
    %vm1126 = vcmp.lt.s32.totalorder %v1125, 0
    %v1127 = vsub.s32 0, %v1125
    %v1128 = vsel %vm1126, %v1127, %v1125
    %v1129 = vclz %v1128
    %v1130 = vsub.s32 %v1129, 2
    %vm1131 = vcmp.gt.s32.totalorder 0, %v1130
    %v1132 = vsel %vm1131, 0, %v1130
    %v1133 = vsub.s32 32, %v1132
    %v1134 = vshll.u32 %v1125, %v1132
    %v1135 = vshrl.u32 %v1117, %v1133
    %v1136 = vor.u32 %v1134, %v1135
    %v1137 = vsub.s32 4294967266, %v1132
    %v1138 = vadd.s32 %v1137, 127
    %v1139 = vshll.u32 %v1138, 23
    %v1140 = vor.u32 4788187, %v1139
    %v1141 = vand.u32 2147483647, %v1140
    %v1143 = vcvt.s32.f32 %v1136
    %v1144 = vmul.f32 %v1143, %v1141
    %v1145 = vxor.u32 %v1144, 2147483648
    %v1146 = vsel %vm1063, %v1145, %v1144
    %v1147 = vsub.s32 4, %v1123
    %v1148 = vsel %vm1063, %v1147, %v1123
    %v1149 = vsel %vm1062, %v207, %v1146
    %v1150 = vsel %vm1062, 0, %v1148
    %v1151 = vcosq.f32.pop %v1149
    %v1152 = vsinq.f32.pop %v1149
    %vm1153 = vweird.f32 %v207
    %v1154 = vadd.s32 %v1150, 3
    %v1155 = vand.u32 %v1154, 3
    %vm1156 = vcmp.lt.s32.totalorder %v1155, 2
    %vm1157 = vcmp.eq.s32.totalorder %v1155, 0
    %v1158 = vxor.u32 %v1152, 2147483648
    %v1159 = vsel %vm1157, %v1151, %v1158
    %vm1160 = vcmp.eq.s32.totalorder %v1155, 2
    %v1161 = vxor.u32 %v1151, 2147483648
    %v1162 = vsel %vm1160, %v1161, %v1152
    %v1163 = vsel %vm1156, %v1159, %v1162
    %v1164 = vsel %vm1153, nan, %v1163
    %v1165 = vand.u32 2147483647, %v209
    %vm1166 = vcmp.le.f32.partialorder %v1165, 0.7853982
    %vm1167 = vcmp.lt.s32.totalorder %v209, 0
    %v1168 = vand.u32 %v209, 2139095040
    %v1169 = vshrl.u32 %v1168, 23
    %v1170 = vsub.s32 %v1169, 127
    %v1171 = vand.u32 2147483647, %v209
    %v1172 = vand.u32 %v1171, 8388607
    %v1173 = vor.u32 %v1172, 8388608
    %v1174 = vsub.s32 0, %v1173
    %v1175 = vadd.s32 %v1170, 1
    %vm1176 = vcmp.gt.s32.totalorder %v1175, 0
    %v1177 = vsel %vm1176, %v1175, 0
    %v1178 = vshrl.u32 %v1177, 5
    %v1179 = vand.u32 %v1177, 31
    %v1180 = vsub.s32 32, %v1179
    %v1181 = vshrl.u32 683565275, %v1180
    %v1182 = vshll.u32 683565275, %v1179
    %v1183 = vshrl.u32 2475754826, %v1180
    %v1184 = vor.u32 %v1182, %v1183
    %v1185 = vshll.u32 2475754826, %v1179
    %v1186 = vshrl.u32 2131351028, %v1180
    %v1187 = vor.u32 %v1185, %v1186
    %v1188 = vshll.u32 2131351028, %v1179
    %v1189 = vshrl.u32 2102212464, %v1180
    %v1190 = vor.u32 %v1188, %v1189
    %v1191 = vshll.u32 2102212464, %v1179
    %v1192 = vshrl.u32 920167782, %v1180
    %v1193 = vor.u32 %v1191, %v1192
    %v1194 = vshll.u32 920167782, %v1179
    %v1195 = vshrl.u32 1326507024, %v1180
    %v1196 = vor.u32 %v1194, %v1195
    %vm1197 = vcmp.lt.s32.totalorder %v1178, 1
    %vm1198 = vcmp.lt.s32.totalorder %v1178, 2
    %vm1199 = vcmp.lt.s32.totalorder %v1178, 3
    %vm1200 = vcmp.lt.s32.totalorder %v1178, 4
    %v1201 = vsel %vm1197, %v1181, %v1184
    %v1202 = vsel %vm1200, %v1190, 2102212464
    %v1203 = vsel %vm1199, %v1187, %v1202
    %v1204 = vsel %vm1198, %v1201, %v1203
    %v1205 = vsel %vm1197, %v1184, %v1187
    %v1206 = vsel %vm1200, %v1193, 920167782
    %v1207 = vsel %vm1199, %v1190, %v1206
    %v1208 = vsel %vm1198, %v1205, %v1207
    %v1209 = vsel %vm1197, %v1187, %v1190
    %v1210 = vsel %vm1200, %v1196, 1326507024
    %v1211 = vsel %vm1199, %v1193, %v1210
    %v1212 = vsel %vm1198, %v1209, %v1211
    %v1213 = vshll.u32 %v1173, 8
    %v1214 = vmul.u32.u64.compose %v1213, %v1212
    %v1215 = vextract.low.u32 %v1214
    %v1216 = vextract.high.u32 %v1214
    %v1217 = vmul.u32.u64.compose %v1213, %v1208
    %v1218 = vextract.low.u32 %v1217
    %v1219 = vextract.high.u32 %v1217
    %v1220 = vmul.u32 %v1213, %v1204
    %v1221 = vadd.s32 %v1216, %v1218
    %vm1222 = vc.u32 %v1216, %v1218
    %v1223 = vadd.s32 %v1219, 1
    %v1224 = vsel %vm1222, %v1223, %v1219
    %v1225 = vadd.s32 %v1220, %v1224
    %v1226 = vadd.s32 %v1225, 536870912
    %v1227 = vshrl.u32 %v1226, 30
    %v1228 = vshll.u32 %v1227, 30
    %v1229 = vsub.s32 %v1225, %v1228
    %vm1230 = vcmp.lt.s32.totalorder %v1229, 0
    %v1231 = vsub.s32 0, %v1229
    %v1232 = vsel %vm1230, %v1231, %v1229
    %v1233 = vclz %v1232
    %v1234 = vsub.s32 %v1233, 2
    %vm1235 = vcmp.gt.s32.totalorder 0, %v1234
    %v1236 = vsel %vm1235, 0, %v1234
    %v1237 = vsub.s32 32, %v1236
    %v1238 = vshll.u32 %v1229, %v1236
    %v1239 = vshrl.u32 %v1221, %v1237
    %v1240 = vor.u32 %v1238, %v1239
    %v1241 = vsub.s32 4294967266, %v1236
    %v1242 = vadd.s32 %v1241, 127
    %v1243 = vshll.u32 %v1242, 23
    %v1244 = vor.u32 4788187, %v1243
    %v1245 = vand.u32 2147483647, %v1244
    %v1247 = vcvt.s32.f32 %v1240
    %v1248 = vmul.f32 %v1247, %v1245
    %v1249 = vxor.u32 %v1248, 2147483648
    %v1250 = vsel %vm1167, %v1249, %v1248
    %v1251 = vsub.s32 4, %v1227
    %v1252 = vsel %vm1167, %v1251, %v1227
    %v1253 = vsel %vm1166, %v209, %v1250
    %v1254 = vsel %vm1166, 0, %v1252
    %v1255 = vcosq.f32.pop %v1253
    %v1256 = vsinq.f32.pop %v1253
    %vm1257 = vweird.f32 %v209
    %v1258 = vadd.s32 %v1254, 3
    %v1259 = vand.u32 %v1258, 3
    %vm1260 = vcmp.lt.s32.totalorder %v1259, 2
    %vm1261 = vcmp.eq.s32.totalorder %v1259, 0
    %v1262 = vxor.u32 %v1256, 2147483648
    %v1263 = vsel %vm1261, %v1255, %v1262
    %vm1264 = vcmp.eq.s32.totalorder %v1259, 2
    %v1265 = vxor.u32 %v1255, 2147483648
    %v1266 = vsel %vm1264, %v1265, %v1256
    %v1267 = vsel %vm1260, %v1263, %v1266
    %v1268 = vsel %vm1257, nan, %v1267
    %v1269 = vand.u32 2147483647, %v213
    %vm1270 = vcmp.le.f32.partialorder %v1269, 0.7853982
    %vm1271 = vcmp.lt.s32.totalorder %v213, 0
    %v1272 = vand.u32 %v213, 2139095040
    %v1273 = vshrl.u32 %v1272, 23
    %v1274 = vsub.s32 %v1273, 127
    %v1275 = vand.u32 2147483647, %v213
    %v1276 = vand.u32 %v1275, 8388607
    %v1277 = vor.u32 %v1276, 8388608
    %v1278 = vsub.s32 0, %v1277
    %v1279 = vadd.s32 %v1274, 1
    %vm1280 = vcmp.gt.s32.totalorder %v1279, 0
    %v1281 = vsel %vm1280, %v1279, 0
    %v1282 = vshrl.u32 %v1281, 5
    %v1283 = vand.u32 %v1281, 31
    %v1284 = vsub.s32 32, %v1283
    %v1285 = vshrl.u32 683565275, %v1284
    %v1286 = vshll.u32 683565275, %v1283
    %v1287 = vshrl.u32 2475754826, %v1284
    %v1288 = vor.u32 %v1286, %v1287
    %v1289 = vshll.u32 2475754826, %v1283
    %v1290 = vshrl.u32 2131351028, %v1284
    %v1291 = vor.u32 %v1289, %v1290
    %v1292 = vshll.u32 2131351028, %v1283
    %v1293 = vshrl.u32 2102212464, %v1284
    %v1294 = vor.u32 %v1292, %v1293
    %v1295 = vshll.u32 2102212464, %v1283
    %v1296 = vshrl.u32 920167782, %v1284
    %v1297 = vor.u32 %v1295, %v1296
    %v1298 = vshll.u32 920167782, %v1283
    %v1299 = vshrl.u32 1326507024, %v1284
    %v1300 = vor.u32 %v1298, %v1299
    %vm1301 = vcmp.lt.s32.totalorder %v1282, 1
    %vm1302 = vcmp.lt.s32.totalorder %v1282, 2
    %vm1303 = vcmp.lt.s32.totalorder %v1282, 3
    %vm1304 = vcmp.lt.s32.totalorder %v1282, 4
    %v1305 = vsel %vm1301, %v1285, %v1288
    %v1306 = vsel %vm1304, %v1294, 2102212464
    %v1307 = vsel %vm1303, %v1291, %v1306
    %v1308 = vsel %vm1302, %v1305, %v1307
    %v1309 = vsel %vm1301, %v1288, %v1291
    %v1310 = vsel %vm1304, %v1297, 920167782
    %v1311 = vsel %vm1303, %v1294, %v1310
    %v1312 = vsel %vm1302, %v1309, %v1311
    %v1313 = vsel %vm1301, %v1291, %v1294
    %v1314 = vsel %vm1304, %v1300, 1326507024
    %v1315 = vsel %vm1303, %v1297, %v1314
    %v1316 = vsel %vm1302, %v1313, %v1315
    %v1317 = vshll.u32 %v1277, 8
    %v1318 = vmul.u32.u64.compose %v1317, %v1316
    %v1319 = vextract.low.u32 %v1318
    %v1320 = vextract.high.u32 %v1318
    %v1321 = vmul.u32.u64.compose %v1317, %v1312
    %v1322 = vextract.low.u32 %v1321
    %v1323 = vextract.high.u32 %v1321
    %v1324 = vmul.u32 %v1317, %v1308
    %v1325 = vadd.s32 %v1320, %v1322
    %vm1326 = vc.u32 %v1320, %v1322
    %v1327 = vadd.s32 %v1323, 1
    %v1328 = vsel %vm1326, %v1327, %v1323
    %v1329 = vadd.s32 %v1324, %v1328
    %v1330 = vadd.s32 %v1329, 536870912
    %v1331 = vshrl.u32 %v1330, 30
    %v1332 = vshll.u32 %v1331, 30
    %v1333 = vsub.s32 %v1329, %v1332
    %vm1334 = vcmp.lt.s32.totalorder %v1333, 0
    %v1335 = vsub.s32 0, %v1333
    %v1336 = vsel %vm1334, %v1335, %v1333
    %v1337 = vclz %v1336
    %v1338 = vsub.s32 %v1337, 2
    %vm1339 = vcmp.gt.s32.totalorder 0, %v1338
    %v1340 = vsel %vm1339, 0, %v1338
    %v1341 = vsub.s32 32, %v1340
    %v1342 = vshll.u32 %v1333, %v1340
    %v1343 = vshrl.u32 %v1325, %v1341
    %v1344 = vor.u32 %v1342, %v1343
    %v1345 = vsub.s32 4294967266, %v1340
    %v1346 = vadd.s32 %v1345, 127
    %v1347 = vshll.u32 %v1346, 23
    %v1348 = vor.u32 4788187, %v1347
    %v1349 = vand.u32 2147483647, %v1348
    %v1351 = vcvt.s32.f32 %v1344
    %v1352 = vmul.f32 %v1351, %v1349
    %v1353 = vxor.u32 %v1352, 2147483648
    %v1354 = vsel %vm1271, %v1353, %v1352
    %v1355 = vsub.s32 4, %v1331
    %v1356 = vsel %vm1271, %v1355, %v1331
    %v1357 = vsel %vm1270, %v213, %v1354
    %v1358 = vsel %vm1270, 0, %v1356
    %v1359 = vcosq.f32.pop %v1357
    %v1360 = vsinq.f32.pop %v1357
    %vm1361 = vweird.f32 %v213
    %v1362 = vadd.s32 %v1358, 3
    %v1363 = vand.u32 %v1362, 3
    %vm1364 = vcmp.lt.s32.totalorder %v1363, 2
    %vm1365 = vcmp.eq.s32.totalorder %v1363, 0
    %v1366 = vxor.u32 %v1360, 2147483648
    %v1367 = vsel %vm1365, %v1359, %v1366
    %vm1368 = vcmp.eq.s32.totalorder %v1363, 2
    %v1369 = vxor.u32 %v1359, 2147483648
    %v1370 = vsel %vm1368, %v1369, %v1360
    %v1371 = vsel %vm1364, %v1367, %v1370
    %v1372 = vsel %vm1361, nan, %v1371
    %v1373 = vand.u32 2147483647, %v215
    %vm1374 = vcmp.le.f32.partialorder %v1373, 0.7853982
    %vm1375 = vcmp.lt.s32.totalorder %v215, 0
    %v1376 = vand.u32 %v215, 2139095040
    %v1377 = vshrl.u32 %v1376, 23
    %v1378 = vsub.s32 %v1377, 127
    %v1379 = vand.u32 2147483647, %v215
    %v1380 = vand.u32 %v1379, 8388607
    %v1381 = vor.u32 %v1380, 8388608
    %v1382 = vsub.s32 0, %v1381
    %v1383 = vadd.s32 %v1378, 1
    %vm1384 = vcmp.gt.s32.totalorder %v1383, 0
    %v1385 = vsel %vm1384, %v1383, 0
    %v1386 = vshrl.u32 %v1385, 5
    %v1387 = vand.u32 %v1385, 31
    %v1388 = vsub.s32 32, %v1387
    %v1389 = vshrl.u32 683565275, %v1388
    %v1390 = vshll.u32 683565275, %v1387
    %v1391 = vshrl.u32 2475754826, %v1388
    %v1392 = vor.u32 %v1390, %v1391
    %v1393 = vshll.u32 2475754826, %v1387
    %v1394 = vshrl.u32 2131351028, %v1388
    %v1395 = vor.u32 %v1393, %v1394
    %v1396 = vshll.u32 2131351028, %v1387
    %v1397 = vshrl.u32 2102212464, %v1388
    %v1398 = vor.u32 %v1396, %v1397
    %v1399 = vshll.u32 2102212464, %v1387
    %v1400 = vshrl.u32 920167782, %v1388
    %v1401 = vor.u32 %v1399, %v1400
    %v1402 = vshll.u32 920167782, %v1387
    %v1403 = vshrl.u32 1326507024, %v1388
    %v1404 = vor.u32 %v1402, %v1403
    %vm1405 = vcmp.lt.s32.totalorder %v1386, 1
    %vm1406 = vcmp.lt.s32.totalorder %v1386, 2
    %vm1407 = vcmp.lt.s32.totalorder %v1386, 3
    %vm1408 = vcmp.lt.s32.totalorder %v1386, 4
    %v1409 = vsel %vm1405, %v1389, %v1392
    %v1410 = vsel %vm1408, %v1398, 2102212464
    %v1411 = vsel %vm1407, %v1395, %v1410
    %v1412 = vsel %vm1406, %v1409, %v1411
    %v1413 = vsel %vm1405, %v1392, %v1395
    %v1414 = vsel %vm1408, %v1401, 920167782
    %v1415 = vsel %vm1407, %v1398, %v1414
    %v1416 = vsel %vm1406, %v1413, %v1415
    %v1417 = vsel %vm1405, %v1395, %v1398
    %v1418 = vsel %vm1408, %v1404, 1326507024
    %v1419 = vsel %vm1407, %v1401, %v1418
    %v1420 = vsel %vm1406, %v1417, %v1419
    %v1421 = vshll.u32 %v1381, 8
    %v1422 = vmul.u32.u64.compose %v1421, %v1420
    %v1423 = vextract.low.u32 %v1422
    %v1424 = vextract.high.u32 %v1422
    %v1425 = vmul.u32.u64.compose %v1421, %v1416
    %v1426 = vextract.low.u32 %v1425
    %v1427 = vextract.high.u32 %v1425
    %v1428 = vmul.u32 %v1421, %v1412
    %v1429 = vadd.s32 %v1424, %v1426
    %vm1430 = vc.u32 %v1424, %v1426
    %v1431 = vadd.s32 %v1427, 1
    %v1432 = vsel %vm1430, %v1431, %v1427
    %v1433 = vadd.s32 %v1428, %v1432
    %v1434 = vadd.s32 %v1433, 536870912
    %v1435 = vshrl.u32 %v1434, 30
    %v1436 = vshll.u32 %v1435, 30
    %v1437 = vsub.s32 %v1433, %v1436
    %vm1438 = vcmp.lt.s32.totalorder %v1437, 0
    %v1439 = vsub.s32 0, %v1437
    %v1440 = vsel %vm1438, %v1439, %v1437
    %v1441 = vclz %v1440
    %v1442 = vsub.s32 %v1441, 2
    %vm1443 = vcmp.gt.s32.totalorder 0, %v1442
    %v1444 = vsel %vm1443, 0, %v1442
    %v1445 = vsub.s32 32, %v1444
    %v1446 = vshll.u32 %v1437, %v1444
    %v1447 = vshrl.u32 %v1429, %v1445
    %v1448 = vor.u32 %v1446, %v1447
    %v1449 = vsub.s32 4294967266, %v1444
    %v1450 = vadd.s32 %v1449, 127
    %v1451 = vshll.u32 %v1450, 23
    %v1452 = vor.u32 4788187, %v1451
    %v1453 = vand.u32 2147483647, %v1452
    %v1455 = vcvt.s32.f32 %v1448
    %v1456 = vmul.f32 %v1455, %v1453
    %v1457 = vxor.u32 %v1456, 2147483648
    %v1458 = vsel %vm1375, %v1457, %v1456
    %v1459 = vsub.s32 4, %v1435
    %v1460 = vsel %vm1375, %v1459, %v1435
    %v1461 = vsel %vm1374, %v215, %v1458
    %v1462 = vsel %vm1374, 0, %v1460
    %v1463 = vcosq.f32.pop %v1461
    %v1464 = vsinq.f32.pop %v1461
    %vm1465 = vweird.f32 %v215
    %v1466 = vadd.s32 %v1462, 3
    %v1467 = vand.u32 %v1466, 3
    %vm1468 = vcmp.lt.s32.totalorder %v1467, 2
    %vm1469 = vcmp.eq.s32.totalorder %v1467, 0
    %v1470 = vxor.u32 %v1464, 2147483648
    %v1471 = vsel %vm1469, %v1463, %v1470
    %vm1472 = vcmp.eq.s32.totalorder %v1467, 2
    %v1473 = vxor.u32 %v1463, 2147483648
    %v1474 = vsel %vm1472, %v1473, %v1464
    %v1475 = vsel %vm1468, %v1471, %v1474
    %v1476 = vsel %vm1465, nan, %v1475
    %v1477 = vand.u32 2147483647, %v219
    %vm1478 = vcmp.le.f32.partialorder %v1477, 0.7853982
    %vm1479 = vcmp.lt.s32.totalorder %v219, 0
    %v1480 = vand.u32 %v219, 2139095040
    %v1481 = vshrl.u32 %v1480, 23
    %v1482 = vsub.s32 %v1481, 127
    %v1483 = vand.u32 2147483647, %v219
    %v1484 = vand.u32 %v1483, 8388607
    %v1485 = vor.u32 %v1484, 8388608
    %v1486 = vsub.s32 0, %v1485
    %v1487 = vadd.s32 %v1482, 1
    %vm1488 = vcmp.gt.s32.totalorder %v1487, 0
    %v1489 = vsel %vm1488, %v1487, 0
    %v1490 = vshrl.u32 %v1489, 5
    %v1491 = vand.u32 %v1489, 31
    %v1492 = vsub.s32 32, %v1491
    %v1493 = vshrl.u32 683565275, %v1492
    %v1494 = vshll.u32 683565275, %v1491
    %v1495 = vshrl.u32 2475754826, %v1492
    %v1496 = vor.u32 %v1494, %v1495
    %v1497 = vshll.u32 2475754826, %v1491
    %v1498 = vshrl.u32 2131351028, %v1492
    %v1499 = vor.u32 %v1497, %v1498
    %v1500 = vshll.u32 2131351028, %v1491
    %v1501 = vshrl.u32 2102212464, %v1492
    %v1502 = vor.u32 %v1500, %v1501
    %v1503 = vshll.u32 2102212464, %v1491
    %v1504 = vshrl.u32 920167782, %v1492
    %v1505 = vor.u32 %v1503, %v1504
    %v1506 = vshll.u32 920167782, %v1491
    %v1507 = vshrl.u32 1326507024, %v1492
    %v1508 = vor.u32 %v1506, %v1507
    %vm1509 = vcmp.lt.s32.totalorder %v1490, 1
    %vm1510 = vcmp.lt.s32.totalorder %v1490, 2
    %vm1511 = vcmp.lt.s32.totalorder %v1490, 3
    %vm1512 = vcmp.lt.s32.totalorder %v1490, 4
    %v1513 = vsel %vm1509, %v1493, %v1496
    %v1514 = vsel %vm1512, %v1502, 2102212464
    %v1515 = vsel %vm1511, %v1499, %v1514
    %v1516 = vsel %vm1510, %v1513, %v1515
    %v1517 = vsel %vm1509, %v1496, %v1499
    %v1518 = vsel %vm1512, %v1505, 920167782
    %v1519 = vsel %vm1511, %v1502, %v1518
    %v1520 = vsel %vm1510, %v1517, %v1519
    %v1521 = vsel %vm1509, %v1499, %v1502
    %v1522 = vsel %vm1512, %v1508, 1326507024
    %v1523 = vsel %vm1511, %v1505, %v1522
    %v1524 = vsel %vm1510, %v1521, %v1523
    %v1525 = vshll.u32 %v1485, 8
    %v1526 = vmul.u32.u64.compose %v1525, %v1524
    %v1527 = vextract.low.u32 %v1526
    %v1528 = vextract.high.u32 %v1526
    %v1529 = vmul.u32.u64.compose %v1525, %v1520
    %v1530 = vextract.low.u32 %v1529
    %v1531 = vextract.high.u32 %v1529
    %v1532 = vmul.u32 %v1525, %v1516
    %v1533 = vadd.s32 %v1528, %v1530
    %vm1534 = vc.u32 %v1528, %v1530
    %v1535 = vadd.s32 %v1531, 1
    %v1536 = vsel %vm1534, %v1535, %v1531
    %v1537 = vadd.s32 %v1532, %v1536
    %v1538 = vadd.s32 %v1537, 536870912
    %v1539 = vshrl.u32 %v1538, 30
    %v1540 = vshll.u32 %v1539, 30
    %v1541 = vsub.s32 %v1537, %v1540
    %vm1542 = vcmp.lt.s32.totalorder %v1541, 0
    %v1543 = vsub.s32 0, %v1541
    %v1544 = vsel %vm1542, %v1543, %v1541
    %v1545 = vclz %v1544
    %v1546 = vsub.s32 %v1545, 2
    %vm1547 = vcmp.gt.s32.totalorder 0, %v1546
    %v1548 = vsel %vm1547, 0, %v1546
    %v1549 = vsub.s32 32, %v1548
    %v1550 = vshll.u32 %v1541, %v1548
    %v1551 = vshrl.u32 %v1533, %v1549
    %v1552 = vor.u32 %v1550, %v1551
    %v1553 = vsub.s32 4294967266, %v1548
    %v1554 = vadd.s32 %v1553, 127
    %v1555 = vshll.u32 %v1554, 23
    %v1556 = vor.u32 4788187, %v1555
    %v1557 = vand.u32 2147483647, %v1556
    %v1559 = vcvt.s32.f32 %v1552
    %v1560 = vmul.f32 %v1559, %v1557
    %v1561 = vxor.u32 %v1560, 2147483648
    %v1562 = vsel %vm1479, %v1561, %v1560
    %v1563 = vsub.s32 4, %v1539
    %v1564 = vsel %vm1479, %v1563, %v1539
    %v1565 = vsel %vm1478, %v219, %v1562
    %v1566 = vsel %vm1478, 0, %v1564
    %v1567 = vcosq.f32.pop %v1565
    %v1568 = vsinq.f32.pop %v1565
    %vm1569 = vweird.f32 %v219
    %v1570 = vadd.s32 %v1566, 3
    %v1571 = vand.u32 %v1570, 3
    %vm1572 = vcmp.lt.s32.totalorder %v1571, 2
    %vm1573 = vcmp.eq.s32.totalorder %v1571, 0
    %v1574 = vxor.u32 %v1568, 2147483648
    %v1575 = vsel %vm1573, %v1567, %v1574
    %vm1576 = vcmp.eq.s32.totalorder %v1571, 2
    %v1577 = vxor.u32 %v1567, 2147483648
    %v1578 = vsel %vm1576, %v1577, %v1568
    %v1579 = vsel %vm1572, %v1575, %v1578
    %v1580 = vsel %vm1569, nan, %v1579
    %v1581 = vand.u32 2147483647, %v221
    %vm1582 = vcmp.le.f32.partialorder %v1581, 0.7853982
    %vm1583 = vcmp.lt.s32.totalorder %v221, 0
    %v1584 = vand.u32 %v221, 2139095040
    %v1585 = vshrl.u32 %v1584, 23
    %v1586 = vsub.s32 %v1585, 127
    %v1587 = vand.u32 2147483647, %v221
    %v1588 = vand.u32 %v1587, 8388607
    %v1589 = vor.u32 %v1588, 8388608
    %v1590 = vsub.s32 0, %v1589
    %v1591 = vadd.s32 %v1586, 1
    %vm1592 = vcmp.gt.s32.totalorder %v1591, 0
    %v1593 = vsel %vm1592, %v1591, 0
    %v1594 = vshrl.u32 %v1593, 5
    %v1595 = vand.u32 %v1593, 31
    %v1596 = vsub.s32 32, %v1595
    %v1597 = vshrl.u32 683565275, %v1596
    %v1598 = vshll.u32 683565275, %v1595
    %v1599 = vshrl.u32 2475754826, %v1596
    %v1600 = vor.u32 %v1598, %v1599
    %v1601 = vshll.u32 2475754826, %v1595
    %v1602 = vshrl.u32 2131351028, %v1596
    %v1603 = vor.u32 %v1601, %v1602
    %v1604 = vshll.u32 2131351028, %v1595
    %v1605 = vshrl.u32 2102212464, %v1596
    %v1606 = vor.u32 %v1604, %v1605
    %v1607 = vshll.u32 2102212464, %v1595
    %v1608 = vshrl.u32 920167782, %v1596
    %v1609 = vor.u32 %v1607, %v1608
    %v1610 = vshll.u32 920167782, %v1595
    %v1611 = vshrl.u32 1326507024, %v1596
    %v1612 = vor.u32 %v1610, %v1611
    %vm1613 = vcmp.lt.s32.totalorder %v1594, 1
    %vm1614 = vcmp.lt.s32.totalorder %v1594, 2
    %vm1615 = vcmp.lt.s32.totalorder %v1594, 3
    %vm1616 = vcmp.lt.s32.totalorder %v1594, 4
    %v1617 = vsel %vm1613, %v1597, %v1600
    %v1618 = vsel %vm1616, %v1606, 2102212464
    %v1619 = vsel %vm1615, %v1603, %v1618
    %v1620 = vsel %vm1614, %v1617, %v1619
    %v1621 = vsel %vm1613, %v1600, %v1603
    %v1622 = vsel %vm1616, %v1609, 920167782
    %v1623 = vsel %vm1615, %v1606, %v1622
    %v1624 = vsel %vm1614, %v1621, %v1623
    %v1625 = vsel %vm1613, %v1603, %v1606
    %v1626 = vsel %vm1616, %v1612, 1326507024
    %v1627 = vsel %vm1615, %v1609, %v1626
    %v1628 = vsel %vm1614, %v1625, %v1627
    %v1629 = vshll.u32 %v1589, 8
    %v1630 = vmul.u32.u64.compose %v1629, %v1628
    %v1631 = vextract.low.u32 %v1630
    %v1632 = vextract.high.u32 %v1630
    %v1633 = vmul.u32.u64.compose %v1629, %v1624
    %v1634 = vextract.low.u32 %v1633
    %v1635 = vextract.high.u32 %v1633
    %v1636 = vmul.u32 %v1629, %v1620
    %v1637 = vadd.s32 %v1632, %v1634
    %vm1638 = vc.u32 %v1632, %v1634
    %v1639 = vadd.s32 %v1635, 1
    %v1640 = vsel %vm1638, %v1639, %v1635
    %v1641 = vadd.s32 %v1636, %v1640
    %v1642 = vadd.s32 %v1641, 536870912
    %v1643 = vshrl.u32 %v1642, 30
    %v1644 = vshll.u32 %v1643, 30
    %v1645 = vsub.s32 %v1641, %v1644
    %vm1646 = vcmp.lt.s32.totalorder %v1645, 0
    %v1647 = vsub.s32 0, %v1645
    %v1648 = vsel %vm1646, %v1647, %v1645
    %v1649 = vclz %v1648
    %v1650 = vsub.s32 %v1649, 2
    %vm1651 = vcmp.gt.s32.totalorder 0, %v1650
    %v1652 = vsel %vm1651, 0, %v1650
    %v1653 = vsub.s32 32, %v1652
    %v1654 = vshll.u32 %v1645, %v1652
    %v1655 = vshrl.u32 %v1637, %v1653
    %v1656 = vor.u32 %v1654, %v1655
    %v1657 = vsub.s32 4294967266, %v1652
    %v1658 = vadd.s32 %v1657, 127
    %v1659 = vshll.u32 %v1658, 23
    %v1660 = vor.u32 4788187, %v1659
    %v1661 = vand.u32 2147483647, %v1660
    %v1663 = vcvt.s32.f32 %v1656
    %v1664 = vmul.f32 %v1663, %v1661
    %v1665 = vxor.u32 %v1664, 2147483648
    %v1666 = vsel %vm1583, %v1665, %v1664
    %v1667 = vsub.s32 4, %v1643
    %v1668 = vsel %vm1583, %v1667, %v1643
    %v1669 = vsel %vm1582, %v221, %v1666
    %v1670 = vsel %vm1582, 0, %v1668
    %v1671 = vcosq.f32.pop %v1669
    %v1672 = vsinq.f32.pop %v1669
    %vm1673 = vweird.f32 %v221
    %v1674 = vadd.s32 %v1670, 3
    %v1675 = vand.u32 %v1674, 3
    %vm1676 = vcmp.lt.s32.totalorder %v1675, 2
    %vm1677 = vcmp.eq.s32.totalorder %v1675, 0
    %v1678 = vxor.u32 %v1672, 2147483648
    %v1679 = vsel %vm1677, %v1671, %v1678
    %vm1680 = vcmp.eq.s32.totalorder %v1675, 2
    %v1681 = vxor.u32 %v1671, 2147483648
    %v1682 = vsel %vm1680, %v1681, %v1672
    %v1683 = vsel %vm1676, %v1679, %v1682
    %v1684 = vsel %vm1673, nan, %v1683
    %v1685 = vand.u32 2147483647, %v225
    %vm1686 = vcmp.le.f32.partialorder %v1685, 0.7853982
    %vm1687 = vcmp.lt.s32.totalorder %v225, 0
    %v1688 = vand.u32 %v225, 2139095040
    %v1689 = vshrl.u32 %v1688, 23
    %v1690 = vsub.s32 %v1689, 127
    %v1691 = vand.u32 2147483647, %v225
    %v1692 = vand.u32 %v1691, 8388607
    %v1693 = vor.u32 %v1692, 8388608
    %v1694 = vsub.s32 0, %v1693
    %v1695 = vadd.s32 %v1690, 1
    %vm1696 = vcmp.gt.s32.totalorder %v1695, 0
    %v1697 = vsel %vm1696, %v1695, 0
    %v1698 = vshrl.u32 %v1697, 5
    %v1699 = vand.u32 %v1697, 31
    %v1700 = vsub.s32 32, %v1699
    %v1701 = vshrl.u32 683565275, %v1700
    %v1702 = vshll.u32 683565275, %v1699
    %v1703 = vshrl.u32 2475754826, %v1700
    %v1704 = vor.u32 %v1702, %v1703
    %v1705 = vshll.u32 2475754826, %v1699
    %v1706 = vshrl.u32 2131351028, %v1700
    %v1707 = vor.u32 %v1705, %v1706
    %v1708 = vshll.u32 2131351028, %v1699
    %v1709 = vshrl.u32 2102212464, %v1700
    %v1710 = vor.u32 %v1708, %v1709
    %v1711 = vshll.u32 2102212464, %v1699
    %v1712 = vshrl.u32 920167782, %v1700
    %v1713 = vor.u32 %v1711, %v1712
    %v1714 = vshll.u32 920167782, %v1699
    %v1715 = vshrl.u32 1326507024, %v1700
    %v1716 = vor.u32 %v1714, %v1715
    %vm1717 = vcmp.lt.s32.totalorder %v1698, 1
    %vm1718 = vcmp.lt.s32.totalorder %v1698, 2
    %vm1719 = vcmp.lt.s32.totalorder %v1698, 3
    %vm1720 = vcmp.lt.s32.totalorder %v1698, 4
    %v1721 = vsel %vm1717, %v1701, %v1704
    %v1722 = vsel %vm1720, %v1710, 2102212464
    %v1723 = vsel %vm1719, %v1707, %v1722
    %v1724 = vsel %vm1718, %v1721, %v1723
    %v1725 = vsel %vm1717, %v1704, %v1707
    %v1726 = vsel %vm1720, %v1713, 920167782
    %v1727 = vsel %vm1719, %v1710, %v1726
    %v1728 = vsel %vm1718, %v1725, %v1727
    %v1729 = vsel %vm1717, %v1707, %v1710
    %v1730 = vsel %vm1720, %v1716, 1326507024
    %v1731 = vsel %vm1719, %v1713, %v1730
    %v1732 = vsel %vm1718, %v1729, %v1731
    %v1733 = vshll.u32 %v1693, 8
    %v1734 = vmul.u32.u64.compose %v1733, %v1732
    %v1735 = vextract.low.u32 %v1734
    %v1736 = vextract.high.u32 %v1734
    %v1737 = vmul.u32.u64.compose %v1733, %v1728
    %v1738 = vextract.low.u32 %v1737
    %v1739 = vextract.high.u32 %v1737
    %v1740 = vmul.u32 %v1733, %v1724
    %v1741 = vadd.s32 %v1736, %v1738
    %vm1742 = vc.u32 %v1736, %v1738
    %v1743 = vadd.s32 %v1739, 1
    %v1744 = vsel %vm1742, %v1743, %v1739
    %v1745 = vadd.s32 %v1740, %v1744
    %v1746 = vadd.s32 %v1745, 536870912
    %v1747 = vshrl.u32 %v1746, 30
    %v1748 = vshll.u32 %v1747, 30
    %v1749 = vsub.s32 %v1745, %v1748
    %vm1750 = vcmp.lt.s32.totalorder %v1749, 0
    %v1751 = vsub.s32 0, %v1749
    %v1752 = vsel %vm1750, %v1751, %v1749
    %v1753 = vclz %v1752
    %v1754 = vsub.s32 %v1753, 2
    %vm1755 = vcmp.gt.s32.totalorder 0, %v1754
    %v1756 = vsel %vm1755, 0, %v1754
    %v1757 = vsub.s32 32, %v1756
    %v1758 = vshll.u32 %v1749, %v1756
    %v1759 = vshrl.u32 %v1741, %v1757
    %v1760 = vor.u32 %v1758, %v1759
    %v1761 = vsub.s32 4294967266, %v1756
    %v1762 = vadd.s32 %v1761, 127
    %v1763 = vshll.u32 %v1762, 23
    %v1764 = vor.u32 4788187, %v1763
    %v1765 = vand.u32 2147483647, %v1764
    %v1767 = vcvt.s32.f32 %v1760
    %v1768 = vmul.f32 %v1767, %v1765
    %v1769 = vxor.u32 %v1768, 2147483648
    %v1770 = vsel %vm1687, %v1769, %v1768
    %v1771 = vsub.s32 4, %v1747
    %v1772 = vsel %vm1687, %v1771, %v1747
    %v1773 = vsel %vm1686, %v225, %v1770
    %v1774 = vsel %vm1686, 0, %v1772
    %v1775 = vcosq.f32.pop %v1773
    %v1776 = vsinq.f32.pop %v1773
    %vm1777 = vweird.f32 %v225
    %v1778 = vadd.s32 %v1774, 3
    %v1779 = vand.u32 %v1778, 3
    %vm1780 = vcmp.lt.s32.totalorder %v1779, 2
    %vm1781 = vcmp.eq.s32.totalorder %v1779, 0
    %v1782 = vxor.u32 %v1776, 2147483648
    %v1783 = vsel %vm1781, %v1775, %v1782
    %vm1784 = vcmp.eq.s32.totalorder %v1779, 2
    %v1785 = vxor.u32 %v1775, 2147483648
    %v1786 = vsel %vm1784, %v1785, %v1776
    %v1787 = vsel %vm1780, %v1783, %v1786
    %v1788 = vsel %vm1777, nan, %v1787
    %v1789 = vand.u32 2147483647, %v227
    %vm1790 = vcmp.le.f32.partialorder %v1789, 0.7853982
    %vm1791 = vcmp.lt.s32.totalorder %v227, 0
    %v1792 = vand.u32 %v227, 2139095040
    %v1793 = vshrl.u32 %v1792, 23
    %v1794 = vsub.s32 %v1793, 127
    %v1795 = vand.u32 2147483647, %v227
    %v1796 = vand.u32 %v1795, 8388607
    %v1797 = vor.u32 %v1796, 8388608
    %v1798 = vsub.s32 0, %v1797
    %v1799 = vadd.s32 %v1794, 1
    %vm1800 = vcmp.gt.s32.totalorder %v1799, 0
    %v1801 = vsel %vm1800, %v1799, 0
    %v1802 = vshrl.u32 %v1801, 5
    %v1803 = vand.u32 %v1801, 31
    %v1804 = vsub.s32 32, %v1803
    %v1805 = vshrl.u32 683565275, %v1804
    %v1806 = vshll.u32 683565275, %v1803
    %v1807 = vshrl.u32 2475754826, %v1804
    %v1808 = vor.u32 %v1806, %v1807
    %v1809 = vshll.u32 2475754826, %v1803
    %v1810 = vshrl.u32 2131351028, %v1804
    %v1811 = vor.u32 %v1809, %v1810
    %v1812 = vshll.u32 2131351028, %v1803
    %v1813 = vshrl.u32 2102212464, %v1804
    %v1814 = vor.u32 %v1812, %v1813
    %v1815 = vshll.u32 2102212464, %v1803
    %v1816 = vshrl.u32 920167782, %v1804
    %v1817 = vor.u32 %v1815, %v1816
    %v1818 = vshll.u32 920167782, %v1803
    %v1819 = vshrl.u32 1326507024, %v1804
    %v1820 = vor.u32 %v1818, %v1819
    %vm1821 = vcmp.lt.s32.totalorder %v1802, 1
    %vm1822 = vcmp.lt.s32.totalorder %v1802, 2
    %vm1823 = vcmp.lt.s32.totalorder %v1802, 3
    %vm1824 = vcmp.lt.s32.totalorder %v1802, 4
    %v1825 = vsel %vm1821, %v1805, %v1808
    %v1826 = vsel %vm1824, %v1814, 2102212464
    %v1827 = vsel %vm1823, %v1811, %v1826
    %v1828 = vsel %vm1822, %v1825, %v1827
    %v1829 = vsel %vm1821, %v1808, %v1811
    %v1830 = vsel %vm1824, %v1817, 920167782
    %v1831 = vsel %vm1823, %v1814, %v1830
    %v1832 = vsel %vm1822, %v1829, %v1831
    %v1833 = vsel %vm1821, %v1811, %v1814
    %v1834 = vsel %vm1824, %v1820, 1326507024
    %v1835 = vsel %vm1823, %v1817, %v1834
    %v1836 = vsel %vm1822, %v1833, %v1835
    %v1837 = vshll.u32 %v1797, 8
    %v1838 = vmul.u32.u64.compose %v1837, %v1836
    %v1839 = vextract.low.u32 %v1838
    %v1840 = vextract.high.u32 %v1838
    %v1841 = vmul.u32.u64.compose %v1837, %v1832
    %v1842 = vextract.low.u32 %v1841
    %v1843 = vextract.high.u32 %v1841
    %v1844 = vmul.u32 %v1837, %v1828
    %v1845 = vadd.s32 %v1840, %v1842
    %vm1846 = vc.u32 %v1840, %v1842
    %v1847 = vadd.s32 %v1843, 1
    %v1848 = vsel %vm1846, %v1847, %v1843
    %v1849 = vadd.s32 %v1844, %v1848
    %v1850 = vadd.s32 %v1849, 536870912
    %v1851 = vshrl.u32 %v1850, 30
    %v1852 = vshll.u32 %v1851, 30
    %v1853 = vsub.s32 %v1849, %v1852
    %vm1854 = vcmp.lt.s32.totalorder %v1853, 0
    %v1855 = vsub.s32 0, %v1853
    %v1856 = vsel %vm1854, %v1855, %v1853
    %v1857 = vclz %v1856
    %v1858 = vsub.s32 %v1857, 2
    %vm1859 = vcmp.gt.s32.totalorder 0, %v1858
    %v1860 = vsel %vm1859, 0, %v1858
    %v1861 = vsub.s32 32, %v1860
    %v1862 = vshll.u32 %v1853, %v1860
    %v1863 = vshrl.u32 %v1845, %v1861
    %v1864 = vor.u32 %v1862, %v1863
    %v1865 = vsub.s32 4294967266, %v1860
    %v1866 = vadd.s32 %v1865, 127
    %v1867 = vshll.u32 %v1866, 23
    %v1868 = vor.u32 4788187, %v1867
    %v1869 = vand.u32 2147483647, %v1868
    %v1871 = vcvt.s32.f32 %v1864
    %v1872 = vmul.f32 %v1871, %v1869
    %v1873 = vxor.u32 %v1872, 2147483648
    %v1874 = vsel %vm1791, %v1873, %v1872
    %v1875 = vsub.s32 4, %v1851
    %v1876 = vsel %vm1791, %v1875, %v1851
    %v1877 = vsel %vm1790, %v227, %v1874
    %v1878 = vsel %vm1790, 0, %v1876
    %v1879 = vcosq.f32.pop %v1877
    %v1880 = vsinq.f32.pop %v1877
    %vm1881 = vweird.f32 %v227
    %v1882 = vadd.s32 %v1878, 3
    %v1883 = vand.u32 %v1882, 3
    %vm1884 = vcmp.lt.s32.totalorder %v1883, 2
    %vm1885 = vcmp.eq.s32.totalorder %v1883, 0
    %v1886 = vxor.u32 %v1880, 2147483648
    %v1887 = vsel %vm1885, %v1879, %v1886
    %vm1888 = vcmp.eq.s32.totalorder %v1883, 2
    %v1889 = vxor.u32 %v1879, 2147483648
    %v1890 = vsel %vm1888, %v1889, %v1880
    %v1891 = vsel %vm1884, %v1887, %v1890
    %v1892 = vsel %vm1881, nan, %v1891
    %v1893 = vld [vmem:[%s3] sm:$0xff]
    %v1894 = vld [vmem:[%s3 + $0x8] sm:$0xff]
    %v1895 = vld [vmem:[%s3 + $0x10] sm:$0xff]
    %v1896 = vld [vmem:[%s3 + $0x18] sm:$0xff]
    %v1897 = vld [vmem:[%s3 + $0x20] sm:$0xff]
    %v1898 = vld [vmem:[%s3 + $0x28] sm:$0xff]
    %v1899 = vld [vmem:[%s3 + $0x30] sm:$0xff]
    %v1900 = vld [vmem:[%s3 + $0x38] sm:$0xff]
    %v1901 = vld [vmem:[%s4] sm:$0xff]
    %v1902 = vld [vmem:[%s4 + $0x8] sm:$0xff]
    %v1903 = vld [vmem:[%s4 + $0x10] sm:$0xff]
    %v1904 = vld [vmem:[%s4 + $0x18] sm:$0xff]
    %v1905 = vld [vmem:[%s4 + $0x20] sm:$0xff]
    %v1906 = vld [vmem:[%s4 + $0x28] sm:$0xff]
    %v1907 = vld [vmem:[%s4 + $0x30] sm:$0xff]
    %v1908 = vld [vmem:[%s4 + $0x38] sm:$0xff]
    %1910 = vset.pattern.permute.xlu0 0
    %1911 = vperm.xlu0 %1910, %v1901
    %v1912 = vpop.permute.xlu0 %1911
    %1915 = vset.pattern.permute.xlu0 0
    %1916 = vperm.xlu0 %1915, %v1902
    %v1917 = vpop.permute.xlu0 %1916
    %1920 = vset.pattern.permute.xlu0 0
    %1921 = vperm.xlu0 %1920, %v1903
    %v1922 = vpop.permute.xlu0 %1921
    %1925 = vset.pattern.permute.xlu0 0
    %1926 = vperm.xlu0 %1925, %v1904
    %v1927 = vpop.permute.xlu0 %1926
    %1930 = vset.pattern.permute.xlu0 0
    %1931 = vperm.xlu0 %1930, %v1905
    %v1932 = vpop.permute.xlu0 %1931
    %1935 = vset.pattern.permute.xlu0 0
    %1936 = vperm.xlu0 %1935, %v1906
    %v1937 = vpop.permute.xlu0 %1936
    %1940 = vset.pattern.permute.xlu0 0
    %1941 = vperm.xlu0 %1940, %v1907
    %v1942 = vpop.permute.xlu0 %1941
    %1945 = vset.pattern.permute.xlu0 0
    %1946 = vperm.xlu0 %1945, %v1908
    %v1947 = vpop.permute.xlu0 %1946
    %vm1949 = vcmask 523264
    %v1951 = vsel %vm1949, %v1893, 0
    %v1954 = vsel %vm1949, %v1894, 0
    %v1957 = vsel %vm1949, %v1895, 0
    %v1960 = vsel %vm1949, %v1896, 0
    %v1963 = vsel %vm1949, %v1897, 0
    %v1966 = vsel %vm1949, %v1898, 0
    %v1969 = vsel %vm1949, %v1899, 0
    %v1972 = vsel %vm1949, %v1900, 0
    %1974 = vmatprep.subr.mxu0 %v436
    %1975 = vmatpush1.msra.mxu0 %v332
    %1976 = vmatprep.subr.mxu0 %v644
    %1977 = vmatpush1.msra.mxu0 %v540
    %1978 = vmatprep.subr.mxu0 %v852
    %1979 = vmatpush1.msra.mxu0 %v748
    %1980 = vmatprep.subr.mxu0 %v1060
    %1981 = vmatpush1.msra.mxu0 %v956
    %1982 = vmatprep.subr.mxu0 %v1268
    %1983 = vmatpush1.msra.mxu0 %v1164
    %1984 = vmatprep.subr.mxu0 %v1476
    %1985 = vmatpush1.msra.mxu0 %v1372
    %1986 = vmatprep.subr.mxu0 %v1684
    %1987 = vmatpush1.msra.mxu0 %v1580
    %1988 = vmatprep.subr.mxu0 %v1892
    %1989 = vmatpush1.msra.mxu0 %v1788
    %1990 = vmatprep.subr.mxu0 0.0
    %1991 = vmatpush1.msra.mxu0 0.0
    %1992 = vmatprep.subr.mxu0 0.0
    %1993 = vmatpush1.msra.mxu0 0.0
    %1994 = vmatprep.subr.mxu0 0.0
    %1995 = vmatpush1.msra.mxu0 0.0
    %1996 = vmatprep.subr.mxu0 0.0
    %1997 = vmatpush1.msra.mxu0 0.0
    %1998 = vmatprep.subr.mxu0 0.0
    %1999 = vmatpush1.msra.mxu0 0.0
    %2000 = vmatprep.subr.mxu0 0.0
    %2001 = vmatpush1.msra.mxu0 0.0
    %2002 = vmatprep.subr.mxu0 0.0
    %2003 = vmatpush1.msra.mxu0 0.0
    %2004 = vmatprep.subr.mxu0 0.0
    %2005 = vmatpush1.msra.mxu0 0.0
    %2006 = vmatprep.subr.mxu0 0.0
    %2007 = vmatpush1.msra.mxu0 0.0
    %2008 = vmatprep.subr.mxu0 0.0
    %2009 = vmatpush1.msra.mxu0 0.0
    %2010 = vmatprep.subr.mxu0 0.0
    %2011 = vmatpush1.msra.mxu0 0.0
    %2012 = vmatprep.subr.mxu0 0.0
    %2013 = vmatpush1.msra.mxu0 0.0
    %2014 = vmatprep.subr.mxu0 0.0
    %2015 = vmatpush1.msra.mxu0 0.0
    %2016 = vmatprep.subr.mxu0 0.0
    %2017 = vmatpush1.msra.mxu0 0.0
    %2018 = vmatprep.subr.mxu0 0.0
    %2019 = vmatpush1.msra.mxu0 0.0
    %2020 = vmatprep.subr.mxu0 0.0
    %2021 = vmatpush1.msra.mxu0 0.0
    %2022 = vmatprep.subr.mxu0 0.0
    %2023 = vmatpush1.msra.mxu0 0.0
    %2024 = vmatprep.subr.mxu0 0.0
    %2025 = vmatpush1.msra.mxu0 0.0
    %2026 = vmatprep.subr.mxu0 0.0
    %2027 = vmatpush1.msra.mxu0 0.0
    %2028 = vmatprep.subr.mxu0 0.0
    %2029 = vmatpush1.msra.mxu0 0.0
    %2030 = vmatprep.subr.mxu0 0.0
    %2031 = vmatpush1.msra.mxu0 0.0
    %2032 = vmatprep.subr.mxu0 0.0
    %2033 = vmatpush1.msra.mxu0 0.0
    %2034 = vmatprep.subr.mxu0 0.0
    %2035 = vmatpush1.msra.mxu0 0.0
    %2036 = vmatprep.subr.mxu0 0.0
    %2037 = vmatpush1.msra.mxu0 0.0
    %2038 = vmatprep.mubr.f32.mxu0 0.0
    %2039 = vmatmul.mubr.f32.gmra.mrb[0].mxu0 %v1951
    %v2040 = vpop.f32.mrb[0].mxu0
    %v2041 = vadd.f32 %v1912, %v2040
    %v2042 = vpop.f32.mrb[0].mxu0
    %v2043 = vadd.f32 %v1912, %v2042
    %2044 = vmatprep.mubr.f32.mxu0 0.0
    %2045 = vmatmul.mubr.f32.gmra.mrb[0].mxu0 %v1954
    %v2046 = vpop.f32.mrb[0].mxu0
    %v2047 = vadd.f32 %v1917, %v2046
    %v2048 = vpop.f32.mrb[0].mxu0
    %v2049 = vadd.f32 %v1917, %v2048
    %2050 = vmatprep.mubr.f32.mxu0 0.0
    %2051 = vmatmul.mubr.f32.gmra.mrb[0].mxu0 %v1957
    %v2052 = vpop.f32.mrb[0].mxu0
    %v2053 = vadd.f32 %v1922, %v2052
    %v2054 = vpop.f32.mrb[0].mxu0
    %v2055 = vadd.f32 %v1922, %v2054
    %2056 = vmatprep.mubr.f32.mxu0 0.0
    %2057 = vmatmul.mubr.f32.gmra.mrb[0].mxu0 %v1960
    %v2058 = vpop.f32.mrb[0].mxu0
    %v2059 = vadd.f32 %v1927, %v2058
    %v2060 = vpop.f32.mrb[0].mxu0
    %v2061 = vadd.f32 %v1927, %v2060
    %2062 = vmatprep.mubr.f32.mxu0 0.0
    %2063 = vmatmul.mubr.f32.gmra.mrb[0].mxu0 %v1963
    %v2064 = vpop.f32.mrb[0].mxu0
    %v2065 = vadd.f32 %v1932, %v2064
    %v2066 = vpop.f32.mrb[0].mxu0
    %v2067 = vadd.f32 %v1932, %v2066
    %2068 = vmatprep.mubr.f32.mxu0 0.0
    %2069 = vmatmul.mubr.f32.gmra.mrb[0].mxu0 %v1966
    %v2070 = vpop.f32.mrb[0].mxu0
    %v2071 = vadd.f32 %v1937, %v2070
    %v2072 = vpop.f32.mrb[0].mxu0
    %v2073 = vadd.f32 %v1937, %v2072
    %2074 = vmatprep.mubr.f32.mxu0 0.0
    %2075 = vmatmul.mubr.f32.gmra.mrb[0].mxu0 %v1969
    %v2076 = vpop.f32.mrb[0].mxu0
    %v2077 = vadd.f32 %v1942, %v2076
    %v2078 = vpop.f32.mrb[0].mxu0
    %v2079 = vadd.f32 %v1942, %v2078
    %2080 = vmatprep.mubr.f32.mxu0 0.0
    %2081 = vmatmul.mubr.f32.gmra.mrb[0].mxu0 %v1972
    %v2082 = vpop.f32.mrb[0].mxu0
    %v2083 = vadd.f32 %v1947, %v2082
    %v2084 = vpop.f32.mrb[0].mxu0
    %v2085 = vadd.f32 %v1947, %v2084
    %2086 = vdwg.mxu0
    %v2087 = vand.u32 2147483647, %v2041
    %vm2088 = vcmp.le.f32.partialorder %v2087, 0.7853982
    %vm2089 = vcmp.lt.s32.totalorder %v2041, 0
    %v2090 = vand.u32 %v2041, 2139095040
    %v2091 = vshrl.u32 %v2090, 23
    %v2092 = vsub.s32 %v2091, 127
    %v2093 = vand.u32 2147483647, %v2041
    %v2094 = vand.u32 %v2093, 8388607
    %v2095 = vor.u32 %v2094, 8388608
    %v2096 = vsub.s32 0, %v2095
    %v2097 = vadd.s32 %v2092, 1
    %vm2098 = vcmp.gt.s32.totalorder %v2097, 0
    %v2099 = vsel %vm2098, %v2097, 0
    %v2100 = vshrl.u32 %v2099, 5
    %v2101 = vand.u32 %v2099, 31
    %v2102 = vsub.s32 32, %v2101
    %v2103 = vshrl.u32 683565275, %v2102
    %v2104 = vshll.u32 683565275, %v2101
    %v2105 = vshrl.u32 2475754826, %v2102
    %v2106 = vor.u32 %v2104, %v2105
    %v2107 = vshll.u32 2475754826, %v2101
    %v2108 = vshrl.u32 2131351028, %v2102
    %v2109 = vor.u32 %v2107, %v2108
    %v2110 = vshll.u32 2131351028, %v2101
    %v2111 = vshrl.u32 2102212464, %v2102
    %v2112 = vor.u32 %v2110, %v2111
    %v2113 = vshll.u32 2102212464, %v2101
    %v2114 = vshrl.u32 920167782, %v2102
    %v2115 = vor.u32 %v2113, %v2114
    %v2116 = vshll.u32 920167782, %v2101
    %v2117 = vshrl.u32 1326507024, %v2102
    %v2118 = vor.u32 %v2116, %v2117
    %vm2119 = vcmp.lt.s32.totalorder %v2100, 1
    %vm2120 = vcmp.lt.s32.totalorder %v2100, 2
    %vm2121 = vcmp.lt.s32.totalorder %v2100, 3
    %vm2122 = vcmp.lt.s32.totalorder %v2100, 4
    %v2123 = vsel %vm2119, %v2103, %v2106
    %v2124 = vsel %vm2122, %v2112, 2102212464
    %v2125 = vsel %vm2121, %v2109, %v2124
    %v2126 = vsel %vm2120, %v2123, %v2125
    %v2127 = vsel %vm2119, %v2106, %v2109
    %v2128 = vsel %vm2122, %v2115, 920167782
    %v2129 = vsel %vm2121, %v2112, %v2128
    %v2130 = vsel %vm2120, %v2127, %v2129
    %v2131 = vsel %vm2119, %v2109, %v2112
    %v2132 = vsel %vm2122, %v2118, 1326507024
    %v2133 = vsel %vm2121, %v2115, %v2132
    %v2134 = vsel %vm2120, %v2131, %v2133
    %v2135 = vshll.u32 %v2095, 8
    %v2136 = vmul.u32.u64.compose %v2135, %v2134
    %v2137 = vextract.low.u32 %v2136
    %v2138 = vextract.high.u32 %v2136
    %v2139 = vmul.u32.u64.compose %v2135, %v2130
    %v2140 = vextract.low.u32 %v2139
    %v2141 = vextract.high.u32 %v2139
    %v2142 = vmul.u32 %v2135, %v2126
    %v2143 = vadd.s32 %v2138, %v2140
    %vm2144 = vc.u32 %v2138, %v2140
    %v2145 = vadd.s32 %v2141, 1
    %v2146 = vsel %vm2144, %v2145, %v2141
    %v2147 = vadd.s32 %v2142, %v2146
    %v2148 = vadd.s32 %v2147, 536870912
    %v2149 = vshrl.u32 %v2148, 30
    %v2150 = vshll.u32 %v2149, 30
    %v2151 = vsub.s32 %v2147, %v2150
    %vm2152 = vcmp.lt.s32.totalorder %v2151, 0
    %v2153 = vsub.s32 0, %v2151
    %v2154 = vsel %vm2152, %v2153, %v2151
    %v2155 = vclz %v2154
    %v2156 = vsub.s32 %v2155, 2
    %vm2157 = vcmp.gt.s32.totalorder 0, %v2156
    %v2158 = vsel %vm2157, 0, %v2156
    %v2159 = vsub.s32 32, %v2158
    %v2160 = vshll.u32 %v2151, %v2158
    %v2161 = vshrl.u32 %v2143, %v2159
    %v2162 = vor.u32 %v2160, %v2161
    %v2163 = vsub.s32 4294967266, %v2158
    %v2164 = vadd.s32 %v2163, 127
    %v2165 = vshll.u32 %v2164, 23
    %v2166 = vor.u32 4788187, %v2165
    %v2167 = vand.u32 2147483647, %v2166
    %v2169 = vcvt.s32.f32 %v2162
    %v2170 = vmul.f32 %v2169, %v2167
    %v2171 = vxor.u32 %v2170, 2147483648
    %v2172 = vsel %vm2089, %v2171, %v2170
    %v2173 = vsub.s32 4, %v2149
    %v2174 = vsel %vm2089, %v2173, %v2149
    %v2175 = vsel %vm2088, %v2041, %v2172
    %v2176 = vsel %vm2088, 0, %v2174
    %v2177 = vcosq.f32.pop %v2175
    %v2178 = vsinq.f32.pop %v2175
    %vm2179 = vweird.f32 %v2041
    %v2180 = vadd.s32 %v2176, 3
    %v2181 = vand.u32 %v2180, 3
    %vm2182 = vcmp.lt.s32.totalorder %v2181, 2
    %vm2183 = vcmp.eq.s32.totalorder %v2181, 0
    %v2184 = vxor.u32 %v2178, 2147483648
    %v2185 = vsel %vm2183, %v2177, %v2184
    %vm2186 = vcmp.eq.s32.totalorder %v2181, 2
    %v2187 = vxor.u32 %v2177, 2147483648
    %v2188 = vsel %vm2186, %v2187, %v2178
    %v2189 = vsel %vm2182, %v2185, %v2188
    %v2190 = vsel %vm2179, nan, %v2189
    %v2191 = vand.u32 2147483647, %v2043
    %vm2192 = vcmp.le.f32.partialorder %v2191, 0.7853982
    %vm2193 = vcmp.lt.s32.totalorder %v2043, 0
    %v2194 = vand.u32 %v2043, 2139095040
    %v2195 = vshrl.u32 %v2194, 23
    %v2196 = vsub.s32 %v2195, 127
    %v2197 = vand.u32 2147483647, %v2043
    %v2198 = vand.u32 %v2197, 8388607
    %v2199 = vor.u32 %v2198, 8388608
    %v2200 = vsub.s32 0, %v2199
    %v2201 = vadd.s32 %v2196, 1
    %vm2202 = vcmp.gt.s32.totalorder %v2201, 0
    %v2203 = vsel %vm2202, %v2201, 0
    %v2204 = vshrl.u32 %v2203, 5
    %v2205 = vand.u32 %v2203, 31
    %v2206 = vsub.s32 32, %v2205
    %v2207 = vshrl.u32 683565275, %v2206
    %v2208 = vshll.u32 683565275, %v2205
    %v2209 = vshrl.u32 2475754826, %v2206
    %v2210 = vor.u32 %v2208, %v2209
    %v2211 = vshll.u32 2475754826, %v2205
    %v2212 = vshrl.u32 2131351028, %v2206
    %v2213 = vor.u32 %v2211, %v2212
    %v2214 = vshll.u32 2131351028, %v2205
    %v2215 = vshrl.u32 2102212464, %v2206
    %v2216 = vor.u32 %v2214, %v2215
    %v2217 = vshll.u32 2102212464, %v2205
    %v2218 = vshrl.u32 920167782, %v2206
    %v2219 = vor.u32 %v2217, %v2218
    %v2220 = vshll.u32 920167782, %v2205
    %v2221 = vshrl.u32 1326507024, %v2206
    %v2222 = vor.u32 %v2220, %v2221
    %vm2223 = vcmp.lt.s32.totalorder %v2204, 1
    %vm2224 = vcmp.lt.s32.totalorder %v2204, 2
    %vm2225 = vcmp.lt.s32.totalorder %v2204, 3
    %vm2226 = vcmp.lt.s32.totalorder %v2204, 4
    %v2227 = vsel %vm2223, %v2207, %v2210
    %v2228 = vsel %vm2226, %v2216, 2102212464
    %v2229 = vsel %vm2225, %v2213, %v2228
    %v2230 = vsel %vm2224, %v2227, %v2229
    %v2231 = vsel %vm2223, %v2210, %v2213
    %v2232 = vsel %vm2226, %v2219, 920167782
    %v2233 = vsel %vm2225, %v2216, %v2232
    %v2234 = vsel %vm2224, %v2231, %v2233
    %v2235 = vsel %vm2223, %v2213, %v2216
    %v2236 = vsel %vm2226, %v2222, 1326507024
    %v2237 = vsel %vm2225, %v2219, %v2236
    %v2238 = vsel %vm2224, %v2235, %v2237
    %v2239 = vshll.u32 %v2199, 8
    %v2240 = vmul.u32.u64.compose %v2239, %v2238
    %v2241 = vextract.low.u32 %v2240
    %v2242 = vextract.high.u32 %v2240
    %v2243 = vmul.u32.u64.compose %v2239, %v2234
    %v2244 = vextract.low.u32 %v2243
    %v2245 = vextract.high.u32 %v2243
    %v2246 = vmul.u32 %v2239, %v2230
    %v2247 = vadd.s32 %v2242, %v2244
    %vm2248 = vc.u32 %v2242, %v2244
    %v2249 = vadd.s32 %v2245, 1
    %v2250 = vsel %vm2248, %v2249, %v2245
    %v2251 = vadd.s32 %v2246, %v2250
    %v2252 = vadd.s32 %v2251, 536870912
    %v2253 = vshrl.u32 %v2252, 30
    %v2254 = vshll.u32 %v2253, 30
    %v2255 = vsub.s32 %v2251, %v2254
    %vm2256 = vcmp.lt.s32.totalorder %v2255, 0
    %v2257 = vsub.s32 0, %v2255
    %v2258 = vsel %vm2256, %v2257, %v2255
    %v2259 = vclz %v2258
    %v2260 = vsub.s32 %v2259, 2
    %vm2261 = vcmp.gt.s32.totalorder 0, %v2260
    %v2262 = vsel %vm2261, 0, %v2260
    %v2263 = vsub.s32 32, %v2262
    %v2264 = vshll.u32 %v2255, %v2262
    %v2265 = vshrl.u32 %v2247, %v2263
    %v2266 = vor.u32 %v2264, %v2265
    %v2267 = vsub.s32 4294967266, %v2262
    %v2268 = vadd.s32 %v2267, 127
    %v2269 = vshll.u32 %v2268, 23
    %v2270 = vor.u32 4788187, %v2269
    %v2271 = vand.u32 2147483647, %v2270
    %v2273 = vcvt.s32.f32 %v2266
    %v2274 = vmul.f32 %v2273, %v2271
    %v2275 = vxor.u32 %v2274, 2147483648
    %v2276 = vsel %vm2193, %v2275, %v2274
    %v2277 = vsub.s32 4, %v2253
    %v2278 = vsel %vm2193, %v2277, %v2253
    %v2279 = vsel %vm2192, %v2043, %v2276
    %v2280 = vsel %vm2192, 0, %v2278
    %v2281 = vcosq.f32.pop %v2279
    %v2282 = vsinq.f32.pop %v2279
    %vm2283 = vweird.f32 %v2043
    %v2284 = vadd.s32 %v2280, 3
    %v2285 = vand.u32 %v2284, 3
    %vm2286 = vcmp.lt.s32.totalorder %v2285, 2
    %vm2287 = vcmp.eq.s32.totalorder %v2285, 0
    %v2288 = vxor.u32 %v2282, 2147483648
    %v2289 = vsel %vm2287, %v2281, %v2288
    %vm2290 = vcmp.eq.s32.totalorder %v2285, 2
    %v2291 = vxor.u32 %v2281, 2147483648
    %v2292 = vsel %vm2290, %v2291, %v2282
    %v2293 = vsel %vm2286, %v2289, %v2292
    %v2294 = vsel %vm2283, nan, %v2293
    %v2295 = vand.u32 2147483647, %v2047
    %vm2296 = vcmp.le.f32.partialorder %v2295, 0.7853982
    %vm2297 = vcmp.lt.s32.totalorder %v2047, 0
    %v2298 = vand.u32 %v2047, 2139095040
    %v2299 = vshrl.u32 %v2298, 23
    %v2300 = vsub.s32 %v2299, 127
    %v2301 = vand.u32 2147483647, %v2047
    %v2302 = vand.u32 %v2301, 8388607
    %v2303 = vor.u32 %v2302, 8388608
    %v2304 = vsub.s32 0, %v2303
    %v2305 = vadd.s32 %v2300, 1
    %vm2306 = vcmp.gt.s32.totalorder %v2305, 0
    %v2307 = vsel %vm2306, %v2305, 0
    %v2308 = vshrl.u32 %v2307, 5
    %v2309 = vand.u32 %v2307, 31
    %v2310 = vsub.s32 32, %v2309
    %v2311 = vshrl.u32 683565275, %v2310
    %v2312 = vshll.u32 683565275, %v2309
    %v2313 = vshrl.u32 2475754826, %v2310
    %v2314 = vor.u32 %v2312, %v2313
    %v2315 = vshll.u32 2475754826, %v2309
    %v2316 = vshrl.u32 2131351028, %v2310
    %v2317 = vor.u32 %v2315, %v2316
    %v2318 = vshll.u32 2131351028, %v2309
    %v2319 = vshrl.u32 2102212464, %v2310
    %v2320 = vor.u32 %v2318, %v2319
    %v2321 = vshll.u32 2102212464, %v2309
    %v2322 = vshrl.u32 920167782, %v2310
    %v2323 = vor.u32 %v2321, %v2322
    %v2324 = vshll.u32 920167782, %v2309
    %v2325 = vshrl.u32 1326507024, %v2310
    %v2326 = vor.u32 %v2324, %v2325
    %vm2327 = vcmp.lt.s32.totalorder %v2308, 1
    %vm2328 = vcmp.lt.s32.totalorder %v2308, 2
    %vm2329 = vcmp.lt.s32.totalorder %v2308, 3
    %vm2330 = vcmp.lt.s32.totalorder %v2308, 4
    %v2331 = vsel %vm2327, %v2311, %v2314
    %v2332 = vsel %vm2330, %v2320, 2102212464
    %v2333 = vsel %vm2329, %v2317, %v2332
    %v2334 = vsel %vm2328, %v2331, %v2333
    %v2335 = vsel %vm2327, %v2314, %v2317
    %v2336 = vsel %vm2330, %v2323, 920167782
    %v2337 = vsel %vm2329, %v2320, %v2336
    %v2338 = vsel %vm2328, %v2335, %v2337
    %v2339 = vsel %vm2327, %v2317, %v2320
    %v2340 = vsel %vm2330, %v2326, 1326507024
    %v2341 = vsel %vm2329, %v2323, %v2340
    %v2342 = vsel %vm2328, %v2339, %v2341
    %v2343 = vshll.u32 %v2303, 8
    %v2344 = vmul.u32.u64.compose %v2343, %v2342
    %v2345 = vextract.low.u32 %v2344
    %v2346 = vextract.high.u32 %v2344
    %v2347 = vmul.u32.u64.compose %v2343, %v2338
    %v2348 = vextract.low.u32 %v2347
    %v2349 = vextract.high.u32 %v2347
    %v2350 = vmul.u32 %v2343, %v2334
    %v2351 = vadd.s32 %v2346, %v2348
    %vm2352 = vc.u32 %v2346, %v2348
    %v2353 = vadd.s32 %v2349, 1
    %v2354 = vsel %vm2352, %v2353, %v2349
    %v2355 = vadd.s32 %v2350, %v2354
    %v2356 = vadd.s32 %v2355, 536870912
    %v2357 = vshrl.u32 %v2356, 30
    %v2358 = vshll.u32 %v2357, 30
    %v2359 = vsub.s32 %v2355, %v2358
    %vm2360 = vcmp.lt.s32.totalorder %v2359, 0
    %v2361 = vsub.s32 0, %v2359
    %v2362 = vsel %vm2360, %v2361, %v2359
    %v2363 = vclz %v2362
    %v2364 = vsub.s32 %v2363, 2
    %vm2365 = vcmp.gt.s32.totalorder 0, %v2364
    %v2366 = vsel %vm2365, 0, %v2364
    %v2367 = vsub.s32 32, %v2366
    %v2368 = vshll.u32 %v2359, %v2366
    %v2369 = vshrl.u32 %v2351, %v2367
    %v2370 = vor.u32 %v2368, %v2369
    %v2371 = vsub.s32 4294967266, %v2366
    %v2372 = vadd.s32 %v2371, 127
    %v2373 = vshll.u32 %v2372, 23
    %v2374 = vor.u32 4788187, %v2373
    %v2375 = vand.u32 2147483647, %v2374
    %v2377 = vcvt.s32.f32 %v2370
    %v2378 = vmul.f32 %v2377, %v2375
    %v2379 = vxor.u32 %v2378, 2147483648
    %v2380 = vsel %vm2297, %v2379, %v2378
    %v2381 = vsub.s32 4, %v2357
    %v2382 = vsel %vm2297, %v2381, %v2357
    %v2383 = vsel %vm2296, %v2047, %v2380
    %v2384 = vsel %vm2296, 0, %v2382
    %v2385 = vcosq.f32.pop %v2383
    %v2386 = vsinq.f32.pop %v2383
    %vm2387 = vweird.f32 %v2047
    %v2388 = vadd.s32 %v2384, 3
    %v2389 = vand.u32 %v2388, 3
    %vm2390 = vcmp.lt.s32.totalorder %v2389, 2
    %vm2391 = vcmp.eq.s32.totalorder %v2389, 0
    %v2392 = vxor.u32 %v2386, 2147483648
    %v2393 = vsel %vm2391, %v2385, %v2392
    %vm2394 = vcmp.eq.s32.totalorder %v2389, 2
    %v2395 = vxor.u32 %v2385, 2147483648
    %v2396 = vsel %vm2394, %v2395, %v2386
    %v2397 = vsel %vm2390, %v2393, %v2396
    %v2398 = vsel %vm2387, nan, %v2397
    %v2399 = vand.u32 2147483647, %v2049
    %vm2400 = vcmp.le.f32.partialorder %v2399, 0.7853982
    %vm2401 = vcmp.lt.s32.totalorder %v2049, 0
    %v2402 = vand.u32 %v2049, 2139095040
    %v2403 = vshrl.u32 %v2402, 23
    %v2404 = vsub.s32 %v2403, 127
    %v2405 = vand.u32 2147483647, %v2049
    %v2406 = vand.u32 %v2405, 8388607
    %v2407 = vor.u32 %v2406, 8388608
    %v2408 = vsub.s32 0, %v2407
    %v2409 = vadd.s32 %v2404, 1
    %vm2410 = vcmp.gt.s32.totalorder %v2409, 0
    %v2411 = vsel %vm2410, %v2409, 0
    %v2412 = vshrl.u32 %v2411, 5
    %v2413 = vand.u32 %v2411, 31
    %v2414 = vsub.s32 32, %v2413
    %v2415 = vshrl.u32 683565275, %v2414
    %v2416 = vshll.u32 683565275, %v2413
    %v2417 = vshrl.u32 2475754826, %v2414
    %v2418 = vor.u32 %v2416, %v2417
    %v2419 = vshll.u32 2475754826, %v2413
    %v2420 = vshrl.u32 2131351028, %v2414
    %v2421 = vor.u32 %v2419, %v2420
    %v2422 = vshll.u32 2131351028, %v2413
    %v2423 = vshrl.u32 2102212464, %v2414
    %v2424 = vor.u32 %v2422, %v2423
    %v2425 = vshll.u32 2102212464, %v2413
    %v2426 = vshrl.u32 920167782, %v2414
    %v2427 = vor.u32 %v2425, %v2426
    %v2428 = vshll.u32 920167782, %v2413
    %v2429 = vshrl.u32 1326507024, %v2414
    %v2430 = vor.u32 %v2428, %v2429
    %vm2431 = vcmp.lt.s32.totalorder %v2412, 1
    %vm2432 = vcmp.lt.s32.totalorder %v2412, 2
    %vm2433 = vcmp.lt.s32.totalorder %v2412, 3
    %vm2434 = vcmp.lt.s32.totalorder %v2412, 4
    %v2435 = vsel %vm2431, %v2415, %v2418
    %v2436 = vsel %vm2434, %v2424, 2102212464
    %v2437 = vsel %vm2433, %v2421, %v2436
    %v2438 = vsel %vm2432, %v2435, %v2437
    %v2439 = vsel %vm2431, %v2418, %v2421
    %v2440 = vsel %vm2434, %v2427, 920167782
    %v2441 = vsel %vm2433, %v2424, %v2440
    %v2442 = vsel %vm2432, %v2439, %v2441
    %v2443 = vsel %vm2431, %v2421, %v2424
    %v2444 = vsel %vm2434, %v2430, 1326507024
    %v2445 = vsel %vm2433, %v2427, %v2444
    %v2446 = vsel %vm2432, %v2443, %v2445
    %v2447 = vshll.u32 %v2407, 8
    %v2448 = vmul.u32.u64.compose %v2447, %v2446
    %v2449 = vextract.low.u32 %v2448
    %v2450 = vextract.high.u32 %v2448
    %v2451 = vmul.u32.u64.compose %v2447, %v2442
    %v2452 = vextract.low.u32 %v2451
    %v2453 = vextract.high.u32 %v2451
    %v2454 = vmul.u32 %v2447, %v2438
    %v2455 = vadd.s32 %v2450, %v2452
    %vm2456 = vc.u32 %v2450, %v2452
    %v2457 = vadd.s32 %v2453, 1
    %v2458 = vsel %vm2456, %v2457, %v2453
    %v2459 = vadd.s32 %v2454, %v2458
    %v2460 = vadd.s32 %v2459, 536870912
    %v2461 = vshrl.u32 %v2460, 30
    %v2462 = vshll.u32 %v2461, 30
    %v2463 = vsub.s32 %v2459, %v2462
    %vm2464 = vcmp.lt.s32.totalorder %v2463, 0
    %v2465 = vsub.s32 0, %v2463
    %v2466 = vsel %vm2464, %v2465, %v2463
    %v2467 = vclz %v2466
    %v2468 = vsub.s32 %v2467, 2
    %vm2469 = vcmp.gt.s32.totalorder 0, %v2468
    %v2470 = vsel %vm2469, 0, %v2468
    %v2471 = vsub.s32 32, %v2470
    %v2472 = vshll.u32 %v2463, %v2470
    %v2473 = vshrl.u32 %v2455, %v2471
    %v2474 = vor.u32 %v2472, %v2473
    %v2475 = vsub.s32 4294967266, %v2470
    %v2476 = vadd.s32 %v2475, 127
    %v2477 = vshll.u32 %v2476, 23
    %v2478 = vor.u32 4788187, %v2477
    %v2479 = vand.u32 2147483647, %v2478
    %v2481 = vcvt.s32.f32 %v2474
    %v2482 = vmul.f32 %v2481, %v2479
    %v2483 = vxor.u32 %v2482, 2147483648
    %v2484 = vsel %vm2401, %v2483, %v2482
    %v2485 = vsub.s32 4, %v2461
    %v2486 = vsel %vm2401, %v2485, %v2461
    %v2487 = vsel %vm2400, %v2049, %v2484
    %v2488 = vsel %vm2400, 0, %v2486
    %v2489 = vcosq.f32.pop %v2487
    %v2490 = vsinq.f32.pop %v2487
    %vm2491 = vweird.f32 %v2049
    %v2492 = vadd.s32 %v2488, 3
    %v2493 = vand.u32 %v2492, 3
    %vm2494 = vcmp.lt.s32.totalorder %v2493, 2
    %vm2495 = vcmp.eq.s32.totalorder %v2493, 0
    %v2496 = vxor.u32 %v2490, 2147483648
    %v2497 = vsel %vm2495, %v2489, %v2496
    %vm2498 = vcmp.eq.s32.totalorder %v2493, 2
    %v2499 = vxor.u32 %v2489, 2147483648
    %v2500 = vsel %vm2498, %v2499, %v2490
    %v2501 = vsel %vm2494, %v2497, %v2500
    %v2502 = vsel %vm2491, nan, %v2501
    %v2503 = vand.u32 2147483647, %v2053
    %vm2504 = vcmp.le.f32.partialorder %v2503, 0.7853982
    %vm2505 = vcmp.lt.s32.totalorder %v2053, 0
    %v2506 = vand.u32 %v2053, 2139095040
    %v2507 = vshrl.u32 %v2506, 23
    %v2508 = vsub.s32 %v2507, 127
    %v2509 = vand.u32 2147483647, %v2053
    %v2510 = vand.u32 %v2509, 8388607
    %v2511 = vor.u32 %v2510, 8388608
    %v2512 = vsub.s32 0, %v2511
    %v2513 = vadd.s32 %v2508, 1
    %vm2514 = vcmp.gt.s32.totalorder %v2513, 0
    %v2515 = vsel %vm2514, %v2513, 0
    %v2516 = vshrl.u32 %v2515, 5
    %v2517 = vand.u32 %v2515, 31
    %v2518 = vsub.s32 32, %v2517
    %v2519 = vshrl.u32 683565275, %v2518
    %v2520 = vshll.u32 683565275, %v2517
    %v2521 = vshrl.u32 2475754826, %v2518
    %v2522 = vor.u32 %v2520, %v2521
    %v2523 = vshll.u32 2475754826, %v2517
    %v2524 = vshrl.u32 2131351028, %v2518
    %v2525 = vor.u32 %v2523, %v2524
    %v2526 = vshll.u32 2131351028, %v2517
    %v2527 = vshrl.u32 2102212464, %v2518
    %v2528 = vor.u32 %v2526, %v2527
    %v2529 = vshll.u32 2102212464, %v2517
    %v2530 = vshrl.u32 920167782, %v2518
    %v2531 = vor.u32 %v2529, %v2530
    %v2532 = vshll.u32 920167782, %v2517
    %v2533 = vshrl.u32 1326507024, %v2518
    %v2534 = vor.u32 %v2532, %v2533
    %vm2535 = vcmp.lt.s32.totalorder %v2516, 1
    %vm2536 = vcmp.lt.s32.totalorder %v2516, 2
    %vm2537 = vcmp.lt.s32.totalorder %v2516, 3
    %vm2538 = vcmp.lt.s32.totalorder %v2516, 4
    %v2539 = vsel %vm2535, %v2519, %v2522
    %v2540 = vsel %vm2538, %v2528, 2102212464
    %v2541 = vsel %vm2537, %v2525, %v2540
    %v2542 = vsel %vm2536, %v2539, %v2541
    %v2543 = vsel %vm2535, %v2522, %v2525
    %v2544 = vsel %vm2538, %v2531, 920167782
    %v2545 = vsel %vm2537, %v2528, %v2544
    %v2546 = vsel %vm2536, %v2543, %v2545
    %v2547 = vsel %vm2535, %v2525, %v2528
    %v2548 = vsel %vm2538, %v2534, 1326507024
    %v2549 = vsel %vm2537, %v2531, %v2548
    %v2550 = vsel %vm2536, %v2547, %v2549
    %v2551 = vshll.u32 %v2511, 8
    %v2552 = vmul.u32.u64.compose %v2551, %v2550
    %v2553 = vextract.low.u32 %v2552
    %v2554 = vextract.high.u32 %v2552
    %v2555 = vmul.u32.u64.compose %v2551, %v2546
    %v2556 = vextract.low.u32 %v2555
    %v2557 = vextract.high.u32 %v2555
    %v2558 = vmul.u32 %v2551, %v2542
    %v2559 = vadd.s32 %v2554, %v2556
    %vm2560 = vc.u32 %v2554, %v2556
    %v2561 = vadd.s32 %v2557, 1
    %v2562 = vsel %vm2560, %v2561, %v2557
    %v2563 = vadd.s32 %v2558, %v2562
    %v2564 = vadd.s32 %v2563, 536870912
    %v2565 = vshrl.u32 %v2564, 30
    %v2566 = vshll.u32 %v2565, 30
    %v2567 = vsub.s32 %v2563, %v2566
    %vm2568 = vcmp.lt.s32.totalorder %v2567, 0
    %v2569 = vsub.s32 0, %v2567
    %v2570 = vsel %vm2568, %v2569, %v2567
    %v2571 = vclz %v2570
    %v2572 = vsub.s32 %v2571, 2
    %vm2573 = vcmp.gt.s32.totalorder 0, %v2572
    %v2574 = vsel %vm2573, 0, %v2572
    %v2575 = vsub.s32 32, %v2574
    %v2576 = vshll.u32 %v2567, %v2574
    %v2577 = vshrl.u32 %v2559, %v2575
    %v2578 = vor.u32 %v2576, %v2577
    %v2579 = vsub.s32 4294967266, %v2574
    %v2580 = vadd.s32 %v2579, 127
    %v2581 = vshll.u32 %v2580, 23
    %v2582 = vor.u32 4788187, %v2581
    %v2583 = vand.u32 2147483647, %v2582
    %v2585 = vcvt.s32.f32 %v2578
    %v2586 = vmul.f32 %v2585, %v2583
    %v2587 = vxor.u32 %v2586, 2147483648
    %v2588 = vsel %vm2505, %v2587, %v2586
    %v2589 = vsub.s32 4, %v2565
    %v2590 = vsel %vm2505, %v2589, %v2565
    %v2591 = vsel %vm2504, %v2053, %v2588
    %v2592 = vsel %vm2504, 0, %v2590
    %v2593 = vcosq.f32.pop %v2591
    %v2594 = vsinq.f32.pop %v2591
    %vm2595 = vweird.f32 %v2053
    %v2596 = vadd.s32 %v2592, 3
    %v2597 = vand.u32 %v2596, 3
    %vm2598 = vcmp.lt.s32.totalorder %v2597, 2
    %vm2599 = vcmp.eq.s32.totalorder %v2597, 0
    %v2600 = vxor.u32 %v2594, 2147483648
    %v2601 = vsel %vm2599, %v2593, %v2600
    %vm2602 = vcmp.eq.s32.totalorder %v2597, 2
    %v2603 = vxor.u32 %v2593, 2147483648
    %v2604 = vsel %vm2602, %v2603, %v2594
    %v2605 = vsel %vm2598, %v2601, %v2604
    %v2606 = vsel %vm2595, nan, %v2605
    %v2607 = vand.u32 2147483647, %v2055
    %vm2608 = vcmp.le.f32.partialorder %v2607, 0.7853982
    %vm2609 = vcmp.lt.s32.totalorder %v2055, 0
    %v2610 = vand.u32 %v2055, 2139095040
    %v2611 = vshrl.u32 %v2610, 23
    %v2612 = vsub.s32 %v2611, 127
    %v2613 = vand.u32 2147483647, %v2055
    %v2614 = vand.u32 %v2613, 8388607
    %v2615 = vor.u32 %v2614, 8388608
    %v2616 = vsub.s32 0, %v2615
    %v2617 = vadd.s32 %v2612, 1
    %vm2618 = vcmp.gt.s32.totalorder %v2617, 0
    %v2619 = vsel %vm2618, %v2617, 0
    %v2620 = vshrl.u32 %v2619, 5
    %v2621 = vand.u32 %v2619, 31
    %v2622 = vsub.s32 32, %v2621
    %v2623 = vshrl.u32 683565275, %v2622
    %v2624 = vshll.u32 683565275, %v2621
    %v2625 = vshrl.u32 2475754826, %v2622
    %v2626 = vor.u32 %v2624, %v2625
    %v2627 = vshll.u32 2475754826, %v2621
    %v2628 = vshrl.u32 2131351028, %v2622
    %v2629 = vor.u32 %v2627, %v2628
    %v2630 = vshll.u32 2131351028, %v2621
    %v2631 = vshrl.u32 2102212464, %v2622
    %v2632 = vor.u32 %v2630, %v2631
    %v2633 = vshll.u32 2102212464, %v2621
    %v2634 = vshrl.u32 920167782, %v2622
    %v2635 = vor.u32 %v2633, %v2634
    %v2636 = vshll.u32 920167782, %v2621
    %v2637 = vshrl.u32 1326507024, %v2622
    %v2638 = vor.u32 %v2636, %v2637
    %vm2639 = vcmp.lt.s32.totalorder %v2620, 1
    %vm2640 = vcmp.lt.s32.totalorder %v2620, 2
    %vm2641 = vcmp.lt.s32.totalorder %v2620, 3
    %vm2642 = vcmp.lt.s32.totalorder %v2620, 4
    %v2643 = vsel %vm2639, %v2623, %v2626
    %v2644 = vsel %vm2642, %v2632, 2102212464
    %v2645 = vsel %vm2641, %v2629, %v2644
    %v2646 = vsel %vm2640, %v2643, %v2645
    %v2647 = vsel %vm2639, %v2626, %v2629
    %v2648 = vsel %vm2642, %v2635, 920167782
    %v2649 = vsel %vm2641, %v2632, %v2648
    %v2650 = vsel %vm2640, %v2647, %v2649
    %v2651 = vsel %vm2639, %v2629, %v2632
    %v2652 = vsel %vm2642, %v2638, 1326507024
    %v2653 = vsel %vm2641, %v2635, %v2652
    %v2654 = vsel %vm2640, %v2651, %v2653
    %v2655 = vshll.u32 %v2615, 8
    %v2656 = vmul.u32.u64.compose %v2655, %v2654
    %v2657 = vextract.low.u32 %v2656
    %v2658 = vextract.high.u32 %v2656
    %v2659 = vmul.u32.u64.compose %v2655, %v2650
    %v2660 = vextract.low.u32 %v2659
    %v2661 = vextract.high.u32 %v2659
    %v2662 = vmul.u32 %v2655, %v2646
    %v2663 = vadd.s32 %v2658, %v2660
    %vm2664 = vc.u32 %v2658, %v2660
    %v2665 = vadd.s32 %v2661, 1
    %v2666 = vsel %vm2664, %v2665, %v2661
    %v2667 = vadd.s32 %v2662, %v2666
    %v2668 = vadd.s32 %v2667, 536870912
    %v2669 = vshrl.u32 %v2668, 30
    %v2670 = vshll.u32 %v2669, 30
    %v2671 = vsub.s32 %v2667, %v2670
    %vm2672 = vcmp.lt.s32.totalorder %v2671, 0
    %v2673 = vsub.s32 0, %v2671
    %v2674 = vsel %vm2672, %v2673, %v2671
    %v2675 = vclz %v2674
    %v2676 = vsub.s32 %v2675, 2
    %vm2677 = vcmp.gt.s32.totalorder 0, %v2676
    %v2678 = vsel %vm2677, 0, %v2676
    %v2679 = vsub.s32 32, %v2678
    %v2680 = vshll.u32 %v2671, %v2678
    %v2681 = vshrl.u32 %v2663, %v2679
    %v2682 = vor.u32 %v2680, %v2681
    %v2683 = vsub.s32 4294967266, %v2678
    %v2684 = vadd.s32 %v2683, 127
    %v2685 = vshll.u32 %v2684, 23
    %v2686 = vor.u32 4788187, %v2685
    %v2687 = vand.u32 2147483647, %v2686
    %v2689 = vcvt.s32.f32 %v2682
    %v2690 = vmul.f32 %v2689, %v2687
    %v2691 = vxor.u32 %v2690, 2147483648
    %v2692 = vsel %vm2609, %v2691, %v2690
    %v2693 = vsub.s32 4, %v2669
    %v2694 = vsel %vm2609, %v2693, %v2669
    %v2695 = vsel %vm2608, %v2055, %v2692
    %v2696 = vsel %vm2608, 0, %v2694
    %v2697 = vcosq.f32.pop %v2695
    %v2698 = vsinq.f32.pop %v2695
    %vm2699 = vweird.f32 %v2055
    %v2700 = vadd.s32 %v2696, 3
    %v2701 = vand.u32 %v2700, 3
    %vm2702 = vcmp.lt.s32.totalorder %v2701, 2
    %vm2703 = vcmp.eq.s32.totalorder %v2701, 0
    %v2704 = vxor.u32 %v2698, 2147483648
    %v2705 = vsel %vm2703, %v2697, %v2704
    %vm2706 = vcmp.eq.s32.totalorder %v2701, 2
    %v2707 = vxor.u32 %v2697, 2147483648
    %v2708 = vsel %vm2706, %v2707, %v2698
    %v2709 = vsel %vm2702, %v2705, %v2708
    %v2710 = vsel %vm2699, nan, %v2709
    %v2711 = vand.u32 2147483647, %v2059
    %vm2712 = vcmp.le.f32.partialorder %v2711, 0.7853982
    %vm2713 = vcmp.lt.s32.totalorder %v2059, 0
    %v2714 = vand.u32 %v2059, 2139095040
    %v2715 = vshrl.u32 %v2714, 23
    %v2716 = vsub.s32 %v2715, 127
    %v2717 = vand.u32 2147483647, %v2059
    %v2718 = vand.u32 %v2717, 8388607
    %v2719 = vor.u32 %v2718, 8388608
    %v2720 = vsub.s32 0, %v2719
    %v2721 = vadd.s32 %v2716, 1
    %vm2722 = vcmp.gt.s32.totalorder %v2721, 0
    %v2723 = vsel %vm2722, %v2721, 0
    %v2724 = vshrl.u32 %v2723, 5
    %v2725 = vand.u32 %v2723, 31
    %v2726 = vsub.s32 32, %v2725
    %v2727 = vshrl.u32 683565275, %v2726
    %v2728 = vshll.u32 683565275, %v2725
    %v2729 = vshrl.u32 2475754826, %v2726
    %v2730 = vor.u32 %v2728, %v2729
    %v2731 = vshll.u32 2475754826, %v2725
    %v2732 = vshrl.u32 2131351028, %v2726
    %v2733 = vor.u32 %v2731, %v2732
    %v2734 = vshll.u32 2131351028, %v2725
    %v2735 = vshrl.u32 2102212464, %v2726
    %v2736 = vor.u32 %v2734, %v2735
    %v2737 = vshll.u32 2102212464, %v2725
    %v2738 = vshrl.u32 920167782, %v2726
    %v2739 = vor.u32 %v2737, %v2738
    %v2740 = vshll.u32 920167782, %v2725
    %v2741 = vshrl.u32 1326507024, %v2726
    %v2742 = vor.u32 %v2740, %v2741
    %vm2743 = vcmp.lt.s32.totalorder %v2724, 1
    %vm2744 = vcmp.lt.s32.totalorder %v2724, 2
    %vm2745 = vcmp.lt.s32.totalorder %v2724, 3
    %vm2746 = vcmp.lt.s32.totalorder %v2724, 4
    %v2747 = vsel %vm2743, %v2727, %v2730
    %v2748 = vsel %vm2746, %v2736, 2102212464
    %v2749 = vsel %vm2745, %v2733, %v2748
    %v2750 = vsel %vm2744, %v2747, %v2749
    %v2751 = vsel %vm2743, %v2730, %v2733
    %v2752 = vsel %vm2746, %v2739, 920167782
    %v2753 = vsel %vm2745, %v2736, %v2752
    %v2754 = vsel %vm2744, %v2751, %v2753
    %v2755 = vsel %vm2743, %v2733, %v2736
    %v2756 = vsel %vm2746, %v2742, 1326507024
    %v2757 = vsel %vm2745, %v2739, %v2756
    %v2758 = vsel %vm2744, %v2755, %v2757
    %v2759 = vshll.u32 %v2719, 8
    %v2760 = vmul.u32.u64.compose %v2759, %v2758
    %v2761 = vextract.low.u32 %v2760
    %v2762 = vextract.high.u32 %v2760
    %v2763 = vmul.u32.u64.compose %v2759, %v2754
    %v2764 = vextract.low.u32 %v2763
    %v2765 = vextract.high.u32 %v2763
    %v2766 = vmul.u32 %v2759, %v2750
    %v2767 = vadd.s32 %v2762, %v2764
    %vm2768 = vc.u32 %v2762, %v2764
    %v2769 = vadd.s32 %v2765, 1
    %v2770 = vsel %vm2768, %v2769, %v2765
    %v2771 = vadd.s32 %v2766, %v2770
    %v2772 = vadd.s32 %v2771, 536870912
    %v2773 = vshrl.u32 %v2772, 30
    %v2774 = vshll.u32 %v2773, 30
    %v2775 = vsub.s32 %v2771, %v2774
    %vm2776 = vcmp.lt.s32.totalorder %v2775, 0
    %v2777 = vsub.s32 0, %v2775
    %v2778 = vsel %vm2776, %v2777, %v2775
    %v2779 = vclz %v2778
    %v2780 = vsub.s32 %v2779, 2
    %vm2781 = vcmp.gt.s32.totalorder 0, %v2780
    %v2782 = vsel %vm2781, 0, %v2780
    %v2783 = vsub.s32 32, %v2782
    %v2784 = vshll.u32 %v2775, %v2782
    %v2785 = vshrl.u32 %v2767, %v2783
    %v2786 = vor.u32 %v2784, %v2785
    %v2787 = vsub.s32 4294967266, %v2782
    %v2788 = vadd.s32 %v2787, 127
    %v2789 = vshll.u32 %v2788, 23
    %v2790 = vor.u32 4788187, %v2789
    %v2791 = vand.u32 2147483647, %v2790
    %v2793 = vcvt.s32.f32 %v2786
    %v2794 = vmul.f32 %v2793, %v2791
    %v2795 = vxor.u32 %v2794, 2147483648
    %v2796 = vsel %vm2713, %v2795, %v2794
    %v2797 = vsub.s32 4, %v2773
    %v2798 = vsel %vm2713, %v2797, %v2773
    %v2799 = vsel %vm2712, %v2059, %v2796
    %v2800 = vsel %vm2712, 0, %v2798
    %v2801 = vcosq.f32.pop %v2799
    %v2802 = vsinq.f32.pop %v2799
    %vm2803 = vweird.f32 %v2059
    %v2804 = vadd.s32 %v2800, 3
    %v2805 = vand.u32 %v2804, 3
    %vm2806 = vcmp.lt.s32.totalorder %v2805, 2
    %vm2807 = vcmp.eq.s32.totalorder %v2805, 0
    %v2808 = vxor.u32 %v2802, 2147483648
    %v2809 = vsel %vm2807, %v2801, %v2808
    %vm2810 = vcmp.eq.s32.totalorder %v2805, 2
    %v2811 = vxor.u32 %v2801, 2147483648
    %v2812 = vsel %vm2810, %v2811, %v2802
    %v2813 = vsel %vm2806, %v2809, %v2812
    %v2814 = vsel %vm2803, nan, %v2813
    %v2815 = vand.u32 2147483647, %v2061
    %vm2816 = vcmp.le.f32.partialorder %v2815, 0.7853982
    %vm2817 = vcmp.lt.s32.totalorder %v2061, 0
    %v2818 = vand.u32 %v2061, 2139095040
    %v2819 = vshrl.u32 %v2818, 23
    %v2820 = vsub.s32 %v2819, 127
    %v2821 = vand.u32 2147483647, %v2061
    %v2822 = vand.u32 %v2821, 8388607
    %v2823 = vor.u32 %v2822, 8388608
    %v2824 = vsub.s32 0, %v2823
    %v2825 = vadd.s32 %v2820, 1
    %vm2826 = vcmp.gt.s32.totalorder %v2825, 0
    %v2827 = vsel %vm2826, %v2825, 0
    %v2828 = vshrl.u32 %v2827, 5
    %v2829 = vand.u32 %v2827, 31
    %v2830 = vsub.s32 32, %v2829
    %v2831 = vshrl.u32 683565275, %v2830
    %v2832 = vshll.u32 683565275, %v2829
    %v2833 = vshrl.u32 2475754826, %v2830
    %v2834 = vor.u32 %v2832, %v2833
    %v2835 = vshll.u32 2475754826, %v2829
    %v2836 = vshrl.u32 2131351028, %v2830
    %v2837 = vor.u32 %v2835, %v2836
    %v2838 = vshll.u32 2131351028, %v2829
    %v2839 = vshrl.u32 2102212464, %v2830
    %v2840 = vor.u32 %v2838, %v2839
    %v2841 = vshll.u32 2102212464, %v2829
    %v2842 = vshrl.u32 920167782, %v2830
    %v2843 = vor.u32 %v2841, %v2842
    %v2844 = vshll.u32 920167782, %v2829
    %v2845 = vshrl.u32 1326507024, %v2830
    %v2846 = vor.u32 %v2844, %v2845
    %vm2847 = vcmp.lt.s32.totalorder %v2828, 1
    %vm2848 = vcmp.lt.s32.totalorder %v2828, 2
    %vm2849 = vcmp.lt.s32.totalorder %v2828, 3
    %vm2850 = vcmp.lt.s32.totalorder %v2828, 4
    %v2851 = vsel %vm2847, %v2831, %v2834
    %v2852 = vsel %vm2850, %v2840, 2102212464
    %v2853 = vsel %vm2849, %v2837, %v2852
    %v2854 = vsel %vm2848, %v2851, %v2853
    %v2855 = vsel %vm2847, %v2834, %v2837
    %v2856 = vsel %vm2850, %v2843, 920167782
    %v2857 = vsel %vm2849, %v2840, %v2856
    %v2858 = vsel %vm2848, %v2855, %v2857
    %v2859 = vsel %vm2847, %v2837, %v2840
    %v2860 = vsel %vm2850, %v2846, 1326507024
    %v2861 = vsel %vm2849, %v2843, %v2860
    %v2862 = vsel %vm2848, %v2859, %v2861
    %v2863 = vshll.u32 %v2823, 8
    %v2864 = vmul.u32.u64.compose %v2863, %v2862
    %v2865 = vextract.low.u32 %v2864
    %v2866 = vextract.high.u32 %v2864
    %v2867 = vmul.u32.u64.compose %v2863, %v2858
    %v2868 = vextract.low.u32 %v2867
    %v2869 = vextract.high.u32 %v2867
    %v2870 = vmul.u32 %v2863, %v2854
    %v2871 = vadd.s32 %v2866, %v2868
    %vm2872 = vc.u32 %v2866, %v2868
    %v2873 = vadd.s32 %v2869, 1
    %v2874 = vsel %vm2872, %v2873, %v2869
    %v2875 = vadd.s32 %v2870, %v2874
    %v2876 = vadd.s32 %v2875, 536870912
    %v2877 = vshrl.u32 %v2876, 30
    %v2878 = vshll.u32 %v2877, 30
    %v2879 = vsub.s32 %v2875, %v2878
    %vm2880 = vcmp.lt.s32.totalorder %v2879, 0
    %v2881 = vsub.s32 0, %v2879
    %v2882 = vsel %vm2880, %v2881, %v2879
    %v2883 = vclz %v2882
    %v2884 = vsub.s32 %v2883, 2
    %vm2885 = vcmp.gt.s32.totalorder 0, %v2884
    %v2886 = vsel %vm2885, 0, %v2884
    %v2887 = vsub.s32 32, %v2886
    %v2888 = vshll.u32 %v2879, %v2886
    %v2889 = vshrl.u32 %v2871, %v2887
    %v2890 = vor.u32 %v2888, %v2889
    %v2891 = vsub.s32 4294967266, %v2886
    %v2892 = vadd.s32 %v2891, 127
    %v2893 = vshll.u32 %v2892, 23
    %v2894 = vor.u32 4788187, %v2893
    %v2895 = vand.u32 2147483647, %v2894
    %v2897 = vcvt.s32.f32 %v2890
    %v2898 = vmul.f32 %v2897, %v2895
    %v2899 = vxor.u32 %v2898, 2147483648
    %v2900 = vsel %vm2817, %v2899, %v2898
    %v2901 = vsub.s32 4, %v2877
    %v2902 = vsel %vm2817, %v2901, %v2877
    %v2903 = vsel %vm2816, %v2061, %v2900
    %v2904 = vsel %vm2816, 0, %v2902
    %v2905 = vcosq.f32.pop %v2903
    %v2906 = vsinq.f32.pop %v2903
    %vm2907 = vweird.f32 %v2061
    %v2908 = vadd.s32 %v2904, 3
    %v2909 = vand.u32 %v2908, 3
    %vm2910 = vcmp.lt.s32.totalorder %v2909, 2
    %vm2911 = vcmp.eq.s32.totalorder %v2909, 0
    %v2912 = vxor.u32 %v2906, 2147483648
    %v2913 = vsel %vm2911, %v2905, %v2912
    %vm2914 = vcmp.eq.s32.totalorder %v2909, 2
    %v2915 = vxor.u32 %v2905, 2147483648
    %v2916 = vsel %vm2914, %v2915, %v2906
    %v2917 = vsel %vm2910, %v2913, %v2916
    %v2918 = vsel %vm2907, nan, %v2917
    %v2919 = vand.u32 2147483647, %v2065
    %vm2920 = vcmp.le.f32.partialorder %v2919, 0.7853982
    %vm2921 = vcmp.lt.s32.totalorder %v2065, 0
    %v2922 = vand.u32 %v2065, 2139095040
    %v2923 = vshrl.u32 %v2922, 23
    %v2924 = vsub.s32 %v2923, 127
    %v2925 = vand.u32 2147483647, %v2065
    %v2926 = vand.u32 %v2925, 8388607
    %v2927 = vor.u32 %v2926, 8388608
    %v2928 = vsub.s32 0, %v2927
    %v2929 = vadd.s32 %v2924, 1
    %vm2930 = vcmp.gt.s32.totalorder %v2929, 0
    %v2931 = vsel %vm2930, %v2929, 0
    %v2932 = vshrl.u32 %v2931, 5
    %v2933 = vand.u32 %v2931, 31
    %v2934 = vsub.s32 32, %v2933
    %v2935 = vshrl.u32 683565275, %v2934
    %v2936 = vshll.u32 683565275, %v2933
    %v2937 = vshrl.u32 2475754826, %v2934
    %v2938 = vor.u32 %v2936, %v2937
    %v2939 = vshll.u32 2475754826, %v2933
    %v2940 = vshrl.u32 2131351028, %v2934
    %v2941 = vor.u32 %v2939, %v2940
    %v2942 = vshll.u32 2131351028, %v2933
    %v2943 = vshrl.u32 2102212464, %v2934
    %v2944 = vor.u32 %v2942, %v2943
    %v2945 = vshll.u32 2102212464, %v2933
    %v2946 = vshrl.u32 920167782, %v2934
    %v2947 = vor.u32 %v2945, %v2946
    %v2948 = vshll.u32 920167782, %v2933
    %v2949 = vshrl.u32 1326507024, %v2934
    %v2950 = vor.u32 %v2948, %v2949
    %vm2951 = vcmp.lt.s32.totalorder %v2932, 1
    %vm2952 = vcmp.lt.s32.totalorder %v2932, 2
    %vm2953 = vcmp.lt.s32.totalorder %v2932, 3
    %vm2954 = vcmp.lt.s32.totalorder %v2932, 4
    %v2955 = vsel %vm2951, %v2935, %v2938
    %v2956 = vsel %vm2954, %v2944, 2102212464
    %v2957 = vsel %vm2953, %v2941, %v2956
    %v2958 = vsel %vm2952, %v2955, %v2957
    %v2959 = vsel %vm2951, %v2938, %v2941
    %v2960 = vsel %vm2954, %v2947, 920167782
    %v2961 = vsel %vm2953, %v2944, %v2960
    %v2962 = vsel %vm2952, %v2959, %v2961
    %v2963 = vsel %vm2951, %v2941, %v2944
    %v2964 = vsel %vm2954, %v2950, 1326507024
    %v2965 = vsel %vm2953, %v2947, %v2964
    %v2966 = vsel %vm2952, %v2963, %v2965
    %v2967 = vshll.u32 %v2927, 8
    %v2968 = vmul.u32.u64.compose %v2967, %v2966
    %v2969 = vextract.low.u32 %v2968
    %v2970 = vextract.high.u32 %v2968
    %v2971 = vmul.u32.u64.compose %v2967, %v2962
    %v2972 = vextract.low.u32 %v2971
    %v2973 = vextract.high.u32 %v2971
    %v2974 = vmul.u32 %v2967, %v2958
    %v2975 = vadd.s32 %v2970, %v2972
    %vm2976 = vc.u32 %v2970, %v2972
    %v2977 = vadd.s32 %v2973, 1
    %v2978 = vsel %vm2976, %v2977, %v2973
    %v2979 = vadd.s32 %v2974, %v2978
    %v2980 = vadd.s32 %v2979, 536870912
    %v2981 = vshrl.u32 %v2980, 30
    %v2982 = vshll.u32 %v2981, 30
    %v2983 = vsub.s32 %v2979, %v2982
    %vm2984 = vcmp.lt.s32.totalorder %v2983, 0
    %v2985 = vsub.s32 0, %v2983
    %v2986 = vsel %vm2984, %v2985, %v2983
    %v2987 = vclz %v2986
    %v2988 = vsub.s32 %v2987, 2
    %vm2989 = vcmp.gt.s32.totalorder 0, %v2988
    %v2990 = vsel %vm2989, 0, %v2988
    %v2991 = vsub.s32 32, %v2990
    %v2992 = vshll.u32 %v2983, %v2990
    %v2993 = vshrl.u32 %v2975, %v2991
    %v2994 = vor.u32 %v2992, %v2993
    %v2995 = vsub.s32 4294967266, %v2990
    %v2996 = vadd.s32 %v2995, 127
    %v2997 = vshll.u32 %v2996, 23
    %v2998 = vor.u32 4788187, %v2997
    %v2999 = vand.u32 2147483647, %v2998
    %v3001 = vcvt.s32.f32 %v2994
    %v3002 = vmul.f32 %v3001, %v2999
    %v3003 = vxor.u32 %v3002, 2147483648
    %v3004 = vsel %vm2921, %v3003, %v3002
    %v3005 = vsub.s32 4, %v2981
    %v3006 = vsel %vm2921, %v3005, %v2981
    %v3007 = vsel %vm2920, %v2065, %v3004
    %v3008 = vsel %vm2920, 0, %v3006
    %v3009 = vcosq.f32.pop %v3007
    %v3010 = vsinq.f32.pop %v3007
    %vm3011 = vweird.f32 %v2065
    %v3012 = vadd.s32 %v3008, 3
    %v3013 = vand.u32 %v3012, 3
    %vm3014 = vcmp.lt.s32.totalorder %v3013, 2
    %vm3015 = vcmp.eq.s32.totalorder %v3013, 0
    %v3016 = vxor.u32 %v3010, 2147483648
    %v3017 = vsel %vm3015, %v3009, %v3016
    %vm3018 = vcmp.eq.s32.totalorder %v3013, 2
    %v3019 = vxor.u32 %v3009, 2147483648
    %v3020 = vsel %vm3018, %v3019, %v3010
    %v3021 = vsel %vm3014, %v3017, %v3020
    %v3022 = vsel %vm3011, nan, %v3021
    %v3023 = vand.u32 2147483647, %v2067
    %vm3024 = vcmp.le.f32.partialorder %v3023, 0.7853982
    %vm3025 = vcmp.lt.s32.totalorder %v2067, 0
    %v3026 = vand.u32 %v2067, 2139095040
    %v3027 = vshrl.u32 %v3026, 23
    %v3028 = vsub.s32 %v3027, 127
    %v3029 = vand.u32 2147483647, %v2067
    %v3030 = vand.u32 %v3029, 8388607
    %v3031 = vor.u32 %v3030, 8388608
    %v3032 = vsub.s32 0, %v3031
    %v3033 = vadd.s32 %v3028, 1
    %vm3034 = vcmp.gt.s32.totalorder %v3033, 0
    %v3035 = vsel %vm3034, %v3033, 0
    %v3036 = vshrl.u32 %v3035, 5
    %v3037 = vand.u32 %v3035, 31
    %v3038 = vsub.s32 32, %v3037
    %v3039 = vshrl.u32 683565275, %v3038
    %v3040 = vshll.u32 683565275, %v3037
    %v3041 = vshrl.u32 2475754826, %v3038
    %v3042 = vor.u32 %v3040, %v3041
    %v3043 = vshll.u32 2475754826, %v3037
    %v3044 = vshrl.u32 2131351028, %v3038
    %v3045 = vor.u32 %v3043, %v3044
    %v3046 = vshll.u32 2131351028, %v3037
    %v3047 = vshrl.u32 2102212464, %v3038
    %v3048 = vor.u32 %v3046, %v3047
    %v3049 = vshll.u32 2102212464, %v3037
    %v3050 = vshrl.u32 920167782, %v3038
    %v3051 = vor.u32 %v3049, %v3050
    %v3052 = vshll.u32 920167782, %v3037
    %v3053 = vshrl.u32 1326507024, %v3038
    %v3054 = vor.u32 %v3052, %v3053
    %vm3055 = vcmp.lt.s32.totalorder %v3036, 1
    %vm3056 = vcmp.lt.s32.totalorder %v3036, 2
    %vm3057 = vcmp.lt.s32.totalorder %v3036, 3
    %vm3058 = vcmp.lt.s32.totalorder %v3036, 4
    %v3059 = vsel %vm3055, %v3039, %v3042
    %v3060 = vsel %vm3058, %v3048, 2102212464
    %v3061 = vsel %vm3057, %v3045, %v3060
    %v3062 = vsel %vm3056, %v3059, %v3061
    %v3063 = vsel %vm3055, %v3042, %v3045
    %v3064 = vsel %vm3058, %v3051, 920167782
    %v3065 = vsel %vm3057, %v3048, %v3064
    %v3066 = vsel %vm3056, %v3063, %v3065
    %v3067 = vsel %vm3055, %v3045, %v3048
    %v3068 = vsel %vm3058, %v3054, 1326507024
    %v3069 = vsel %vm3057, %v3051, %v3068
    %v3070 = vsel %vm3056, %v3067, %v3069
    %v3071 = vshll.u32 %v3031, 8
    %v3072 = vmul.u32.u64.compose %v3071, %v3070
    %v3073 = vextract.low.u32 %v3072
    %v3074 = vextract.high.u32 %v3072
    %v3075 = vmul.u32.u64.compose %v3071, %v3066
    %v3076 = vextract.low.u32 %v3075
    %v3077 = vextract.high.u32 %v3075
    %v3078 = vmul.u32 %v3071, %v3062
    %v3079 = vadd.s32 %v3074, %v3076
    %vm3080 = vc.u32 %v3074, %v3076
    %v3081 = vadd.s32 %v3077, 1
    %v3082 = vsel %vm3080, %v3081, %v3077
    %v3083 = vadd.s32 %v3078, %v3082
    %v3084 = vadd.s32 %v3083, 536870912
    %v3085 = vshrl.u32 %v3084, 30
    %v3086 = vshll.u32 %v3085, 30
    %v3087 = vsub.s32 %v3083, %v3086
    %vm3088 = vcmp.lt.s32.totalorder %v3087, 0
    %v3089 = vsub.s32 0, %v3087
    %v3090 = vsel %vm3088, %v3089, %v3087
    %v3091 = vclz %v3090
    %v3092 = vsub.s32 %v3091, 2
    %vm3093 = vcmp.gt.s32.totalorder 0, %v3092
    %v3094 = vsel %vm3093, 0, %v3092
    %v3095 = vsub.s32 32, %v3094
    %v3096 = vshll.u32 %v3087, %v3094
    %v3097 = vshrl.u32 %v3079, %v3095
    %v3098 = vor.u32 %v3096, %v3097
    %v3099 = vsub.s32 4294967266, %v3094
    %v3100 = vadd.s32 %v3099, 127
    %v3101 = vshll.u32 %v3100, 23
    %v3102 = vor.u32 4788187, %v3101
    %v3103 = vand.u32 2147483647, %v3102
    %v3105 = vcvt.s32.f32 %v3098
    %v3106 = vmul.f32 %v3105, %v3103
    %v3107 = vxor.u32 %v3106, 2147483648
    %v3108 = vsel %vm3025, %v3107, %v3106
    %v3109 = vsub.s32 4, %v3085
    %v3110 = vsel %vm3025, %v3109, %v3085
    %v3111 = vsel %vm3024, %v2067, %v3108
    %v3112 = vsel %vm3024, 0, %v3110
    %v3113 = vcosq.f32.pop %v3111
    %v3114 = vsinq.f32.pop %v3111
    %vm3115 = vweird.f32 %v2067
    %v3116 = vadd.s32 %v3112, 3
    %v3117 = vand.u32 %v3116, 3
    %vm3118 = vcmp.lt.s32.totalorder %v3117, 2
    %vm3119 = vcmp.eq.s32.totalorder %v3117, 0
    %v3120 = vxor.u32 %v3114, 2147483648
    %v3121 = vsel %vm3119, %v3113, %v3120
    %vm3122 = vcmp.eq.s32.totalorder %v3117, 2
    %v3123 = vxor.u32 %v3113, 2147483648
    %v3124 = vsel %vm3122, %v3123, %v3114
    %v3125 = vsel %vm3118, %v3121, %v3124
    %v3126 = vsel %vm3115, nan, %v3125
    %v3127 = vand.u32 2147483647, %v2071
    %vm3128 = vcmp.le.f32.partialorder %v3127, 0.7853982
    %vm3129 = vcmp.lt.s32.totalorder %v2071, 0
    %v3130 = vand.u32 %v2071, 2139095040
    %v3131 = vshrl.u32 %v3130, 23
    %v3132 = vsub.s32 %v3131, 127
    %v3133 = vand.u32 2147483647, %v2071
    %v3134 = vand.u32 %v3133, 8388607
    %v3135 = vor.u32 %v3134, 8388608
    %v3136 = vsub.s32 0, %v3135
    %v3137 = vadd.s32 %v3132, 1
    %vm3138 = vcmp.gt.s32.totalorder %v3137, 0
    %v3139 = vsel %vm3138, %v3137, 0
    %v3140 = vshrl.u32 %v3139, 5
    %v3141 = vand.u32 %v3139, 31
    %v3142 = vsub.s32 32, %v3141
    %v3143 = vshrl.u32 683565275, %v3142
    %v3144 = vshll.u32 683565275, %v3141
    %v3145 = vshrl.u32 2475754826, %v3142
    %v3146 = vor.u32 %v3144, %v3145
    %v3147 = vshll.u32 2475754826, %v3141
    %v3148 = vshrl.u32 2131351028, %v3142
    %v3149 = vor.u32 %v3147, %v3148
    %v3150 = vshll.u32 2131351028, %v3141
    %v3151 = vshrl.u32 2102212464, %v3142
    %v3152 = vor.u32 %v3150, %v3151
    %v3153 = vshll.u32 2102212464, %v3141
    %v3154 = vshrl.u32 920167782, %v3142
    %v3155 = vor.u32 %v3153, %v3154
    %v3156 = vshll.u32 920167782, %v3141
    %v3157 = vshrl.u32 1326507024, %v3142
    %v3158 = vor.u32 %v3156, %v3157
    %vm3159 = vcmp.lt.s32.totalorder %v3140, 1
    %vm3160 = vcmp.lt.s32.totalorder %v3140, 2
    %vm3161 = vcmp.lt.s32.totalorder %v3140, 3
    %vm3162 = vcmp.lt.s32.totalorder %v3140, 4
    %v3163 = vsel %vm3159, %v3143, %v3146
    %v3164 = vsel %vm3162, %v3152, 2102212464
    %v3165 = vsel %vm3161, %v3149, %v3164
    %v3166 = vsel %vm3160, %v3163, %v3165
    %v3167 = vsel %vm3159, %v3146, %v3149
    %v3168 = vsel %vm3162, %v3155, 920167782
    %v3169 = vsel %vm3161, %v3152, %v3168
    %v3170 = vsel %vm3160, %v3167, %v3169
    %v3171 = vsel %vm3159, %v3149, %v3152
    %v3172 = vsel %vm3162, %v3158, 1326507024
    %v3173 = vsel %vm3161, %v3155, %v3172
    %v3174 = vsel %vm3160, %v3171, %v3173
    %v3175 = vshll.u32 %v3135, 8
    %v3176 = vmul.u32.u64.compose %v3175, %v3174
    %v3177 = vextract.low.u32 %v3176
    %v3178 = vextract.high.u32 %v3176
    %v3179 = vmul.u32.u64.compose %v3175, %v3170
    %v3180 = vextract.low.u32 %v3179
    %v3181 = vextract.high.u32 %v3179
    %v3182 = vmul.u32 %v3175, %v3166
    %v3183 = vadd.s32 %v3178, %v3180
    %vm3184 = vc.u32 %v3178, %v3180
    %v3185 = vadd.s32 %v3181, 1
    %v3186 = vsel %vm3184, %v3185, %v3181
    %v3187 = vadd.s32 %v3182, %v3186
    %v3188 = vadd.s32 %v3187, 536870912
    %v3189 = vshrl.u32 %v3188, 30
    %v3190 = vshll.u32 %v3189, 30
    %v3191 = vsub.s32 %v3187, %v3190
    %vm3192 = vcmp.lt.s32.totalorder %v3191, 0
    %v3193 = vsub.s32 0, %v3191
    %v3194 = vsel %vm3192, %v3193, %v3191
    %v3195 = vclz %v3194
    %v3196 = vsub.s32 %v3195, 2
    %vm3197 = vcmp.gt.s32.totalorder 0, %v3196
    %v3198 = vsel %vm3197, 0, %v3196
    %v3199 = vsub.s32 32, %v3198
    %v3200 = vshll.u32 %v3191, %v3198
    %v3201 = vshrl.u32 %v3183, %v3199
    %v3202 = vor.u32 %v3200, %v3201
    %v3203 = vsub.s32 4294967266, %v3198
    %v3204 = vadd.s32 %v3203, 127
    %v3205 = vshll.u32 %v3204, 23
    %v3206 = vor.u32 4788187, %v3205
    %v3207 = vand.u32 2147483647, %v3206
    %v3209 = vcvt.s32.f32 %v3202
    %v3210 = vmul.f32 %v3209, %v3207
    %v3211 = vxor.u32 %v3210, 2147483648
    %v3212 = vsel %vm3129, %v3211, %v3210
    %v3213 = vsub.s32 4, %v3189
    %v3214 = vsel %vm3129, %v3213, %v3189
    %v3215 = vsel %vm3128, %v2071, %v3212
    %v3216 = vsel %vm3128, 0, %v3214
    %v3217 = vcosq.f32.pop %v3215
    %v3218 = vsinq.f32.pop %v3215
    %vm3219 = vweird.f32 %v2071
    %v3220 = vadd.s32 %v3216, 3
    %v3221 = vand.u32 %v3220, 3
    %vm3222 = vcmp.lt.s32.totalorder %v3221, 2
    %vm3223 = vcmp.eq.s32.totalorder %v3221, 0
    %v3224 = vxor.u32 %v3218, 2147483648
    %v3225 = vsel %vm3223, %v3217, %v3224
    %vm3226 = vcmp.eq.s32.totalorder %v3221, 2
    %v3227 = vxor.u32 %v3217, 2147483648
    %v3228 = vsel %vm3226, %v3227, %v3218
    %v3229 = vsel %vm3222, %v3225, %v3228
    %v3230 = vsel %vm3219, nan, %v3229
    %v3231 = vand.u32 2147483647, %v2073
    %vm3232 = vcmp.le.f32.partialorder %v3231, 0.7853982
    %vm3233 = vcmp.lt.s32.totalorder %v2073, 0
    %v3234 = vand.u32 %v2073, 2139095040
    %v3235 = vshrl.u32 %v3234, 23
    %v3236 = vsub.s32 %v3235, 127
    %v3237 = vand.u32 2147483647, %v2073
    %v3238 = vand.u32 %v3237, 8388607
    %v3239 = vor.u32 %v3238, 8388608
    %v3240 = vsub.s32 0, %v3239
    %v3241 = vadd.s32 %v3236, 1
    %vm3242 = vcmp.gt.s32.totalorder %v3241, 0
    %v3243 = vsel %vm3242, %v3241, 0
    %v3244 = vshrl.u32 %v3243, 5
    %v3245 = vand.u32 %v3243, 31
    %v3246 = vsub.s32 32, %v3245
    %v3247 = vshrl.u32 683565275, %v3246
    %v3248 = vshll.u32 683565275, %v3245
    %v3249 = vshrl.u32 2475754826, %v3246
    %v3250 = vor.u32 %v3248, %v3249
    %v3251 = vshll.u32 2475754826, %v3245
    %v3252 = vshrl.u32 2131351028, %v3246
    %v3253 = vor.u32 %v3251, %v3252
    %v3254 = vshll.u32 2131351028, %v3245
    %v3255 = vshrl.u32 2102212464, %v3246
    %v3256 = vor.u32 %v3254, %v3255
    %v3257 = vshll.u32 2102212464, %v3245
    %v3258 = vshrl.u32 920167782, %v3246
    %v3259 = vor.u32 %v3257, %v3258
    %v3260 = vshll.u32 920167782, %v3245
    %v3261 = vshrl.u32 1326507024, %v3246
    %v3262 = vor.u32 %v3260, %v3261
    %vm3263 = vcmp.lt.s32.totalorder %v3244, 1
    %vm3264 = vcmp.lt.s32.totalorder %v3244, 2
    %vm3265 = vcmp.lt.s32.totalorder %v3244, 3
    %vm3266 = vcmp.lt.s32.totalorder %v3244, 4
    %v3267 = vsel %vm3263, %v3247, %v3250
    %v3268 = vsel %vm3266, %v3256, 2102212464
    %v3269 = vsel %vm3265, %v3253, %v3268
    %v3270 = vsel %vm3264, %v3267, %v3269
    %v3271 = vsel %vm3263, %v3250, %v3253
    %v3272 = vsel %vm3266, %v3259, 920167782
    %v3273 = vsel %vm3265, %v3256, %v3272
    %v3274 = vsel %vm3264, %v3271, %v3273
    %v3275 = vsel %vm3263, %v3253, %v3256
    %v3276 = vsel %vm3266, %v3262, 1326507024
    %v3277 = vsel %vm3265, %v3259, %v3276
    %v3278 = vsel %vm3264, %v3275, %v3277
    %v3279 = vshll.u32 %v3239, 8
    %v3280 = vmul.u32.u64.compose %v3279, %v3278
    %v3281 = vextract.low.u32 %v3280
    %v3282 = vextract.high.u32 %v3280
    %v3283 = vmul.u32.u64.compose %v3279, %v3274
    %v3284 = vextract.low.u32 %v3283
    %v3285 = vextract.high.u32 %v3283
    %v3286 = vmul.u32 %v3279, %v3270
    %v3287 = vadd.s32 %v3282, %v3284
    %vm3288 = vc.u32 %v3282, %v3284
    %v3289 = vadd.s32 %v3285, 1
    %v3290 = vsel %vm3288, %v3289, %v3285
    %v3291 = vadd.s32 %v3286, %v3290
    %v3292 = vadd.s32 %v3291, 536870912
    %v3293 = vshrl.u32 %v3292, 30
    %v3294 = vshll.u32 %v3293, 30
    %v3295 = vsub.s32 %v3291, %v3294
    %vm3296 = vcmp.lt.s32.totalorder %v3295, 0
    %v3297 = vsub.s32 0, %v3295
    %v3298 = vsel %vm3296, %v3297, %v3295
    %v3299 = vclz %v3298
    %v3300 = vsub.s32 %v3299, 2
    %vm3301 = vcmp.gt.s32.totalorder 0, %v3300
    %v3302 = vsel %vm3301, 0, %v3300
    %v3303 = vsub.s32 32, %v3302
    %v3304 = vshll.u32 %v3295, %v3302
    %v3305 = vshrl.u32 %v3287, %v3303
    %v3306 = vor.u32 %v3304, %v3305
    %v3307 = vsub.s32 4294967266, %v3302
    %v3308 = vadd.s32 %v3307, 127
    %v3309 = vshll.u32 %v3308, 23
    %v3310 = vor.u32 4788187, %v3309
    %v3311 = vand.u32 2147483647, %v3310
    %v3313 = vcvt.s32.f32 %v3306
    %v3314 = vmul.f32 %v3313, %v3311
    %v3315 = vxor.u32 %v3314, 2147483648
    %v3316 = vsel %vm3233, %v3315, %v3314
    %v3317 = vsub.s32 4, %v3293
    %v3318 = vsel %vm3233, %v3317, %v3293
    %v3319 = vsel %vm3232, %v2073, %v3316
    %v3320 = vsel %vm3232, 0, %v3318
    %v3321 = vcosq.f32.pop %v3319
    %v3322 = vsinq.f32.pop %v3319
    %vm3323 = vweird.f32 %v2073
    %v3324 = vadd.s32 %v3320, 3
    %v3325 = vand.u32 %v3324, 3
    %vm3326 = vcmp.lt.s32.totalorder %v3325, 2
    %vm3327 = vcmp.eq.s32.totalorder %v3325, 0
    %v3328 = vxor.u32 %v3322, 2147483648
    %v3329 = vsel %vm3327, %v3321, %v3328
    %vm3330 = vcmp.eq.s32.totalorder %v3325, 2
    %v3331 = vxor.u32 %v3321, 2147483648
    %v3332 = vsel %vm3330, %v3331, %v3322
    %v3333 = vsel %vm3326, %v3329, %v3332
    %v3334 = vsel %vm3323, nan, %v3333
    %v3335 = vand.u32 2147483647, %v2077
    %vm3336 = vcmp.le.f32.partialorder %v3335, 0.7853982
    %vm3337 = vcmp.lt.s32.totalorder %v2077, 0
    %v3338 = vand.u32 %v2077, 2139095040
    %v3339 = vshrl.u32 %v3338, 23
    %v3340 = vsub.s32 %v3339, 127
    %v3341 = vand.u32 2147483647, %v2077
    %v3342 = vand.u32 %v3341, 8388607
    %v3343 = vor.u32 %v3342, 8388608
    %v3344 = vsub.s32 0, %v3343
    %v3345 = vadd.s32 %v3340, 1
    %vm3346 = vcmp.gt.s32.totalorder %v3345, 0
    %v3347 = vsel %vm3346, %v3345, 0
    %v3348 = vshrl.u32 %v3347, 5
    %v3349 = vand.u32 %v3347, 31
    %v3350 = vsub.s32 32, %v3349
    %v3351 = vshrl.u32 683565275, %v3350
    %v3352 = vshll.u32 683565275, %v3349
    %v3353 = vshrl.u32 2475754826, %v3350
    %v3354 = vor.u32 %v3352, %v3353
    %v3355 = vshll.u32 2475754826, %v3349
    %v3356 = vshrl.u32 2131351028, %v3350
    %v3357 = vor.u32 %v3355, %v3356
    %v3358 = vshll.u32 2131351028, %v3349
    %v3359 = vshrl.u32 2102212464, %v3350
    %v3360 = vor.u32 %v3358, %v3359
    %v3361 = vshll.u32 2102212464, %v3349
    %v3362 = vshrl.u32 920167782, %v3350
    %v3363 = vor.u32 %v3361, %v3362
    %v3364 = vshll.u32 920167782, %v3349
    %v3365 = vshrl.u32 1326507024, %v3350
    %v3366 = vor.u32 %v3364, %v3365
    %vm3367 = vcmp.lt.s32.totalorder %v3348, 1
    %vm3368 = vcmp.lt.s32.totalorder %v3348, 2
    %vm3369 = vcmp.lt.s32.totalorder %v3348, 3
    %vm3370 = vcmp.lt.s32.totalorder %v3348, 4
    %v3371 = vsel %vm3367, %v3351, %v3354
    %v3372 = vsel %vm3370, %v3360, 2102212464
    %v3373 = vsel %vm3369, %v3357, %v3372
    %v3374 = vsel %vm3368, %v3371, %v3373
    %v3375 = vsel %vm3367, %v3354, %v3357
    %v3376 = vsel %vm3370, %v3363, 920167782
    %v3377 = vsel %vm3369, %v3360, %v3376
    %v3378 = vsel %vm3368, %v3375, %v3377
    %v3379 = vsel %vm3367, %v3357, %v3360
    %v3380 = vsel %vm3370, %v3366, 1326507024
    %v3381 = vsel %vm3369, %v3363, %v3380
    %v3382 = vsel %vm3368, %v3379, %v3381
    %v3383 = vshll.u32 %v3343, 8
    %v3384 = vmul.u32.u64.compose %v3383, %v3382
    %v3385 = vextract.low.u32 %v3384
    %v3386 = vextract.high.u32 %v3384
    %v3387 = vmul.u32.u64.compose %v3383, %v3378
    %v3388 = vextract.low.u32 %v3387
    %v3389 = vextract.high.u32 %v3387
    %v3390 = vmul.u32 %v3383, %v3374
    %v3391 = vadd.s32 %v3386, %v3388
    %vm3392 = vc.u32 %v3386, %v3388
    %v3393 = vadd.s32 %v3389, 1
    %v3394 = vsel %vm3392, %v3393, %v3389
    %v3395 = vadd.s32 %v3390, %v3394
    %v3396 = vadd.s32 %v3395, 536870912
    %v3397 = vshrl.u32 %v3396, 30
    %v3398 = vshll.u32 %v3397, 30
    %v3399 = vsub.s32 %v3395, %v3398
    %vm3400 = vcmp.lt.s32.totalorder %v3399, 0
    %v3401 = vsub.s32 0, %v3399
    %v3402 = vsel %vm3400, %v3401, %v3399
    %v3403 = vclz %v3402
    %v3404 = vsub.s32 %v3403, 2
    %vm3405 = vcmp.gt.s32.totalorder 0, %v3404
    %v3406 = vsel %vm3405, 0, %v3404
    %v3407 = vsub.s32 32, %v3406
    %v3408 = vshll.u32 %v3399, %v3406
    %v3409 = vshrl.u32 %v3391, %v3407
    %v3410 = vor.u32 %v3408, %v3409
    %v3411 = vsub.s32 4294967266, %v3406
    %v3412 = vadd.s32 %v3411, 127
    %v3413 = vshll.u32 %v3412, 23
    %v3414 = vor.u32 4788187, %v3413
    %v3415 = vand.u32 2147483647, %v3414
    %v3417 = vcvt.s32.f32 %v3410
    %v3418 = vmul.f32 %v3417, %v3415
    %v3419 = vxor.u32 %v3418, 2147483648
    %v3420 = vsel %vm3337, %v3419, %v3418
    %v3421 = vsub.s32 4, %v3397
    %v3422 = vsel %vm3337, %v3421, %v3397
    %v3423 = vsel %vm3336, %v2077, %v3420
    %v3424 = vsel %vm3336, 0, %v3422
    %v3425 = vcosq.f32.pop %v3423
    %v3426 = vsinq.f32.pop %v3423
    %vm3427 = vweird.f32 %v2077
    %v3428 = vadd.s32 %v3424, 3
    %v3429 = vand.u32 %v3428, 3
    %vm3430 = vcmp.lt.s32.totalorder %v3429, 2
    %vm3431 = vcmp.eq.s32.totalorder %v3429, 0
    %v3432 = vxor.u32 %v3426, 2147483648
    %v3433 = vsel %vm3431, %v3425, %v3432
    %vm3434 = vcmp.eq.s32.totalorder %v3429, 2
    %v3435 = vxor.u32 %v3425, 2147483648
    %v3436 = vsel %vm3434, %v3435, %v3426
    %v3437 = vsel %vm3430, %v3433, %v3436
    %v3438 = vsel %vm3427, nan, %v3437
    %v3439 = vand.u32 2147483647, %v2079
    %vm3440 = vcmp.le.f32.partialorder %v3439, 0.7853982
    %vm3441 = vcmp.lt.s32.totalorder %v2079, 0
    %v3442 = vand.u32 %v2079, 2139095040
    %v3443 = vshrl.u32 %v3442, 23
    %v3444 = vsub.s32 %v3443, 127
    %v3445 = vand.u32 2147483647, %v2079
    %v3446 = vand.u32 %v3445, 8388607
    %v3447 = vor.u32 %v3446, 8388608
    %v3448 = vsub.s32 0, %v3447
    %v3449 = vadd.s32 %v3444, 1
    %vm3450 = vcmp.gt.s32.totalorder %v3449, 0
    %v3451 = vsel %vm3450, %v3449, 0
    %v3452 = vshrl.u32 %v3451, 5
    %v3453 = vand.u32 %v3451, 31
    %v3454 = vsub.s32 32, %v3453
    %v3455 = vshrl.u32 683565275, %v3454
    %v3456 = vshll.u32 683565275, %v3453
    %v3457 = vshrl.u32 2475754826, %v3454
    %v3458 = vor.u32 %v3456, %v3457
    %v3459 = vshll.u32 2475754826, %v3453
    %v3460 = vshrl.u32 2131351028, %v3454
    %v3461 = vor.u32 %v3459, %v3460
    %v3462 = vshll.u32 2131351028, %v3453
    %v3463 = vshrl.u32 2102212464, %v3454
    %v3464 = vor.u32 %v3462, %v3463
    %v3465 = vshll.u32 2102212464, %v3453
    %v3466 = vshrl.u32 920167782, %v3454
    %v3467 = vor.u32 %v3465, %v3466
    %v3468 = vshll.u32 920167782, %v3453
    %v3469 = vshrl.u32 1326507024, %v3454
    %v3470 = vor.u32 %v3468, %v3469
    %vm3471 = vcmp.lt.s32.totalorder %v3452, 1
    %vm3472 = vcmp.lt.s32.totalorder %v3452, 2
    %vm3473 = vcmp.lt.s32.totalorder %v3452, 3
    %vm3474 = vcmp.lt.s32.totalorder %v3452, 4
    %v3475 = vsel %vm3471, %v3455, %v3458
    %v3476 = vsel %vm3474, %v3464, 2102212464
    %v3477 = vsel %vm3473, %v3461, %v3476
    %v3478 = vsel %vm3472, %v3475, %v3477
    %v3479 = vsel %vm3471, %v3458, %v3461
    %v3480 = vsel %vm3474, %v3467, 920167782
    %v3481 = vsel %vm3473, %v3464, %v3480
    %v3482 = vsel %vm3472, %v3479, %v3481
    %v3483 = vsel %vm3471, %v3461, %v3464
    %v3484 = vsel %vm3474, %v3470, 1326507024
    %v3485 = vsel %vm3473, %v3467, %v3484
    %v3486 = vsel %vm3472, %v3483, %v3485
    %v3487 = vshll.u32 %v3447, 8
    %v3488 = vmul.u32.u64.compose %v3487, %v3486
    %v3489 = vextract.low.u32 %v3488
    %v3490 = vextract.high.u32 %v3488
    %v3491 = vmul.u32.u64.compose %v3487, %v3482
    %v3492 = vextract.low.u32 %v3491
    %v3493 = vextract.high.u32 %v3491
    %v3494 = vmul.u32 %v3487, %v3478
    %v3495 = vadd.s32 %v3490, %v3492
    %vm3496 = vc.u32 %v3490, %v3492
    %v3497 = vadd.s32 %v3493, 1
    %v3498 = vsel %vm3496, %v3497, %v3493
    %v3499 = vadd.s32 %v3494, %v3498
    %v3500 = vadd.s32 %v3499, 536870912
    %v3501 = vshrl.u32 %v3500, 30
    %v3502 = vshll.u32 %v3501, 30
    %v3503 = vsub.s32 %v3499, %v3502
    %vm3504 = vcmp.lt.s32.totalorder %v3503, 0
    %v3505 = vsub.s32 0, %v3503
    %v3506 = vsel %vm3504, %v3505, %v3503
    %v3507 = vclz %v3506
    %v3508 = vsub.s32 %v3507, 2
    %vm3509 = vcmp.gt.s32.totalorder 0, %v3508
    %v3510 = vsel %vm3509, 0, %v3508
    %v3511 = vsub.s32 32, %v3510
    %v3512 = vshll.u32 %v3503, %v3510
    %v3513 = vshrl.u32 %v3495, %v3511
    %v3514 = vor.u32 %v3512, %v3513
    %v3515 = vsub.s32 4294967266, %v3510
    %v3516 = vadd.s32 %v3515, 127
    %v3517 = vshll.u32 %v3516, 23
    %v3518 = vor.u32 4788187, %v3517
    %v3519 = vand.u32 2147483647, %v3518
    %v3521 = vcvt.s32.f32 %v3514
    %v3522 = vmul.f32 %v3521, %v3519
    %v3523 = vxor.u32 %v3522, 2147483648
    %v3524 = vsel %vm3441, %v3523, %v3522
    %v3525 = vsub.s32 4, %v3501
    %v3526 = vsel %vm3441, %v3525, %v3501
    %v3527 = vsel %vm3440, %v2079, %v3524
    %v3528 = vsel %vm3440, 0, %v3526
    %v3529 = vcosq.f32.pop %v3527
    %v3530 = vsinq.f32.pop %v3527
    %vm3531 = vweird.f32 %v2079
    %v3532 = vadd.s32 %v3528, 3
    %v3533 = vand.u32 %v3532, 3
    %vm3534 = vcmp.lt.s32.totalorder %v3533, 2
    %vm3535 = vcmp.eq.s32.totalorder %v3533, 0
    %v3536 = vxor.u32 %v3530, 2147483648
    %v3537 = vsel %vm3535, %v3529, %v3536
    %vm3538 = vcmp.eq.s32.totalorder %v3533, 2
    %v3539 = vxor.u32 %v3529, 2147483648
    %v3540 = vsel %vm3538, %v3539, %v3530
    %v3541 = vsel %vm3534, %v3537, %v3540
    %v3542 = vsel %vm3531, nan, %v3541
    %v3543 = vand.u32 2147483647, %v2083
    %vm3544 = vcmp.le.f32.partialorder %v3543, 0.7853982
    %vm3545 = vcmp.lt.s32.totalorder %v2083, 0
    %v3546 = vand.u32 %v2083, 2139095040
    %v3547 = vshrl.u32 %v3546, 23
    %v3548 = vsub.s32 %v3547, 127
    %v3549 = vand.u32 2147483647, %v2083
    %v3550 = vand.u32 %v3549, 8388607
    %v3551 = vor.u32 %v3550, 8388608
    %v3552 = vsub.s32 0, %v3551
    %v3553 = vadd.s32 %v3548, 1
    %vm3554 = vcmp.gt.s32.totalorder %v3553, 0
    %v3555 = vsel %vm3554, %v3553, 0
    %v3556 = vshrl.u32 %v3555, 5
    %v3557 = vand.u32 %v3555, 31
    %v3558 = vsub.s32 32, %v3557
    %v3559 = vshrl.u32 683565275, %v3558
    %v3560 = vshll.u32 683565275, %v3557
    %v3561 = vshrl.u32 2475754826, %v3558
    %v3562 = vor.u32 %v3560, %v3561
    %v3563 = vshll.u32 2475754826, %v3557
    %v3564 = vshrl.u32 2131351028, %v3558
    %v3565 = vor.u32 %v3563, %v3564
    %v3566 = vshll.u32 2131351028, %v3557
    %v3567 = vshrl.u32 2102212464, %v3558
    %v3568 = vor.u32 %v3566, %v3567
    %v3569 = vshll.u32 2102212464, %v3557
    %v3570 = vshrl.u32 920167782, %v3558
    %v3571 = vor.u32 %v3569, %v3570
    %v3572 = vshll.u32 920167782, %v3557
    %v3573 = vshrl.u32 1326507024, %v3558
    %v3574 = vor.u32 %v3572, %v3573
    %vm3575 = vcmp.lt.s32.totalorder %v3556, 1
    %vm3576 = vcmp.lt.s32.totalorder %v3556, 2
    %vm3577 = vcmp.lt.s32.totalorder %v3556, 3
    %vm3578 = vcmp.lt.s32.totalorder %v3556, 4
    %v3579 = vsel %vm3575, %v3559, %v3562
    %v3580 = vsel %vm3578, %v3568, 2102212464
    %v3581 = vsel %vm3577, %v3565, %v3580
    %v3582 = vsel %vm3576, %v3579, %v3581
    %v3583 = vsel %vm3575, %v3562, %v3565
    %v3584 = vsel %vm3578, %v3571, 920167782
    %v3585 = vsel %vm3577, %v3568, %v3584
    %v3586 = vsel %vm3576, %v3583, %v3585
    %v3587 = vsel %vm3575, %v3565, %v3568
    %v3588 = vsel %vm3578, %v3574, 1326507024
    %v3589 = vsel %vm3577, %v3571, %v3588
    %v3590 = vsel %vm3576, %v3587, %v3589
    %v3591 = vshll.u32 %v3551, 8
    %v3592 = vmul.u32.u64.compose %v3591, %v3590
    %v3593 = vextract.low.u32 %v3592
    %v3594 = vextract.high.u32 %v3592
    %v3595 = vmul.u32.u64.compose %v3591, %v3586
    %v3596 = vextract.low.u32 %v3595
    %v3597 = vextract.high.u32 %v3595
    %v3598 = vmul.u32 %v3591, %v3582
    %v3599 = vadd.s32 %v3594, %v3596
    %vm3600 = vc.u32 %v3594, %v3596
    %v3601 = vadd.s32 %v3597, 1
    %v3602 = vsel %vm3600, %v3601, %v3597
    %v3603 = vadd.s32 %v3598, %v3602
    %v3604 = vadd.s32 %v3603, 536870912
    %v3605 = vshrl.u32 %v3604, 30
    %v3606 = vshll.u32 %v3605, 30
    %v3607 = vsub.s32 %v3603, %v3606
    %vm3608 = vcmp.lt.s32.totalorder %v3607, 0
    %v3609 = vsub.s32 0, %v3607
    %v3610 = vsel %vm3608, %v3609, %v3607
    %v3611 = vclz %v3610
    %v3612 = vsub.s32 %v3611, 2
    %vm3613 = vcmp.gt.s32.totalorder 0, %v3612
    %v3614 = vsel %vm3613, 0, %v3612
    %v3615 = vsub.s32 32, %v3614
    %v3616 = vshll.u32 %v3607, %v3614
    %v3617 = vshrl.u32 %v3599, %v3615
    %v3618 = vor.u32 %v3616, %v3617
    %v3619 = vsub.s32 4294967266, %v3614
    %v3620 = vadd.s32 %v3619, 127
    %v3621 = vshll.u32 %v3620, 23
    %v3622 = vor.u32 4788187, %v3621
    %v3623 = vand.u32 2147483647, %v3622
    %v3625 = vcvt.s32.f32 %v3618
    %v3626 = vmul.f32 %v3625, %v3623
    %v3627 = vxor.u32 %v3626, 2147483648
    %v3628 = vsel %vm3545, %v3627, %v3626
    %v3629 = vsub.s32 4, %v3605
    %v3630 = vsel %vm3545, %v3629, %v3605
    %v3631 = vsel %vm3544, %v2083, %v3628
    %v3632 = vsel %vm3544, 0, %v3630
    %v3633 = vcosq.f32.pop %v3631
    %v3634 = vsinq.f32.pop %v3631
    %vm3635 = vweird.f32 %v2083
    %v3636 = vadd.s32 %v3632, 3
    %v3637 = vand.u32 %v3636, 3
    %vm3638 = vcmp.lt.s32.totalorder %v3637, 2
    %vm3639 = vcmp.eq.s32.totalorder %v3637, 0
    %v3640 = vxor.u32 %v3634, 2147483648
    %v3641 = vsel %vm3639, %v3633, %v3640
    %vm3642 = vcmp.eq.s32.totalorder %v3637, 2
    %v3643 = vxor.u32 %v3633, 2147483648
    %v3644 = vsel %vm3642, %v3643, %v3634
    %v3645 = vsel %vm3638, %v3641, %v3644
    %v3646 = vsel %vm3635, nan, %v3645
    %v3647 = vand.u32 2147483647, %v2085
    %vm3648 = vcmp.le.f32.partialorder %v3647, 0.7853982
    %vm3649 = vcmp.lt.s32.totalorder %v2085, 0
    %v3650 = vand.u32 %v2085, 2139095040
    %v3651 = vshrl.u32 %v3650, 23
    %v3652 = vsub.s32 %v3651, 127
    %v3653 = vand.u32 2147483647, %v2085
    %v3654 = vand.u32 %v3653, 8388607
    %v3655 = vor.u32 %v3654, 8388608
    %v3656 = vsub.s32 0, %v3655
    %v3657 = vadd.s32 %v3652, 1
    %vm3658 = vcmp.gt.s32.totalorder %v3657, 0
    %v3659 = vsel %vm3658, %v3657, 0
    %v3660 = vshrl.u32 %v3659, 5
    %v3661 = vand.u32 %v3659, 31
    %v3662 = vsub.s32 32, %v3661
    %v3663 = vshrl.u32 683565275, %v3662
    %v3664 = vshll.u32 683565275, %v3661
    %v3665 = vshrl.u32 2475754826, %v3662
    %v3666 = vor.u32 %v3664, %v3665
    %v3667 = vshll.u32 2475754826, %v3661
    %v3668 = vshrl.u32 2131351028, %v3662
    %v3669 = vor.u32 %v3667, %v3668
    %v3670 = vshll.u32 2131351028, %v3661
    %v3671 = vshrl.u32 2102212464, %v3662
    %v3672 = vor.u32 %v3670, %v3671
    %v3673 = vshll.u32 2102212464, %v3661
    %v3674 = vshrl.u32 920167782, %v3662
    %v3675 = vor.u32 %v3673, %v3674
    %v3676 = vshll.u32 920167782, %v3661
    %v3677 = vshrl.u32 1326507024, %v3662
    %v3678 = vor.u32 %v3676, %v3677
    %vm3679 = vcmp.lt.s32.totalorder %v3660, 1
    %vm3680 = vcmp.lt.s32.totalorder %v3660, 2
    %vm3681 = vcmp.lt.s32.totalorder %v3660, 3
    %vm3682 = vcmp.lt.s32.totalorder %v3660, 4
    %v3683 = vsel %vm3679, %v3663, %v3666
    %v3684 = vsel %vm3682, %v3672, 2102212464
    %v3685 = vsel %vm3681, %v3669, %v3684
    %v3686 = vsel %vm3680, %v3683, %v3685
    %v3687 = vsel %vm3679, %v3666, %v3669
    %v3688 = vsel %vm3682, %v3675, 920167782
    %v3689 = vsel %vm3681, %v3672, %v3688
    %v3690 = vsel %vm3680, %v3687, %v3689
    %v3691 = vsel %vm3679, %v3669, %v3672
    %v3692 = vsel %vm3682, %v3678, 1326507024
    %v3693 = vsel %vm3681, %v3675, %v3692
    %v3694 = vsel %vm3680, %v3691, %v3693
    %v3695 = vshll.u32 %v3655, 8
    %v3696 = vmul.u32.u64.compose %v3695, %v3694
    %v3697 = vextract.low.u32 %v3696
    %v3698 = vextract.high.u32 %v3696
    %v3699 = vmul.u32.u64.compose %v3695, %v3690
    %v3700 = vextract.low.u32 %v3699
    %v3701 = vextract.high.u32 %v3699
    %v3702 = vmul.u32 %v3695, %v3686
    %v3703 = vadd.s32 %v3698, %v3700
    %vm3704 = vc.u32 %v3698, %v3700
    %v3705 = vadd.s32 %v3701, 1
    %v3706 = vsel %vm3704, %v3705, %v3701
    %v3707 = vadd.s32 %v3702, %v3706
    %v3708 = vadd.s32 %v3707, 536870912
    %v3709 = vshrl.u32 %v3708, 30
    %v3710 = vshll.u32 %v3709, 30
    %v3711 = vsub.s32 %v3707, %v3710
    %vm3712 = vcmp.lt.s32.totalorder %v3711, 0
    %v3713 = vsub.s32 0, %v3711
    %v3714 = vsel %vm3712, %v3713, %v3711
    %v3715 = vclz %v3714
    %v3716 = vsub.s32 %v3715, 2
    %vm3717 = vcmp.gt.s32.totalorder 0, %v3716
    %v3718 = vsel %vm3717, 0, %v3716
    %v3719 = vsub.s32 32, %v3718
    %v3720 = vshll.u32 %v3711, %v3718
    %v3721 = vshrl.u32 %v3703, %v3719
    %v3722 = vor.u32 %v3720, %v3721
    %v3723 = vsub.s32 4294967266, %v3718
    %v3724 = vadd.s32 %v3723, 127
    %v3725 = vshll.u32 %v3724, 23
    %v3726 = vor.u32 4788187, %v3725
    %v3727 = vand.u32 2147483647, %v3726
    %v3729 = vcvt.s32.f32 %v3722
    %v3730 = vmul.f32 %v3729, %v3727
    %v3731 = vxor.u32 %v3730, 2147483648
    %v3732 = vsel %vm3649, %v3731, %v3730
    %v3733 = vsub.s32 4, %v3709
    %v3734 = vsel %vm3649, %v3733, %v3709
    %v3735 = vsel %vm3648, %v2085, %v3732
    %v3736 = vsel %vm3648, 0, %v3734
    %v3737 = vcosq.f32.pop %v3735
    %v3738 = vsinq.f32.pop %v3735
    %vm3739 = vweird.f32 %v2085
    %v3740 = vadd.s32 %v3736, 3
    %v3741 = vand.u32 %v3740, 3
    %vm3742 = vcmp.lt.s32.totalorder %v3741, 2
    %vm3743 = vcmp.eq.s32.totalorder %v3741, 0
    %v3744 = vxor.u32 %v3738, 2147483648
    %v3745 = vsel %vm3743, %v3737, %v3744
    %vm3746 = vcmp.eq.s32.totalorder %v3741, 2
    %v3747 = vxor.u32 %v3737, 2147483648
    %v3748 = vsel %vm3746, %v3747, %v3738
    %v3749 = vsel %vm3742, %v3745, %v3748
    %v3750 = vsel %vm3739, nan, %v3749
    %v3751 = vld [vmem:[%s5] sm:$0xff]
    %v3752 = vld [vmem:[%s5 + $0x8] sm:$0xff]
    %v3753 = vld [vmem:[%s5 + $0x10] sm:$0xff]
    %v3754 = vld [vmem:[%s5 + $0x18] sm:$0xff]
    %v3755 = vld [vmem:[%s6] sm:$0xff]
    %v3756 = vld [vmem:[%s6 + $0x8] sm:$0xff]
    %v3757 = vld [vmem:[%s6 + $0x10] sm:$0xff]
    %v3758 = vld [vmem:[%s6 + $0x18] sm:$0xff]
    %3760 = vset.pattern.permute.xlu0 0
    %3761 = vperm.xlu0 %3760, %v3755
    %v3762 = vpop.permute.xlu0 %3761
    %3765 = vset.pattern.permute.xlu0 0
    %3766 = vperm.xlu0 %3765, %v3756
    %v3767 = vpop.permute.xlu0 %3766
    %3770 = vset.pattern.permute.xlu0 0
    %3771 = vperm.xlu0 %3770, %v3757
    %v3772 = vpop.permute.xlu0 %3771
    %3775 = vset.pattern.permute.xlu0 0
    %3776 = vperm.xlu0 %3775, %v3758
    %v3777 = vpop.permute.xlu0 %3776
    %v3780 = vsel %vm1949, %v3751, 0
    %v3783 = vsel %vm1949, %v3752, 0
    %v3786 = vsel %vm1949, %v3753, 0
    %v3789 = vsel %vm1949, %v3754, 0
    %3791 = vmatprep.subr.mxu0 %v2294
    %3792 = vmatpush1.msra.mxu0 %v2190
    %3793 = vmatprep.subr.mxu0 %v2502
    %3794 = vmatpush1.msra.mxu0 %v2398
    %3795 = vmatprep.subr.mxu0 %v2710
    %3796 = vmatpush1.msra.mxu0 %v2606
    %3797 = vmatprep.subr.mxu0 %v2918
    %3798 = vmatpush1.msra.mxu0 %v2814
    %3799 = vmatprep.subr.mxu0 %v3126
    %3800 = vmatpush1.msra.mxu0 %v3022
    %3801 = vmatprep.subr.mxu0 %v3334
    %3802 = vmatpush1.msra.mxu0 %v3230
    %3803 = vmatprep.subr.mxu0 %v3542
    %3804 = vmatpush1.msra.mxu0 %v3438
    %3805 = vmatprep.subr.mxu0 %v3750
    %3806 = vmatpush1.msra.mxu0 %v3646
    %3807 = vmatprep.subr.mxu0 0.0
    %3808 = vmatpush1.msra.mxu0 0.0
    %3809 = vmatprep.subr.mxu0 0.0
    %3810 = vmatpush1.msra.mxu0 0.0
    %3811 = vmatprep.subr.mxu0 0.0
    %3812 = vmatpush1.msra.mxu0 0.0
    %3813 = vmatprep.subr.mxu0 0.0
    %3814 = vmatpush1.msra.mxu0 0.0
    %3815 = vmatprep.subr.mxu0 0.0
    %3816 = vmatpush1.msra.mxu0 0.0
    %3817 = vmatprep.subr.mxu0 0.0
    %3818 = vmatpush1.msra.mxu0 0.0
    %3819 = vmatprep.subr.mxu0 0.0
    %3820 = vmatpush1.msra.mxu0 0.0
    %3821 = vmatprep.subr.mxu0 0.0
    %3822 = vmatpush1.msra.mxu0 0.0
    %3823 = vmatprep.subr.mxu0 0.0
    %3824 = vmatpush1.msra.mxu0 0.0
    %3825 = vmatprep.subr.mxu0 0.0
    %3826 = vmatpush1.msra.mxu0 0.0
    %3827 = vmatprep.subr.mxu0 0.0
    %3828 = vmatpush1.msra.mxu0 0.0
    %3829 = vmatprep.subr.mxu0 0.0
    %3830 = vmatpush1.msra.mxu0 0.0
    %3831 = vmatprep.subr.mxu0 0.0
    %3832 = vmatpush1.msra.mxu0 0.0
    %3833 = vmatprep.subr.mxu0 0.0
    %3834 = vmatpush1.msra.mxu0 0.0
    %3835 = vmatprep.subr.mxu0 0.0
    %3836 = vmatpush1.msra.mxu0 0.0
    %3837 = vmatprep.subr.mxu0 0.0
    %3838 = vmatpush1.msra.mxu0 0.0
    %3839 = vmatprep.subr.mxu0 0.0
    %3840 = vmatpush1.msra.mxu0 0.0
    %3841 = vmatprep.subr.mxu0 0.0
    %3842 = vmatpush1.msra.mxu0 0.0
    %3843 = vmatprep.subr.mxu0 0.0
    %3844 = vmatpush1.msra.mxu0 0.0
    %3845 = vmatprep.subr.mxu0 0.0
    %3846 = vmatpush1.msra.mxu0 0.0
    %3847 = vmatprep.subr.mxu0 0.0
    %3848 = vmatpush1.msra.mxu0 0.0
    %3849 = vmatprep.subr.mxu0 0.0
    %3850 = vmatpush1.msra.mxu0 0.0
    %3851 = vmatprep.subr.mxu0 0.0
    %3852 = vmatpush1.msra.mxu0 0.0
    %3853 = vmatprep.subr.mxu0 0.0
    %3854 = vmatpush1.msra.mxu0 0.0
    %3855 = vmatprep.mubr.f32.mxu0 0.0
    %3856 = vmatmul.mubr.f32.gmra.mrb[0].mxu0 %v3780
    %v3857 = vpop.f32.mrb[0].mxu0
    %v3858 = vadd.f32 %v3762, %v3857
    %v3859 = vpop.f32.mrb[0].mxu0
    %v3860 = vadd.f32 %v3762, %v3859
    %3861 = vmatprep.mubr.f32.mxu0 0.0
    %3862 = vmatmul.mubr.f32.gmra.mrb[0].mxu0 %v3783
    %v3863 = vpop.f32.mrb[0].mxu0
    %v3864 = vadd.f32 %v3767, %v3863
    %v3865 = vpop.f32.mrb[0].mxu0
    %v3866 = vadd.f32 %v3767, %v3865
    %3867 = vmatprep.mubr.f32.mxu0 0.0
    %3868 = vmatmul.mubr.f32.gmra.mrb[0].mxu0 %v3786
    %v3869 = vpop.f32.mrb[0].mxu0
    %v3870 = vadd.f32 %v3772, %v3869
    %v3871 = vpop.f32.mrb[0].mxu0
    %v3872 = vadd.f32 %v3772, %v3871
    %3873 = vmatprep.mubr.f32.mxu0 0.0
    %3874 = vmatmul.mubr.f32.gmra.mrb[0].mxu0 %v3789
    %v3875 = vpop.f32.mrb[0].mxu0
    %v3876 = vadd.f32 %v3777, %v3875
    %v3877 = vpop.f32.mrb[0].mxu0
    %v3878 = vadd.f32 %v3777, %v3877
    %3879 = vdwg.mxu0
    %v3880 = vmul.f32 %v3858, 0.5
    %v3881 = vmul.f32 %v3860, 0.5
    %v3882 = vmul.f32 %v3864, 0.5
    %v3883 = vmul.f32 %v3866, 0.5
    %v3884 = vmul.f32 %v3870, 0.5
    %v3885 = vmul.f32 %v3872, 0.5
    %v3886 = vmul.f32 %v3876, 0.5
    %v3887 = vmul.f32 %v3878, 0.5
    %v3888 = vtanh.pop %v3880
    %v3889 = vtanh.pop %v3881
    %v3890 = vtanh.pop %v3882
    %v3891 = vtanh.pop %v3883
    %v3892 = vtanh.pop %v3884
    %v3893 = vtanh.pop %v3885
    %v3894 = vtanh.pop %v3886
    %v3895 = vtanh.pop %v3887
    %v3896 = vmul.f32 %v3888, 0.5
    %v3897 = vmul.f32 %v3889, 0.5
    %v3898 = vmul.f32 %v3890, 0.5
    %v3899 = vmul.f32 %v3891, 0.5
    %v3900 = vmul.f32 %v3892, 0.5
    %v3901 = vmul.f32 %v3893, 0.5
    %v3902 = vmul.f32 %v3894, 0.5
    %v3903 = vmul.f32 %v3895, 0.5
    %v3904 = vadd.f32 %v3896, 0.5
    %v3905 = vadd.f32 %v3897, 0.5
    %v3906 = vadd.f32 %v3898, 0.5
    %v3907 = vadd.f32 %v3899, 0.5
    %v3908 = vadd.f32 %v3900, 0.5
    %v3909 = vadd.f32 %v3901, 0.5
    %v3910 = vadd.f32 %v3902, 0.5
    %v3911 = vadd.f32 %v3903, 0.5
    %3912 = vst [vmem:[#allocation2] sm:$0xff] %v3904
    %3913 = vst [vmem:[#allocation2 + $0x8] sm:$0xff] %v3905
    %3914 = vst [vmem:[#allocation2 + $0x10] sm:$0xff] %v3906
    %3915 = vst [vmem:[#allocation2 + $0x18] sm:$0xff] %v3907
    %3916 = vst [vmem:[#allocation2 + $0x20] sm:$0xff] %v3908
    %3917 = vst [vmem:[#allocation2 + $0x28] sm:$0xff] %v3909
    %3918 = vst [vmem:[#allocation2 + $0x30] sm:$0xff] %v3910
    %3919 = vst [vmem:[#allocation2 + $0x38] sm:$0xff] %v3911
    // Predicated region
    $region30: #{tpu_custom_call.1} parent=1 // pred_check
      _
    $region31: #{tpu_custom_call.1} parent=1 // pred_check_branch
      %3921 = sbr.rel (0) target = $region33
    $region32: #{tpu_custom_call.1} parent=1 // pred_region
      %s3923 = ssub.s32 1024, 1024
      %3924 = vsyncadd [#allocation3], %s3923
      %s3925 = sshll.u32 [#allocation2], 4
      %s3926 = int_to_ptr.vmem [resolvable:$true] %s3925
      %3931 = dma.vmem_to_hbm [thread:$0]  %s3926, 1024, %s7, [#allocation3], 256, 256, 16
    $region33: #{tpu_custom_call.1} parent=1 // pred_fallthru
      _
    // Predicated region
    $region34: #{tpu_custom_call.1} parent=1 // pred_check
      _
    $region35: #{tpu_custom_call.1} parent=1 // pred_check_branch
      %3933 = sbr.rel (0) target = $region37
    $region36: #{tpu_custom_call.1} parent=1 // pred_region
      %3934 = dma.done [#allocation3], 1024
    $region37: #{tpu_custom_call.1} parent=1 // pred_fallthru
      _
    %3935 = vsyncpa [#allocation3], 1

</llo_original>
